<compile_context>
chip_gen: v6e
topology: v6e:2x2x1
jax: 0.10.0
libtpu: 0.0.40
codegen_flags: <defaults>
</compile_context>

<pallas_src>
import jax
import jax.numpy as jnp
from jax.experimental import pallas as pl
from jax.experimental.pallas import tpu as pltpu

_EPS = 1e-5
_LANES = 128
_VMEM_LIMIT = 32 * 1024 * 1024

_PAR_PARAMS = pltpu.CompilerParams(dimension_semantics=("parallel",),
                                   vmem_limit_bytes=_VMEM_LIMIT)


def _round_up(x, m):
    return (x + m - 1) // m * m


def _erf(x):
    # Abramowitz & Stegun 7.1.26 rational approximation (max abs err ~1.5e-7),
    # built only from ops with guaranteed Mosaic lowerings.
    a1, a2, a3, a4, a5 = (0.254829592, -0.284496736, 1.421413741,
                          -1.453152027, 1.061405429)
    p = 0.3275911
    ax = jnp.abs(x)
    t = 1.0 / (1.0 + p * ax)
    poly = ((((a5 * t + a4) * t + a3) * t + a2) * t + a1) * t
    e = 1.0 - poly * jnp.exp(-ax * ax)
    return jnp.where(x >= 0.0, e, -e)


def _gelu(x):
    # Exact (erf-based) GELU, matching PyTorch nn.GELU(approximate='none').
    return 0.5 * x * (1.0 + _erf(x * 0.7071067811865476))


# --------------------------------------------------------------------------
# Kernel 1: depthwise 3x3 conv (+bias) per image, emitting per-image partial
# BN1 statistics.  Grid over N, fully "parallel" (no resident accumulator).
# --------------------------------------------------------------------------
def _dw_conv_stats_kernel(xp_ref, w_ref, b_ref, out_ref, sum_ref, sq_ref):
    _, hh, ww, cp = out_ref.shape
    x = xp_ref[0]                                          # (H+2, W+2, C) f32

    # Materialize the three column-shifted views ONCE.  dj = 1, 2 start at
    # sublane-unaligned offsets, so doing them once (instead of 3x each inside
    # the tap loop) cuts the hidden retile copies from 6 to 2.
    cols = (x[:, 0:ww, :], x[:, 1:ww + 1, :], x[:, 2:ww + 2, :])

    # Accumulate all 9 taps in a local f32 value; store the block exactly once.
    acc = cols[0][0:hh] * w_ref[0].reshape(1, 1, cp)
    for k in range(1, 9):
        di, dj = divmod(k, 3)
        acc = acc + cols[dj][di:di + hh] * w_ref[k].reshape(1, 1, cp)
    acc = acc + b_ref[...].reshape(1, 1, cp)

    out_ref[0] = acc.astype(out_ref.dtype)                 # single bf16 store

    # Per-image partial BN1 stats, taken from the f32 accumulator (pre-cast).
    row_sum = jnp.sum(acc, axis=0)                         # (W, C)
    row_sq = jnp.sum(acc * acc, axis=0)                    # (W, C)
    sum_ref[0] = jnp.sum(row_sum, axis=0, keepdims=True)   # (1, C)
    sq_ref[0] = jnp.sum(row_sq, axis=0, keepdims=True)


# --------------------------------------------------------------------------
# Kernel 2: BN1 affine + exact GELU + pointwise 1x1 conv on the MXU (+bias),
# emitting per-step partial BN2 stats.  Grid over M tiles, "parallel".
# --------------------------------------------------------------------------
def _make_bn_gelu_pw_stats_kernel(tm, m_total):
    need_mask = (m_total % tm) != 0    # static: only when the last tile is partial

    def kernel(x_ref, sc_ref, sh_ref, w_ref, b_ref, out_ref, sum_ref, sq_ref):
        x = x_ref[...].astype(jnp.float32) * sc_ref[...] + sh_ref[...]  # BN1 affine
        g = _gelu(x)                                                    # exact GELU, f32
        acc = jnp.dot(g.astype(w_ref.dtype), w_ref[...],                # bf16 MXU, f32 acc
                      preferred_element_type=jnp.float32)
        acc = acc + b_ref[...]
        out_ref[...] = acc.astype(out_ref.dtype)                        # bf16 store

        if need_mask:
            row = (jax.lax.broadcasted_iota(jnp.int32, (tm, 1), 0)
                   + pl.program_id(0) * tm)
            acc = jnp.where(row < m_total, acc, 0.0)
        sum_ref[0] = jnp.sum(acc, axis=0, keepdims=True)
        sq_ref[0] = jnp.sum(acc * acc, axis=0, keepdims=True)

    return kernel


# --------------------------------------------------------------------------
# Kernel 3: BN2 affine + exact GELU (pure element-wise), "parallel",
# output aliased onto its input buffer.
# --------------------------------------------------------------------------
def _bn_gelu_kernel(x_ref, sc_ref, sh_ref, out_ref):
    x = x_ref[...].astype(jnp.float32) * sc_ref[...] + sh_ref[...]
    out_ref[...] = _gelu(x).astype(out_ref.dtype)


# --------------------------------------------------------------------------
# Wrapper helpers.
# --------------------------------------------------------------------------
def _pad_last(a, target):
    pad = target - a.shape[-1]
    if pad == 0:
        return a
    return jnp.pad(a, [(0, 0)] * (a.ndim - 1) + [(0, pad)])


def _bn_scale_shift(s, q, count, gamma_p, beta_p):
    # Training-mode BN: biased batch mean/var from sum & sum-of-squares.
    mean = s / count
    var = jnp.maximum(q / count - mean * mean, 0.0)
    scale = gamma_p * jax.lax.rsqrt(var + _EPS)
    shift = beta_p - mean * scale
    return scale, shift


def _pick_tile_m(m):
    # Big tiles amortize the ~0.35us/step pipeline overhead; the cdiv grid with
    # a masked tail removes the old exact-divisibility requirement.
    if m >= 4096:
        return 2048
    return max(8, _round_up(pl.cdiv(m, 2), 8))


@jax.jit
def dwpw_conv(x, w_dw, b_dw, gamma1, beta1, w_pw, b_pw, gamma2, beta2):
    """Forward pass of DWPWConv with training-mode BatchNorm statistics.

    x: (N, Cin, H, W) f32 (NCHW, PyTorch convention)
    w_dw: (Cin, 1, 3, 3), b_dw: (Cin,)            depthwise conv
    gamma1/beta1: (Cin,)                           BatchNorm2d(inc)
    w_pw: (Cout, Cin, 1, 1), b_pw: (Cout,)         pointwise conv
    gamma2/beta2: (Cout,)                          BatchNorm2d(outc)
    returns (N, Cout, H, W) f32
    """
    n, cin, h, w = x.shape
    cout = w_pw.shape[0]
    cp1 = _round_up(cin, _LANES)
    cp2 = _round_up(cout, _LANES)
    m = n * h * w

    # Internal layout is NHWC, channels lane-dense (padded to 128).
    x_nhwc = jnp.transpose(x, (0, 2, 3, 1))
    xp = jnp.pad(x_nhwc, ((0, 0), (1, 1), (1, 1), (0, cp1 - cin)))

    w_dw_mat = _pad_last(w_dw.reshape(cin, 9).T, cp1)          # (9, cp1)
    b_dw_mat = _pad_last(b_dw.reshape(1, cin), cp1)            # (1, cp1)

    # ---- kernel 1: depthwise conv + per-image BN1 partial stats -----------
    dw_out, s1p, q1p = pl.pallas_call(
        _dw_conv_stats_kernel,
        grid=(n,),
        in_specs=[
            pl.BlockSpec((1, h + 2, w + 2, cp1), lambda i: (i, 0, 0, 0)),
            pl.BlockSpec((9, cp1), lambda i: (0, 0)),
            pl.BlockSpec((1, cp1), lambda i: (0, 0)),
        ],
        out_specs=(
            pl.BlockSpec((1, h, w, cp1), lambda i: (i, 0, 0, 0)),
            pl.BlockSpec((1, 1, cp1), lambda i: (i, 0, 0)),
            pl.BlockSpec((1, 1, cp1), lambda i: (i, 0, 0)),
        ),
        out_shape=(
            jax.ShapeDtypeStruct((n, h, w, cp1), jnp.bfloat16),
            jax.ShapeDtypeStruct((n, 1, cp1), jnp.float32),
            jax.ShapeDtypeStruct((n, 1, cp1), jnp.float32),
        ),
        compiler_params=_PAR_PARAMS,
    )(xp, w_dw_mat, b_dw_mat)

    # ---- BN1 finalize (tiny per-channel math in plain XLA).  Padded channels
    # get gamma=0 so scale=shift=0 and stay exactly zero downstream.
    s1 = jnp.sum(s1p, axis=0)
    q1 = jnp.sum(q1p, axis=0)
    g1p = _pad_last(gamma1.reshape(1, cin), cp1)
    be1p = _pad_last(beta1.reshape(1, cin), cp1)
    scale1, shift1 = _bn_scale_shift(s1, q1, float(m), g1p, be1p)

    # ---- kernel 2: BN1 apply + GELU + 1x1 conv (MXU) + BN2 partial stats ---
    dw_flat = dw_out.reshape(m, cp1)                            # free reshape
    w_pw_mat = jnp.pad(w_pw.reshape(cout, cin).T,
                       ((0, cp1 - cin), (0, cp2 - cout))).astype(jnp.bfloat16)
    b_pw_mat = _pad_last(b_pw.reshape(1, cout), cp2)

    tm = _pick_tile_m(m)
    grid_m = pl.cdiv(m, tm)

    pw_out, s2p, q2p = pl.pallas_call(
        _make_bn_gelu_pw_stats_kernel(tm, m),
        grid=(grid_m,),
        in_specs=[
            pl.BlockSpec((tm, cp1), lambda i: (i, 0)),
            pl.BlockSpec((1, cp1), lambda i: (0, 0)),
            pl.BlockSpec((1, cp1), lambda i: (0, 0)),
            pl.BlockSpec((cp1, cp2), lambda i: (0, 0)),
            pl.BlockSpec((1, cp2), lambda i: (0, 0)),
        ],
        out_specs=(
            pl.BlockSpec((tm, cp2), lambda i: (i, 0)),
            pl.BlockSpec((1, 1, cp2), lambda i: (i, 0, 0)),
            pl.BlockSpec((1, 1, cp2), lambda i: (i, 0, 0)),
        ),
        out_shape=(
            jax.ShapeDtypeStruct((m, cp2), jnp.bfloat16),
            jax.ShapeDtypeStruct((grid_m, 1, cp2), jnp.float32),
            jax.ShapeDtypeStruct((grid_m, 1, cp2), jnp.float32),
        ),
        compiler_params=_PAR_PARAMS,
    )(dw_flat, scale1, shift1, w_pw_mat, b_pw_mat)

    # ---- BN2 finalize ------------------------------------------------------
    s2 = jnp.sum(s2p, axis=0)
    q2 = jnp.sum(q2p, axis=0)
    g2p = _pad_last(gamma2.reshape(1, cout), cp2)
    be2p = _pad_last(beta2.reshape(1, cout), cp2)
    scale2, shift2 = _bn_scale_shift(s2, q2, float(m), g2p, be2p)

    # ---- kernel 3: BN2 apply + GELU, output aliased onto pw_out ------------
    y_flat = pl.pallas_call(
        _bn_gelu_kernel,
        grid=(grid_m,),
        in_specs=[
            pl.BlockSpec((tm, cp2), lambda i: (i, 0)),
            pl.BlockSpec((1, cp2), lambda i: (0, 0)),
            pl.BlockSpec((1, cp2), lambda i: (0, 0)),
        ],
        out_specs=pl.BlockSpec((tm, cp2), lambda i: (i, 0)),
        out_shape=jax.ShapeDtypeStruct((m, cp2), jnp.bfloat16),
        input_output_aliases={0: 0},
        compiler_params=_PAR_PARAMS,
    )(pw_out, scale2, shift2)

    # Back to the PyTorch NCHW / f32 contract; slice off the channel padding.
    y = y_flat.reshape(n, h, w, cp2)[..., :cout].astype(jnp.float32)
    return jnp.transpose(y, (0, 3, 1, 2))


# --------------------------------------------------------------------------
# Pure-JAX reference replicating the PyTorch DWPWConv forward (training BN).
# --------------------------------------------------------------------------
def _bn_train_ref(x, gamma, beta):
    mean = x.mean(axis=(0, 2, 3), keepdims=True)
    var = ((x - mean) ** 2).mean(axis=(0, 2, 3), keepdims=True)
    xh = (x - mean) * jax.lax.rsqrt(var + _EPS)
    return xh * gamma.reshape(1, -1, 1, 1) + beta.reshape(1, -1, 1, 1)


def _reference(x, w_dw, b_dw, gamma1, beta1, w_pw, b_pw, gamma2, beta2):
    cin = x.shape[1]
    y = jax.lax.conv_general_dilated(
        x, w_dw, window_strides=(1, 1), padding=[(1, 1), (1, 1)],
        dimension_numbers=("NCHW", "OIHW", "NCHW"), feature_group_count=cin)
    y = y + b_dw.reshape(1, -1, 1, 1)
    y = _bn_train_ref(y, gamma1, beta1)
    y = jax.nn.gelu(y, approximate=False)               # PyTorch nn.GELU default
    z = jax.lax.conv_general_dilated(
        y, w_pw, window_strides=(1, 1), padding=[(0, 0), (0, 0)],
        dimension_numbers=("NCHW", "OIHW", "NCHW"))
    z = z + b_pw.reshape(1, -1, 1, 1)
    z = _bn_train_ref(z, gamma2, beta2)
    return jax.nn.gelu(z, approximate=False)


if __name__ == "__main__":
    key = jax.random.PRNGKey(0)
    keys = jax.random.split(key, 9)

    # DWPWConv(inc=4, outc=8) at small shapes.
    N, CIN, H, W = 2, 4, 16, 16
    COUT = 8

    x = jax.random.normal(keys[0], (N, CIN, H, W), dtype=jnp.float32)
    w_dw = jax.random.normal(keys[1], (CIN, 1, 3, 3), dtype=jnp.float32) * 0.3
    b_dw = jax.random.normal(keys[2], (CIN,), dtype=jnp.float32) * 0.1
    gamma1 = 1.0 + 0.1 * jax.random.normal(keys[3], (CIN,), dtype=jnp.float32)
    beta1 = 0.1 * jax.random.normal(keys[4], (CIN,), dtype=jnp.float32)
    w_pw = jax.random.normal(keys[5], (COUT, CIN, 1, 1), dtype=jnp.float32) * 0.3
    b_pw = jax.random.normal(keys[6], (COUT,), dtype=jnp.float32) * 0.1
    gamma2 = 1.0 + 0.1 * jax.random.normal(keys[7], (COUT,), dtype=jnp.float32)
    beta2 = 0.1 * jax.random.normal(keys[8], (COUT,), dtype=jnp.float32)

    out = dwpw_conv(x, w_dw, b_dw, gamma1, beta1, w_pw, b_pw, gamma2, beta2)
    out = jax.block_until_ready(out)

    ref = _reference(x, w_dw, b_dw, gamma1, beta1, w_pw, b_pw, gamma2, beta2)
    assert out.shape == (N, COUT, H, W)
    # Tolerance sized for the bf16 intermediate activations + bf16 MXU operands
    # (per the perf review); stats/BN math and GELU stay in f32.
    assert jnp.allclose(out, ref, atol=5e-2, rtol=5e-2), (
        "mismatch vs reference: max abs diff = %f"
        % float(jnp.max(jnp.abs(out - ref))))

    print("KERNEL_OK")
</pallas_src>

<mosaic_0001>
module attributes {stable_mosaic.version = 11 : i64} {
  func.func @_dw_conv_stats_kernel(%arg0: i32, %arg1: memref<1x18x18x128xf32, #tpu.memory_space<vmem>>, %arg2: memref<9x128xf32, #tpu.memory_space<vmem>>, %arg3: memref<1x128xf32, #tpu.memory_space<vmem>>, %arg4: memref<1x16x16x128xbf16, #tpu.memory_space<vmem>>, %arg5: memref<1x1x128xf32, #tpu.memory_space<vmem>>, %arg6: memref<1x1x128xf32, #tpu.memory_space<vmem>>) attributes {dimension_semantics = [#tpu.dimension_semantics<parallel>], iteration_bounds = array<i64: 2>, scalar_prefetch = 0 : i64, scratch_operands = 0 : i64, tpu.core_type = #tpu.core_type<tc>, window_params = [{transform_indices = @transform_0, window_bounds = array<i64: 1, 18, 18, 128>}, {pipeline_mode = #tpu.pipeline_mode<synchronous>, transform_indices = @transform_1, window_bounds = array<i64: 9, 128>}, {pipeline_mode = #tpu.pipeline_mode<synchronous>, transform_indices = @transform_2, window_bounds = array<i64: 1, 128>}, {transform_indices = @transform_3, window_bounds = array<i64: 1, 16, 16, 128>}, {transform_indices = @transform_4, window_bounds = array<i64: 1, 1, 128>}, {transform_indices = @transform_5, window_bounds = array<i64: 1, 1, 128>}]} {
    %c0 = arith.constant 0 : index
    %c0_0 = arith.constant 0 : index
    %c0_1 = arith.constant 0 : index
    %c0_2 = arith.constant 0 : index
    %0 = vector.load %arg1[%c0, %c0_0, %c0_1, %c0_2] : memref<1x18x18x128xf32, #tpu.memory_space<vmem>>, vector<1x18x18x128xf32>
    %1 = vector.shape_cast %0 : vector<1x18x18x128xf32> to vector<18x18x128xf32>
    %2 = vector.extract_strided_slice %1 {offsets = [0, 0, 0], sizes = [18, 16, 128], strides = [1, 1, 1]} : vector<18x18x128xf32> to vector<18x16x128xf32>
    %3 = vector.extract_strided_slice %1 {offsets = [0, 1, 0], sizes = [18, 16, 128], strides = [1, 1, 1]} : vector<18x18x128xf32> to vector<18x16x128xf32>
    %4 = vector.extract_strided_slice %1 {offsets = [0, 2, 0], sizes = [18, 16, 128], strides = [1, 1, 1]} : vector<18x18x128xf32> to vector<18x16x128xf32>
    %5 = vector.extract_strided_slice %2 {offsets = [0, 0, 0], sizes = [16, 16, 128], strides = [1, 1, 1]} : vector<18x16x128xf32> to vector<16x16x128xf32>
    %c0_3 = arith.constant 0 : index
    %c0_4 = arith.constant 0 : index
    %6 = vector.load %arg2[%c0_3, %c0_4] : memref<9x128xf32, #tpu.memory_space<vmem>>, vector<1x128xf32>
    %7 = vector.shape_cast %6 : vector<1x128xf32> to vector<128xf32>
    %8 = vector.shape_cast %7 : vector<128xf32> to vector<1x1x128xf32>
    %9 = vector.broadcast %8 : vector<1x1x128xf32> to vector<16x16x128xf32>
    %10 = arith.mulf %5, %9 : vector<16x16x128xf32>
    %11 = vector.extract_strided_slice %3 {offsets = [0, 0, 0], sizes = [16, 16, 128], strides = [1, 1, 1]} : vector<18x16x128xf32> to vector<16x16x128xf32>
    %c1 = arith.constant 1 : index
    %c0_5 = arith.constant 0 : index
    %12 = vector.load %arg2[%c1, %c0_5] : memref<9x128xf32, #tpu.memory_space<vmem>>, vector<1x128xf32>
    %13 = vector.shape_cast %12 : vector<1x128xf32> to vector<128xf32>
    %14 = vector.shape_cast %13 : vector<128xf32> to vector<1x1x128xf32>
    %15 = vector.broadcast %14 : vector<1x1x128xf32> to vector<16x16x128xf32>
    %16 = arith.mulf %11, %15 : vector<16x16x128xf32>
    %17 = arith.addf %10, %16 : vector<16x16x128xf32>
    %18 = vector.extract_strided_slice %4 {offsets = [0, 0, 0], sizes = [16, 16, 128], strides = [1, 1, 1]} : vector<18x16x128xf32> to vector<16x16x128xf32>
    %c2 = arith.constant 2 : index
    %c0_6 = arith.constant 0 : index
    %19 = vector.load %arg2[%c2, %c0_6] : memref<9x128xf32, #tpu.memory_space<vmem>>, vector<1x128xf32>
    %20 = vector.shape_cast %19 : vector<1x128xf32> to vector<128xf32>
    %21 = vector.shape_cast %20 : vector<128xf32> to vector<1x1x128xf32>
    %22 = vector.broadcast %21 : vector<1x1x128xf32> to vector<16x16x128xf32>
    %23 = arith.mulf %18, %22 : vector<16x16x128xf32>
    %24 = arith.addf %17, %23 : vector<16x16x128xf32>
    %25 = vector.extract_strided_slice %2 {offsets = [1, 0, 0], sizes = [16, 16, 128], strides = [1, 1, 1]} : vector<18x16x128xf32> to vector<16x16x128xf32>
    %c3 = arith.constant 3 : index
    %c0_7 = arith.constant 0 : index
    %26 = vector.load %arg2[%c3, %c0_7] : memref<9x128xf32, #tpu.memory_space<vmem>>, vector<1x128xf32>
    %27 = vector.shape_cast %26 : vector<1x128xf32> to vector<128xf32>
    %28 = vector.shape_cast %27 : vector<128xf32> to vector<1x1x128xf32>
    %29 = vector.broadcast %28 : vector<1x1x128xf32> to vector<16x16x128xf32>
    %30 = arith.mulf %25, %29 : vector<16x16x128xf32>
    %31 = arith.addf %24, %30 : vector<16x16x128xf32>
    %32 = vector.extract_strided_slice %3 {offsets = [1, 0, 0], sizes = [16, 16, 128], strides = [1, 1, 1]} : vector<18x16x128xf32> to vector<16x16x128xf32>
    %c4 = arith.constant 4 : index
    %c0_8 = arith.constant 0 : index
    %33 = vector.load %arg2[%c4, %c0_8] : memref<9x128xf32, #tpu.memory_space<vmem>>, vector<1x128xf32>
    %34 = vector.shape_cast %33 : vector<1x128xf32> to vector<128xf32>
    %35 = vector.shape_cast %34 : vector<128xf32> to vector<1x1x128xf32>
    %36 = vector.broadcast %35 : vector<1x1x128xf32> to vector<16x16x128xf32>
    %37 = arith.mulf %32, %36 : vector<16x16x128xf32>
    %38 = arith.addf %31, %37 : vector<16x16x128xf32>
    %39 = vector.extract_strided_slice %4 {offsets = [1, 0, 0], sizes = [16, 16, 128], strides = [1, 1, 1]} : vector<18x16x128xf32> to vector<16x16x128xf32>
    %c5 = arith.constant 5 : index
    %c0_9 = arith.constant 0 : index
    %40 = vector.load %arg2[%c5, %c0_9] : memref<9x128xf32, #tpu.memory_space<vmem>>, vector<1x128xf32>
    %41 = vector.shape_cast %40 : vector<1x128xf32> to vector<128xf32>
    %42 = vector.shape_cast %41 : vector<128xf32> to vector<1x1x128xf32>
    %43 = vector.broadcast %42 : vector<1x1x128xf32> to vector<16x16x128xf32>
    %44 = arith.mulf %39, %43 : vector<16x16x128xf32>
    %45 = arith.addf %38, %44 : vector<16x16x128xf32>
    %46 = vector.extract_strided_slice %2 {offsets = [2, 0, 0], sizes = [16, 16, 128], strides = [1, 1, 1]} : vector<18x16x128xf32> to vector<16x16x128xf32>
    %c6 = arith.constant 6 : index
    %c0_10 = arith.constant 0 : index
    %47 = vector.load %arg2[%c6, %c0_10] : memref<9x128xf32, #tpu.memory_space<vmem>>, vector<1x128xf32>
    %48 = vector.shape_cast %47 : vector<1x128xf32> to vector<128xf32>
    %49 = vector.shape_cast %48 : vector<128xf32> to vector<1x1x128xf32>
    %50 = vector.broadcast %49 : vector<1x1x128xf32> to vector<16x16x128xf32>
    %51 = arith.mulf %46, %50 : vector<16x16x128xf32>
    %52 = arith.addf %45, %51 : vector<16x16x128xf32>
    %53 = vector.extract_strided_slice %3 {offsets = [2, 0, 0], sizes = [16, 16, 128], strides = [1, 1, 1]} : vector<18x16x128xf32> to vector<16x16x128xf32>
    %c7 = arith.constant 7 : index
    %c0_11 = arith.constant 0 : index
    %54 = vector.load %arg2[%c7, %c0_11] : memref<9x128xf32, #tpu.memory_space<vmem>>, vector<1x128xf32>
    %55 = vector.shape_cast %54 : vector<1x128xf32> to vector<128xf32>
    %56 = vector.shape_cast %55 : vector<128xf32> to vector<1x1x128xf32>
    %57 = vector.broadcast %56 : vector<1x1x128xf32> to vector<16x16x128xf32>
    %58 = arith.mulf %53, %57 : vector<16x16x128xf32>
    %59 = arith.addf %52, %58 : vector<16x16x128xf32>
    %60 = vector.extract_strided_slice %4 {offsets = [2, 0, 0], sizes = [16, 16, 128], strides = [1, 1, 1]} : vector<18x16x128xf32> to vector<16x16x128xf32>
    %c8 = arith.constant 8 : index
    %c0_12 = arith.constant 0 : index
    %61 = vector.load %arg2[%c8, %c0_12] : memref<9x128xf32, #tpu.memory_space<vmem>>, vector<1x128xf32>
    %62 = vector.shape_cast %61 : vector<1x128xf32> to vector<128xf32>
    %63 = vector.shape_cast %62 : vector<128xf32> to vector<1x1x128xf32>
    %64 = vector.broadcast %63 : vector<1x1x128xf32> to vector<16x16x128xf32>
    %65 = arith.mulf %60, %64 : vector<16x16x128xf32>
    %66 = arith.addf %59, %65 : vector<16x16x128xf32>
    %c0_13 = arith.constant 0 : index
    %c0_14 = arith.constant 0 : index
    %67 = vector.load %arg3[%c0_13, %c0_14] : memref<1x128xf32, #tpu.memory_space<vmem>>, vector<1x128xf32>
    %68 = vector.shape_cast %67 : vector<1x128xf32> to vector<1x1x128xf32>
    %69 = vector.broadcast %68 : vector<1x1x128xf32> to vector<16x16x128xf32>
    %70 = arith.addf %66, %69 : vector<16x16x128xf32>
    %71 = arith.truncf %70 : vector<16x16x128xf32> to vector<16x16x128xbf16>
    %c0_15 = arith.constant 0 : index
    %c0_16 = arith.constant 0 : index
    %c0_17 = arith.constant 0 : index
    %c0_18 = arith.constant 0 : index
    %72 = vector.load %arg4[%c0_15, %c0_16, %c0_17, %c0_18] : memref<1x16x16x128xbf16, #tpu.memory_space<vmem>>, vector<1x16x16x128xbf16>
    %73 = vector.shape_cast %72 : vector<1x16x16x128xbf16> to vector<16x16x128xbf16>
    %74 = vector.shape_cast %71 : vector<16x16x128xbf16> to vector<1x16x16x128xbf16>
    tpu.vector_store %arg4[%c0_15, %c0_16, %c0_17, %c0_18], %74 {strides = array<i32>} : memref<1x16x16x128xbf16, #tpu.memory_space<vmem>>, vector<1x16x16x128xbf16>,
    %cst = arith.constant dense<0.000000e+00> : vector<16x128xf32>
    %75 = vector.multi_reduction <add>, %70, %cst [0] : vector<16x16x128xf32> to vector<16x128xf32>
    %76 = arith.mulf %70, %70 : vector<16x16x128xf32>
    %cst_19 = arith.constant dense<0.000000e+00> : vector<16x128xf32>
    %77 = vector.multi_reduction <add>, %76, %cst_19 [0] : vector<16x16x128xf32> to vector<16x128xf32>
    %cst_20 = arith.constant dense<0.000000e+00> : vector<128xf32>
    %78 = vector.multi_reduction <add>, %75, %cst_20 [0] : vector<16x128xf32> to vector<128xf32>
    %79 = vector.shape_cast %78 : vector<128xf32> to vector<1x128xf32>
    %c0_21 = arith.constant 0 : index
    %c0_22 = arith.constant 0 : index
    %c0_23 = arith.constant 0 : index
    %80 = vector.load %arg5[%c0_21, %c0_22, %c0_23] : memref<1x1x128xf32, #tpu.memory_space<vmem>>, vector<1x1x128xf32>
    %81 = vector.shape_cast %80 : vector<1x1x128xf32> to vector<1x128xf32>
    %82 = vector.shape_cast %79 : vector<1x128xf32> to vector<1x1x128xf32>
    tpu.vector_store %arg5[%c0_21, %c0_22, %c0_23], %82 {strides = array<i32>} : memref<1x1x128xf32, #tpu.memory_space<vmem>>, vector<1x1x128xf32>,
    %cst_24 = arith.constant dense<0.000000e+00> : vector<128xf32>
    %83 = vector.multi_reduction <add>, %77, %cst_24 [0] : vector<16x128xf32> to vector<128xf32>
    %84 = vector.shape_cast %83 : vector<128xf32> to vector<1x128xf32>
    %c0_25 = arith.constant 0 : index
    %c0_26 = arith.constant 0 : index
    %c0_27 = arith.constant 0 : index
    %85 = vector.load %arg6[%c0_25, %c0_26, %c0_27] : memref<1x1x128xf32, #tpu.memory_space<vmem>>, vector<1x1x128xf32>
    %86 = vector.shape_cast %85 : vector<1x1x128xf32> to vector<1x128xf32>
    %87 = vector.shape_cast %84 : vector<1x128xf32> to vector<1x1x128xf32>
    tpu.vector_store %arg6[%c0_25, %c0_26, %c0_27], %87 {strides = array<i32>} : memref<1x1x128xf32, #tpu.memory_space<vmem>>, vector<1x1x128xf32>,
    return
  }
  func.func @transform_0(%arg0: i32) -> (i32, i32, i32, i32) {
    %c0_i32 = arith.constant 0 : i32
    %c0_i32_0 = arith.constant 0 : i32
    %c0_i32_1 = arith.constant 0 : i32
    %c0_i32_2 = arith.constant 0 : i32
    return %arg0, %c0_i32, %c0_i32_0, %c0_i32_1 : i32, i32, i32, i32
  }
  func.func @transform_1(%arg0: i32) -> (i32, i32) {
    %c0_i32 = arith.constant 0 : i32
    %c0_i32_0 = arith.constant 0 : i32
    %c0_i32_1 = arith.constant 0 : i32
    return %c0_i32, %c0_i32_0 : i32, i32
  }
  func.func @transform_2(%arg0: i32) -> (i32, i32) {
    %c0_i32 = arith.constant 0 : i32
    %c0_i32_0 = arith.constant 0 : i32
    %c0_i32_1 = arith.constant 0 : i32
    return %c0_i32, %c0_i32_0 : i32, i32
  }
  func.func @transform_3(%arg0: i32) -> (i32, i32, i32, i32) {
    %c0_i32 = arith.constant 0 : i32
    %c0_i32_0 = arith.constant 0 : i32
    %c0_i32_1 = arith.constant 0 : i32
    %c0_i32_2 = arith.constant 0 : i32
    return %arg0, %c0_i32, %c0_i32_0, %c0_i32_1 : i32, i32, i32, i32
  }
  func.func @transform_4(%arg0: i32) -> (i32, i32, i32) {
    %c0_i32 = arith.constant 0 : i32
    %c0_i32_0 = arith.constant 0 : i32
    %c0_i32_1 = arith.constant 0 : i32
    return %arg0, %c0_i32, %c0_i32_0 : i32, i32, i32
  }
  func.func @transform_5(%arg0: i32) -> (i32, i32, i32) {
    %c0_i32 = arith.constant 0 : i32
    %c0_i32_0 = arith.constant 0 : i32
    %c0_i32_1 = arith.constant 0 : i32
    return %arg0, %c0_i32, %c0_i32_0 : i32, i32, i32
  }
}

module attributes {stable_mosaic.version = 11 : i64} {
  func.func @kernel(%arg0: i32, %arg1: memref<256x128xbf16, #tpu.memory_space<vmem>>, %arg2: memref<1x128xf32, #tpu.memory_space<vmem>>, %arg3: memref<1x128xf32, #tpu.memory_space<vmem>>, %arg4: memref<128x128xbf16, #tpu.memory_space<vmem>>, %arg5: memref<1x128xf32, #tpu.memory_space<vmem>>, %arg6: memref<256x128xbf16, #tpu.memory_space<vmem>>, %arg7: memref<1x1x128xf32, #tpu.memory_space<vmem>>, %arg8: memref<1x1x128xf32, #tpu.memory_space<vmem>>) attributes {dimension_semantics = [#tpu.dimension_semantics<parallel>], iteration_bounds = array<i64: 2>, scalar_prefetch = 0 : i64, scratch_operands = 0 : i64, tpu.core_type = #tpu.core_type<tc>, window_params = [{transform_indices = @transform_0, window_bounds = array<i64: 256, 128>}, {pipeline_mode = #tpu.pipeline_mode<synchronous>, transform_indices = @transform_1, window_bounds = array<i64: 1, 128>}, {pipeline_mode = #tpu.pipeline_mode<synchronous>, transform_indices = @transform_2, window_bounds = array<i64: 1, 128>}, {pipeline_mode = #tpu.pipeline_mode<synchronous>, transform_indices = @transform_3, window_bounds = array<i64: 128, 128>}, {pipeline_mode = #tpu.pipeline_mode<synchronous>, transform_indices = @transform_4, window_bounds = array<i64: 1, 128>}, {transform_indices = @transform_5, window_bounds = array<i64: 256, 128>}, {transform_indices = @transform_6, window_bounds = array<i64: 1, 1, 128>}, {transform_indices = @transform_7, window_bounds = array<i64: 1, 1, 128>}]} {
    %c0 = arith.constant 0 : index
    %c0_0 = arith.constant 0 : index
    %0 = vector.load %arg1[%c0, %c0_0] : memref<256x128xbf16, #tpu.memory_space<vmem>>, vector<256x128xbf16>
    %1 = arith.extf %0 : vector<256x128xbf16> to vector<256x128xf32>
    %c0_1 = arith.constant 0 : index
    %c0_2 = arith.constant 0 : index
    %2 = vector.load %arg2[%c0_1, %c0_2] : memref<1x128xf32, #tpu.memory_space<vmem>>, vector<1x128xf32>
    %3 = vector.broadcast %2 : vector<1x128xf32> to vector<256x128xf32>
    %4 = arith.mulf %1, %3 : vector<256x128xf32>
    %c0_3 = arith.constant 0 : index
    %c0_4 = arith.constant 0 : index
    %5 = vector.load %arg3[%c0_3, %c0_4] : memref<1x128xf32, #tpu.memory_space<vmem>>, vector<1x128xf32>
    %6 = vector.broadcast %5 : vector<1x128xf32> to vector<256x128xf32>
    %7 = arith.addf %4, %6 : vector<256x128xf32>
    %cst = arith.constant 5.000000e-01 : f32
    %8 = vector.broadcast %cst : f32 to vector<256x128xf32>
    %9 = arith.mulf %8, %7 : vector<256x128xf32>
    %cst_5 = arith.constant 0.707106769 : f32
    %10 = vector.broadcast %cst_5 : f32 to vector<256x128xf32>
    %11 = arith.mulf %7, %10 : vector<256x128xf32>
    %12 = math.absf %11 : vector<256x128xf32>
    %cst_6 = arith.constant 0.327591091 : f32
    %13 = vector.broadcast %cst_6 : f32 to vector<256x128xf32>
    %14 = arith.mulf %13, %12 : vector<256x128xf32>
    %cst_7 = arith.constant 1.000000e+00 : f32
    %15 = vector.broadcast %cst_7 : f32 to vector<256x128xf32>
    %16 = arith.addf %15, %14 : vector<256x128xf32>
    %cst_8 = arith.constant 1.000000e+00 : f32
    %17 = vector.broadcast %cst_8 : f32 to vector<256x128xf32>
    %18 = arith.divf %17, %16 : vector<256x128xf32>
    %cst_9 = arith.constant 1.06140542 : f32
    %19 = vector.broadcast %cst_9 : f32 to vector<256x128xf32>
    %20 = arith.mulf %19, %18 : vector<256x128xf32>
    %cst_10 = arith.constant -1.45315206 : f32
    %21 = vector.broadcast %cst_10 : f32 to vector<256x128xf32>
    %22 = arith.addf %20, %21 : vector<256x128xf32>
    %23 = arith.mulf %22, %18 : vector<256x128xf32>
    %cst_11 = arith.constant 1.42141378 : f32
    %24 = vector.broadcast %cst_11 : f32 to vector<256x128xf32>
    %25 = arith.addf %23, %24 : vector<256x128xf32>
    %26 = arith.mulf %25, %18 : vector<256x128xf32>
    %cst_12 = arith.constant -0.284496725 : f32
    %27 = vector.broadcast %cst_12 : f32 to vector<256x128xf32>
    %28 = arith.addf %26, %27 : vector<256x128xf32>
    %29 = arith.mulf %28, %18 : vector<256x128xf32>
    %cst_13 = arith.constant 0.254829586 : f32
    %30 = vector.broadcast %cst_13 : f32 to vector<256x128xf32>
    %31 = arith.addf %29, %30 : vector<256x128xf32>
    %32 = arith.mulf %31, %18 : vector<256x128xf32>
    %cst_14 = arith.constant 0.000000e+00 : f32
    %33 = vector.broadcast %cst_14 : f32 to vector<256x128xf32>
    %34 = arith.subf %33, %12 : vector<256x128xf32>
    %35 = arith.mulf %34, %12 : vector<256x128xf32>
    %36 = math.exp %35 : vector<256x128xf32>
    %37 = arith.mulf %32, %36 : vector<256x128xf32>
    %cst_15 = arith.constant 1.000000e+00 : f32
    %38 = vector.broadcast %cst_15 : f32 to vector<256x128xf32>
    %39 = arith.subf %38, %37 : vector<256x128xf32>
    %cst_16 = arith.constant 0.000000e+00 : f32
    %40 = vector.broadcast %cst_16 : f32 to vector<256x128xf32>
    %41 = arith.cmpf oge, %11, %40 : vector<256x128xf32>
    %cst_17 = arith.constant 0.000000e+00 : f32
    %42 = vector.broadcast %cst_17 : f32 to vector<256x128xf32>
    %43 = arith.subf %42, %39 : vector<256x128xf32>
    %44 = arith.select %41, %39, %43 : vector<256x128xi1>, vector<256x128xf32>
    %cst_18 = arith.constant 1.000000e+00 : f32
    %45 = vector.broadcast %cst_18 : f32 to vector<256x128xf32>
    %46 = arith.addf %45, %44 : vector<256x128xf32>
    %47 = arith.mulf %9, %46 : vector<256x128xf32>
    %48 = arith.truncf %47 : vector<256x128xf32> to vector<256x128xbf16>
    %c0_19 = arith.constant 0 : index
    %c0_20 = arith.constant 0 : index
    %49 = vector.load %arg4[%c0_19, %c0_20] : memref<128x128xbf16, #tpu.memory_space<vmem>>, vector<128x128xbf16>
    %cst_21 = arith.constant dense<0.000000e+00> : vector<256x128xf32>
    %50 = tpu.matmul %48, %49, %cst_21 {dimension_numbers = #tpu.dot_dimension_numbers<[1], [0], [0], [1], [0, 0, 1, 1], [], []>} : vector<256x128xbf16>, vector<128x128xbf16>, vector<256x128xf32> -> vector<256x128xf32>
    %c0_22 = arith.constant 0 : index
    %c0_23 = arith.constant 0 : index
    %51 = vector.load %arg5[%c0_22, %c0_23] : memref<1x128xf32, #tpu.memory_space<vmem>>, vector<1x128xf32>
    %52 = vector.broadcast %51 : vector<1x128xf32> to vector<256x128xf32>
    %53 = arith.addf %50, %52 : vector<256x128xf32>
    %54 = arith.truncf %53 : vector<256x128xf32> to vector<256x128xbf16>
    %c0_24 = arith.constant 0 : index
    %c0_25 = arith.constant 0 : index
    %55 = vector.load %arg6[%c0_24, %c0_25] : memref<256x128xbf16, #tpu.memory_space<vmem>>, vector<256x128xbf16>
    tpu.vector_store %arg6[%c0_24, %c0_25], %54 {strides = array<i32>} : memref<256x128xbf16, #tpu.memory_space<vmem>>, vector<256x128xbf16>,
    %cst_26 = arith.constant dense<0.000000e+00> : vector<128xf32>
    %56 = vector.multi_reduction <add>, %53, %cst_26 [0] : vector<256x128xf32> to vector<128xf32>
    %57 = vector.shape_cast %56 : vector<128xf32> to vector<1x128xf32>
    %c0_27 = arith.constant 0 : index
    %c0_28 = arith.constant 0 : index
    %c0_29 = arith.constant 0 : index
    %58 = vector.load %arg7[%c0_27, %c0_28, %c0_29] : memref<1x1x128xf32, #tpu.memory_space<vmem>>, vector<1x1x128xf32>
    %59 = vector.shape_cast %58 : vector<1x1x128xf32> to vector<1x128xf32>
    %60 = vector.shape_cast %57 : vector<1x128xf32> to vector<1x1x128xf32>
    tpu.vector_store %arg7[%c0_27, %c0_28, %c0_29], %60 {strides = array<i32>} : memref<1x1x128xf32, #tpu.memory_space<vmem>>, vector<1x1x128xf32>,
    %61 = arith.mulf %53, %53 : vector<256x128xf32>
    %cst_30 = arith.constant dense<0.000000e+00> : vector<128xf32>
    %62 = vector.multi_reduction <add>, %61, %cst_30 [0] : vector<256x128xf32> to vector<128xf32>
    %63 = vector.shape_cast %62 : vector<128xf32> to vector<1x128xf32>
    %c0_31 = arith.constant 0 : index
    %c0_32 = arith.constant 0 : index
    %c0_33 = arith.constant 0 : index
    %64 = vector.load %arg8[%c0_31, %c0_32, %c0_33] : memref<1x1x128xf32, #tpu.memory_space<vmem>>, vector<1x1x128xf32>
    %65 = vector.shape_cast %64 : vector<1x1x128xf32> to vector<1x128xf32>
    %66 = vector.shape_cast %63 : vector<1x128xf32> to vector<1x1x128xf32>
    tpu.vector_store %arg8[%c0_31, %c0_32, %c0_33], %66 {strides = array<i32>} : memref<1x1x128xf32, #tpu.memory_space<vmem>>, vector<1x1x128xf32>,
    return
  }
  func.func @transform_0(%arg0: i32) -> (i32, i32) {
    %c0_i32 = arith.constant 0 : i32
    %c0_i32_0 = arith.constant 0 : i32
    return %arg0, %c0_i32 : i32, i32
  }
  func.func @transform_1(%arg0: i32) -> (i32, i32) {
    %c0_i32 = arith.constant 0 : i32
    %c0_i32_0 = arith.constant 0 : i32
    %c0_i32_1 = arith.constant 0 : i32
    return %c0_i32, %c0_i32_0 : i32, i32
  }
  func.func @transform_2(%arg0: i32) -> (i32, i32) {
    %c0_i32 = arith.constant 0 : i32
    %c0_i32_0 = arith.constant 0 : i32
    %c0_i32_1 = arith.constant 0 : i32
    return %c0_i32, %c0_i32_0 : i32, i32
  }
  func.func @transform_3(%arg0: i32) -> (i32, i32) {
    %c0_i32 = arith.constant 0 : i32
    %c0_i32_0 = arith.constant 0 : i32
    %c0_i32_1 = arith.constant 0 : i32
    return %c0_i32, %c0_i32_0 : i32, i32
  }
  func.func @transform_4(%arg0: i32) -> (i32, i32) {
    %c0_i32 = arith.constant 0 : i32
    %c0_i32_0 = arith.constant 0 : i32
    %c0_i32_1 = arith.constant 0 : i32
    return %c0_i32, %c0_i32_0 : i32, i32
  }
  func.func @transform_5(%arg0: i32) -> (i32, i32) {
    %c0_i32 = arith.constant 0 : i32
    %c0_i32_0 = arith.constant 0 : i32
    return %arg0, %c0_i32 : i32, i32
  }
  func.func @transform_6(%arg0: i32) -> (i32, i32, i32) {
    %c0_i32 = arith.constant 0 : i32
    %c0_i32_0 = arith.constant 0 : i32
    %c0_i32_1 = arith.constant 0 : i32
    return %arg0, %c0_i32, %c0_i32_0 : i32, i32, i32
  }
  func.func @transform_7(%arg0: i32) -> (i32, i32, i32) {
    %c0_i32 = arith.constant 0 : i32
    %c0_i32_0 = arith.constant 0 : i32
    %c0_i32_1 = arith.constant 0 : i32
    return %arg0, %c0_i32, %c0_i32_0 : i32, i32, i32
  }
}

module attributes {stable_mosaic.version = 11 : i64} {
  func.func @_bn_gelu_kernel(%arg0: i32, %arg1: memref<256x128xbf16, #tpu.memory_space<vmem>>, %arg2: memref<1x128xf32, #tpu.memory_space<vmem>>, %arg3: memref<1x128xf32, #tpu.memory_space<vmem>>, %arg4: memref<256x128xbf16, #tpu.memory_space<vmem>>) attributes {dimension_semantics = [#tpu.dimension_semantics<parallel>], iteration_bounds = array<i64: 2>, scalar_prefetch = 0 : i64, scratch_operands = 0 : i64, tpu.core_type = #tpu.core_type<tc>, window_params = [{transform_indices = @transform_0, window_bounds = array<i64: 256, 128>}, {pipeline_mode = #tpu.pipeline_mode<synchronous>, transform_indices = @transform_1, window_bounds = array<i64: 1, 128>}, {pipeline_mode = #tpu.pipeline_mode<synchronous>, transform_indices = @transform_2, window_bounds = array<i64: 1, 128>}, {transform_indices = @transform_3, window_bounds = array<i64: 256, 128>}]} {
    %c0 = arith.constant 0 : index
    %c0_0 = arith.constant 0 : index
    %0 = vector.load %arg1[%c0, %c0_0] : memref<256x128xbf16, #tpu.memory_space<vmem>>, vector<256x128xbf16>
    %1 = arith.extf %0 : vector<256x128xbf16> to vector<256x128xf32>
    %c0_1 = arith.constant 0 : index
    %c0_2 = arith.constant 0 : index
    %2 = vector.load %arg2[%c0_1, %c0_2] : memref<1x128xf32, #tpu.memory_space<vmem>>, vector<1x128xf32>
    %3 = vector.broadcast %2 : vector<1x128xf32> to vector<256x128xf32>
    %4 = arith.mulf %1, %3 : vector<256x128xf32>
    %c0_3 = arith.constant 0 : index
    %c0_4 = arith.constant 0 : index
    %5 = vector.load %arg3[%c0_3, %c0_4] : memref<1x128xf32, #tpu.memory_space<vmem>>, vector<1x128xf32>
    %6 = vector.broadcast %5 : vector<1x128xf32> to vector<256x128xf32>
    %7 = arith.addf %4, %6 : vector<256x128xf32>
    %cst = arith.constant 5.000000e-01 : f32
    %8 = vector.broadcast %cst : f32 to vector<256x128xf32>
    %9 = arith.mulf %8, %7 : vector<256x128xf32>
    %cst_5 = arith.constant 0.707106769 : f32
    %10 = vector.broadcast %cst_5 : f32 to vector<256x128xf32>
    %11 = arith.mulf %7, %10 : vector<256x128xf32>
    %12 = math.absf %11 : vector<256x128xf32>
    %cst_6 = arith.constant 0.327591091 : f32
    %13 = vector.broadcast %cst_6 : f32 to vector<256x128xf32>
    %14 = arith.mulf %13, %12 : vector<256x128xf32>
    %cst_7 = arith.constant 1.000000e+00 : f32
    %15 = vector.broadcast %cst_7 : f32 to vector<256x128xf32>
    %16 = arith.addf %15, %14 : vector<256x128xf32>
    %cst_8 = arith.constant 1.000000e+00 : f32
    %17 = vector.broadcast %cst_8 : f32 to vector<256x128xf32>
    %18 = arith.divf %17, %16 : vector<256x128xf32>
    %cst_9 = arith.constant 1.06140542 : f32
    %19 = vector.broadcast %cst_9 : f32 to vector<256x128xf32>
    %20 = arith.mulf %19, %18 : vector<256x128xf32>
    %cst_10 = arith.constant -1.45315206 : f32
    %21 = vector.broadcast %cst_10 : f32 to vector<256x128xf32>
    %22 = arith.addf %20, %21 : vector<256x128xf32>
    %23 = arith.mulf %22, %18 : vector<256x128xf32>
    %cst_11 = arith.constant 1.42141378 : f32
    %24 = vector.broadcast %cst_11 : f32 to vector<256x128xf32>
    %25 = arith.addf %23, %24 : vector<256x128xf32>
    %26 = arith.mulf %25, %18 : vector<256x128xf32>
    %cst_12 = arith.constant -0.284496725 : f32
    %27 = vector.broadcast %cst_12 : f32 to vector<256x128xf32>
    %28 = arith.addf %26, %27 : vector<256x128xf32>
    %29 = arith.mulf %28, %18 : vector<256x128xf32>
    %cst_13 = arith.constant 0.254829586 : f32
    %30 = vector.broadcast %cst_13 : f32 to vector<256x128xf32>
    %31 = arith.addf %29, %30 : vector<256x128xf32>
    %32 = arith.mulf %31, %18 : vector<256x128xf32>
    %cst_14 = arith.constant 0.000000e+00 : f32
    %33 = vector.broadcast %cst_14 : f32 to vector<256x128xf32>
    %34 = arith.subf %33, %12 : vector<256x128xf32>
    %35 = arith.mulf %34, %12 : vector<256x128xf32>
    %36 = math.exp %35 : vector<256x128xf32>
    %37 = arith.mulf %32, %36 : vector<256x128xf32>
    %cst_15 = arith.constant 1.000000e+00 : f32
    %38 = vector.broadcast %cst_15 : f32 to vector<256x128xf32>
    %39 = arith.subf %38, %37 : vector<256x128xf32>
    %cst_16 = arith.constant 0.000000e+00 : f32
    %40 = vector.broadcast %cst_16 : f32 to vector<256x128xf32>
    %41 = arith.cmpf oge, %11, %40 : vector<256x128xf32>
    %cst_17 = arith.constant 0.000000e+00 : f32
    %42 = vector.broadcast %cst_17 : f32 to vector<256x128xf32>
    %43 = arith.subf %42, %39 : vector<256x128xf32>
    %44 = arith.select %41, %39, %43 : vector<256x128xi1>, vector<256x128xf32>
    %cst_18 = arith.constant 1.000000e+00 : f32
    %45 = vector.broadcast %cst_18 : f32 to vector<256x128xf32>
    %46 = arith.addf %45, %44 : vector<256x128xf32>
    %47 = arith.mulf %9, %46 : vector<256x128xf32>
    %48 = arith.truncf %47 : vector<256x128xf32> to vector<256x128xbf16>
    %c0_19 = arith.constant 0 : index
    %c0_20 = arith.constant 0 : index
    %49 = vector.load %arg4[%c0_19, %c0_20] : memref<256x128xbf16, #tpu.memory_space<vmem>>, vector<256x128xbf16>
    tpu.vector_store %arg4[%c0_19, %c0_20], %48 {strides = array<i32>} : memref<256x128xbf16, #tpu.memory_space<vmem>>, vector<256x128xbf16>,
    return
  }
  func.func @transform_0(%arg0: i32) -> (i32, i32) {
    %c0_i32 = arith.constant 0 : i32
    %c0_i32_0 = arith.constant 0 : i32
    return %arg0, %c0_i32 : i32, i32
  }
  func.func @transform_1(%arg0: i32) -> (i32, i32) {
    %c0_i32 = arith.constant 0 : i32
    %c0_i32_0 = arith.constant 0 : i32
    %c0_i32_1 = arith.constant 0 : i32
    return %c0_i32, %c0_i32_0 : i32, i32
  }
  func.func @transform_2(%arg0: i32) -> (i32, i32) {
    %c0_i32 = arith.constant 0 : i32
    %c0_i32_0 = arith.constant 0 : i32
    %c0_i32_1 = arith.constant 0 : i32
    return %c0_i32, %c0_i32_0 : i32, i32
  }
  func.func @transform_3(%arg0: i32) -> (i32, i32) {
    %c0_i32 = arith.constant 0 : i32
    %c0_i32_0 = arith.constant 0 : i32
    return %arg0, %c0_i32 : i32, i32
  }
}

</mosaic_0001>

<llo_original>
// kernel: dwpw_conv.3
$region0: #{dwpw_conv.3}
  #allocation0 [shape = 'u32[]', space=smem, size = 0x4, offset = 0x4, fixed_abs, tag = 'smem constant byte address 0x4 - core index']
  #allocation1 [shape = 'u32[144,128]{1,0:T(1,128)}', space=vmem, size = 0x12000, scoped, tag = 'internal scratch']
  %s0 = inlined_call_operand.vmem [shape: f32[2,18,18,128], index: 0, kind: input, shape index: {}]
  %s1 = inlined_call_operand.vmem [shape: f32[9,128], index: 1, kind: input, shape index: {}]
  %s2 = inlined_call_operand.vmem [shape: f32[1,128], index: 2, kind: input, shape index: {}]
  %s3 = inlined_call_operand.vmem [shape: bf16[2,16,16,128], index: 3, kind: output, shape index: {0}]
  %s4 = inlined_call_operand.vmem [shape: f32[2,1,128], index: 4, kind: output, shape index: {1}]
  %s5 = inlined_call_operand.vmem [shape: f32[2,1,128], index: 5, kind: output, shape index: {2}]
  %6 = xla_tuple %s3, %s4, %s5
  %s7 = sld [smem:[#allocation0]]
  $region61: #{dwpw_conv.3} parent=0
    _
  %s9 = ssub.s32 1, %s7
  %s10 = scalar_select 0, %s9, %s7
  loop: start=0, step=1, limit=4
  $region2: #{dwpw_conv.3} parent=0 // loop_pre_header
    _
  $region3: #{dwpw_conv.3} parent=0 // loop_header
    %s12 = sphi 0, %s16
    %p13 = scmp.ge.s32.totalorder %s12, 4
    %s22 = sphi 0, %s24
    %s25 = sphi 0, %s22
    %s26 = sphi 0, %s25
    %s42 = sphi 0, %s26
    %s46 = sphi 0, %s46
    %s48 = sphi 0, %s46
    %s49 = sphi 0, %s48
    %s63 = sphi 0, %s49
    %s67 = sphi 0, %s67
    %s69 = sphi 0, %s67
    %s70 = sphi 0, %s69
    %s84 = sphi 0, %s70
    %s90 = sphi 0, %s92
    %s93 = sphi 0, %s90
    %s94 = sphi 0, %s93
    %s110 = sphi 0, %s94
    %s116 = sphi 0, %s118
    %s119 = sphi 0, %s116
    %s120 = sphi 0, %s119
    %s136 = sphi 0, %s120
    %s142 = sphi 0, %s144
    %s145 = sphi 0, %s142
    %s146 = sphi 0, %s145
    %s162 = sphi 0, %s146
  $region4: #{dwpw_conv.3} parent=0 // loop_header_branch
    %15 = sbr.rel (%p13) target = $region8
  $region5: #{dwpw_conv.3} parent=0 // loop_body
    %s17 = ssub.s32 %s12, 1
    %s18 = ssub.s32 %s12, 2
    %s19 = sadd.s32 %s12, 1
    %s20 = ssub.s32 %s12, %s19
    %p21 = scmp.eq.s32.totalorder %s20, 0
    %s23 = sadd.s32 %s22, 1
    %s24 = scalar_select %p21, %s22, %s23
    %p27 = pneg %p21
    %p28 = scmp.eq.s32.totalorder %s12, 1
    %p29 = por %p27, %p28
    %p30 = scmp.ne.s32.totalorder %s22, %s25
    %p31 = scmp.eq.s32.totalorder %s12, 0
    %p32 = por %p30, %p31
    %p33 = scmp.ne.s32.totalorder %s22, %s25
    %p34 = scmp.eq.s32.totalorder %s17, 1
    %p35 = por %p33, %p34
    %p36 = scmp.ne.s32.totalorder %s25, %s26
    %p37 = scmp.eq.s32.totalorder %s17, 0
    %p38 = por %p36, %p37
    %p39 = scmp.ne.s32.totalorder %s25, %s26
    %p40 = scmp.eq.s32.totalorder %s18, 1
    %p41 = por %p39, %p40
    %p43 = scmp.ne.s32.totalorder %s26, %s42
    %p44 = scmp.eq.s32.totalorder %s18, 0
    %p45 = por %p43, %p44
    %s47 = sadd.s32 %s46, 1
    %p50 = scmp.eq.s32.totalorder %s12, 1
    %p51 = scmp.ne.s32.totalorder %s46, %s48
    %p52 = scmp.eq.s32.totalorder %s12, 0
    %p53 = por %p51, %p52
    %p54 = scmp.ne.s32.totalorder %s46, %s48
    %p55 = scmp.eq.s32.totalorder %s17, 1
    %p56 = por %p54, %p55
    %p57 = scmp.ne.s32.totalorder %s48, %s49
    %p58 = scmp.eq.s32.totalorder %s17, 0
    %p59 = por %p57, %p58
    %p60 = scmp.ne.s32.totalorder %s48, %s49
    %p61 = scmp.eq.s32.totalorder %s18, 1
    %p62 = por %p60, %p61
    %p64 = scmp.ne.s32.totalorder %s49, %s63
    %p65 = scmp.eq.s32.totalorder %s18, 0
    %p66 = por %p64, %p65
    %s68 = sadd.s32 %s67, 1
    %p71 = scmp.eq.s32.totalorder %s12, 1
    %p72 = scmp.ne.s32.totalorder %s67, %s69
    %p73 = scmp.eq.s32.totalorder %s12, 0
    %p74 = por %p72, %p73
    %p75 = scmp.ne.s32.totalorder %s67, %s69
    %p76 = scmp.eq.s32.totalorder %s17, 1
    %p77 = por %p75, %p76
    %p78 = scmp.ne.s32.totalorder %s69, %s70
    %p79 = scmp.eq.s32.totalorder %s17, 0
    %p80 = por %p78, %p79
    %p81 = scmp.ne.s32.totalorder %s69, %s70
    %p82 = scmp.eq.s32.totalorder %s18, 1
    %p83 = por %p81, %p82
    %p85 = scmp.ne.s32.totalorder %s70, %s84
    %p86 = scmp.eq.s32.totalorder %s18, 0
    %p87 = por %p85, %p86
    %s88 = ssub.s32 %s12, %s19
    %p89 = scmp.eq.s32.totalorder %s88, 0
    %s91 = sadd.s32 %s90, 1
    %s92 = scalar_select %p89, %s90, %s91
    %p95 = pneg %p89
    %p96 = scmp.eq.s32.totalorder %s12, 1
    %p97 = por %p95, %p96
    %p98 = scmp.ne.s32.totalorder %s90, %s93
    %p99 = scmp.eq.s32.totalorder %s12, 0
    %p100 = por %p98, %p99
    %p101 = scmp.ne.s32.totalorder %s90, %s93
    %p102 = scmp.eq.s32.totalorder %s17, 1
    %p103 = por %p101, %p102
    %p104 = scmp.ne.s32.totalorder %s93, %s94
    %p105 = scmp.eq.s32.totalorder %s17, 0
    %p106 = por %p104, %p105
    %p107 = scmp.ne.s32.totalorder %s93, %s94
    %p108 = scmp.eq.s32.totalorder %s18, 1
    %p109 = por %p107, %p108
    %p111 = scmp.ne.s32.totalorder %s94, %s110
    %p112 = scmp.eq.s32.totalorder %s18, 0
    %p113 = por %p111, %p112
    %s114 = ssub.s32 %s12, %s19
    %p115 = scmp.eq.s32.totalorder %s114, 0
    %s117 = sadd.s32 %s116, 1
    %s118 = scalar_select %p115, %s116, %s117
    %p121 = pneg %p115
    %p122 = scmp.eq.s32.totalorder %s12, 1
    %p123 = por %p121, %p122
    %p124 = scmp.ne.s32.totalorder %s116, %s119
    %p125 = scmp.eq.s32.totalorder %s12, 0
    %p126 = por %p124, %p125
    %p127 = scmp.ne.s32.totalorder %s116, %s119
    %p128 = scmp.eq.s32.totalorder %s17, 1
    %p129 = por %p127, %p128
    %p130 = scmp.ne.s32.totalorder %s119, %s120
    %p131 = scmp.eq.s32.totalorder %s17, 0
    %p132 = por %p130, %p131
    %p133 = scmp.ne.s32.totalorder %s119, %s120
    %p134 = scmp.eq.s32.totalorder %s18, 1
    %p135 = por %p133, %p134
    %p137 = scmp.ne.s32.totalorder %s120, %s136
    %p138 = scmp.eq.s32.totalorder %s18, 0
    %p139 = por %p137, %p138
    %s140 = ssub.s32 %s12, %s19
    %p141 = scmp.eq.s32.totalorder %s140, 0
    %s143 = sadd.s32 %s142, 1
    %s144 = scalar_select %p141, %s142, %s143
    %p147 = pneg %p141
    %p148 = scmp.eq.s32.totalorder %s12, 1
    %p149 = por %p147, %p148
    %p150 = scmp.ne.s32.totalorder %s142, %s145
    %p151 = scmp.eq.s32.totalorder %s12, 0
    %p152 = por %p150, %p151
    %p153 = scmp.ne.s32.totalorder %s142, %s145
    %p154 = scmp.eq.s32.totalorder %s17, 1
    %p155 = por %p153, %p154
    %p156 = scmp.ne.s32.totalorder %s145, %s146
    %p157 = scmp.eq.s32.totalorder %s17, 0
    %p158 = por %p156, %p157
    %p159 = scmp.ne.s32.totalorder %s145, %s146
    %p160 = scmp.eq.s32.totalorder %s18, 1
    %p161 = por %p159, %p160
    %p163 = scmp.ne.s32.totalorder %s146, %s162
    %p164 = scmp.eq.s32.totalorder %s18, 0
    %p165 = por %p163, %p164
    %p166 = scmp.le.s32.totalorder 1, %s12
    %p167 = scmp.lt.s32.totalorder %s12, 3
    %p168 = pnand %p166, %p167
    %p169 = pneg %p168
    // Predicated region
    $region9: #{dwpw_conv.3} parent=5 // pred_check
      _
    $region10: #{dwpw_conv.3} parent=5 // pred_check_branch
      %171 = sbr.rel (%p168) target = $region12
    $region11: #{dwpw_conv.3} parent=5 // pred_region
      %s172 = ssub.s32 %s12, 1
      // Predicated region
      $region13: #{dwpw_conv.3} parent=11 // pred_check
        %p173 = pneg %p59
      $region14: #{dwpw_conv.3} parent=11 // pred_check_branch
        %175 = sbr.rel (%p173) target = $region16
      $region15: #{dwpw_conv.3} parent=11 // pred_region
        _
      $region16: #{dwpw_conv.3} parent=11 // pred_fallthru
        _
      // Predicated region
      $region17: #{dwpw_conv.3} parent=11 // pred_check
        %p176 = pneg %p80
      $region18: #{dwpw_conv.3} parent=11 // pred_check_branch
        %178 = sbr.rel (%p176) target = $region20
      $region19: #{dwpw_conv.3} parent=11 // pred_region
        _
      $region20: #{dwpw_conv.3} parent=11 // pred_fallthru
        _
    $region12: #{dwpw_conv.3} parent=5 // pred_fallthru
      _
    %p179 = scmp.lt.s32.totalorder %s12, 2
    // Predicated region
    $region21: #{dwpw_conv.3} parent=5 // pred_check
      %p180 = pneg %p179
    $region22: #{dwpw_conv.3} parent=5 // pred_check_branch
      %182 = sbr.rel (%p180) target = $region24
    $region23: #{dwpw_conv.3} parent=5 // pred_region
      // Predicated region
      $region25: #{dwpw_conv.3} parent=23 // pred_check
        %p183 = pneg %p32
      $region26: #{dwpw_conv.3} parent=23 // pred_check_branch
        %185 = sbr.rel (%p183) target = $region28
      $region27: #{dwpw_conv.3} parent=23 // pred_region
        %p186 = scmp.lt.s32.totalorder %s12, 1
        %s187 = scalar_select %p186, %s12, 1
        %s188 = smul.addr %s187, 54
        %s189 = smul.addr %s188, 8
        %s190 = scalar_lea.vmem %s0, %s189
      $region28: #{dwpw_conv.3} parent=23 // pred_fallthru
        _
    $region24: #{dwpw_conv.3} parent=5 // pred_fallthru
      _
    %p191 = scmp.le.s32.totalorder 1, %s12
    %p192 = scmp.lt.s32.totalorder %s12, 3
    %p193 = pnand %p191, %p192
    %p194 = pneg %p193
    // Predicated region
    $region29: #{dwpw_conv.3} parent=5 // pred_check
      _
    $region30: #{dwpw_conv.3} parent=5 // pred_check_branch
      %196 = sbr.rel (%p193) target = $region32
    $region31: #{dwpw_conv.3} parent=5 // pred_region
      %s197 = ssub.s32 %s12, 1
      %p198 = scmp.lt.s32.totalorder %s17, 1
      %s199 = scalar_select %p198, %s17, 1
      %s200 = smul.addr %s199, 54
      %s201 = smul.addr %s200, 8
      %s202 = scalar_lea.vmem %s0, %s201
      %p203 = pneg %p38
      %p204 = pneg %p35
      %p205 = pneg %p59
      %p206 = pneg %p56
      %p207 = pneg %p80
      %p208 = pneg %p77
      %p209 = pneg %p106
      %p210 = pneg %p103
      %p211 = scmp.lt.s32.totalorder %s17, 1
      %s212 = scalar_select %p211, %s17, 1
      %s213 = smul.addr %s212, 32
      %s214 = smul.addr %s213, 4
      %s215 = scalar_lea.vmem %s3, %s214
      %p216 = pneg %p132
      %p217 = pneg %p129
      %p218 = scmp.lt.s32.totalorder %s17, 1
      %s219 = scalar_select %p218, %s17, 1
      %s220 = scalar_lea.vmem %s4, %s219
      %p221 = pneg %p158
      %p222 = pneg %p155
      %p223 = scmp.lt.s32.totalorder %s17, 1
      %s224 = scalar_select %p223, %s17, 1
      %s225 = scalar_lea.vmem %s5, %s224
      %p226 = scmp.lt.s32.totalorder %s17, 1
      %s227 = scalar_select %p226, %s17, 1
      %s228 = smul.addr %s227, 54
      %s229 = smul.addr %s228, 8
      %s230 = scalar_lea.vmem %s0, %s229
      %p231 = scmp.lt.s32.totalorder %s17, 1
      %s232 = scalar_select %p231, %s17, 1
      %s233 = smul.addr %s232, 32
      %s234 = smul.addr %s233, 4
      %s235 = scalar_lea.vmem %s3, %s234
      %p236 = scmp.lt.s32.totalorder %s17, 1
      %s237 = scalar_select %p236, %s17, 1
      %s238 = scalar_lea.vmem %s4, %s237
      %p239 = scmp.lt.s32.totalorder %s17, 1
      %s240 = scalar_select %p239, %s17, 1
      %s241 = scalar_lea.vmem %s5, %s240
      %v242 = vld [vmem:[%s230] sm:$0xff]
      %v243 = vld [vmem:[%s230 + $0x8] sm:$0xff]
      %v244 = vld [vmem:[%s230 + $0x10] sm:$0x3]
      %v245 = vld [vmem:[%s230 + $0x18] sm:$0xff]
      %v246 = vld [vmem:[%s230 + $0x20] sm:$0xff]
      %v247 = vld [vmem:[%s230 + $0x28] sm:$0x3]
      %v248 = vld [vmem:[%s230 + $0x30] sm:$0xff]
      %v249 = vld [vmem:[%s230 + $0x38] sm:$0xff]
      %v250 = vld [vmem:[%s230 + $0x40] sm:$0x3]
      %v251 = vld [vmem:[%s230 + $0x48] sm:$0xff]
      %v252 = vld [vmem:[%s230 + $0x50] sm:$0xff]
      %v253 = vld [vmem:[%s230 + $0x58] sm:$0x3]
      %v254 = vld [vmem:[%s230 + $0x60] sm:$0xff]
      %v255 = vld [vmem:[%s230 + $0x68] sm:$0xff]
      %v256 = vld [vmem:[%s230 + $0x70] sm:$0x3]
      %v257 = vld [vmem:[%s230 + $0x78] sm:$0xff]
      %v258 = vld [vmem:[%s230 + $0x80] sm:$0xff]
      %v259 = vld [vmem:[%s230 + $0x88] sm:$0x3]
      %v260 = vld [vmem:[%s230 + $0x90] sm:$0xff]
      %v261 = vld [vmem:[%s230 + $0x98] sm:$0xff]
      %v262 = vld [vmem:[%s230 + $0xa0] sm:$0x3]
      %v263 = vld [vmem:[%s230 + $0xa8] sm:$0xff]
      %v264 = vld [vmem:[%s230 + $0xb0] sm:$0xff]
      %v265 = vld [vmem:[%s230 + $0xb8] sm:$0x3]
      %v266 = vld [vmem:[%s230 + $0xc0] sm:$0xff]
      %v267 = vld [vmem:[%s230 + $0xc8] sm:$0xff]
      %v268 = vld [vmem:[%s230 + $0xd0] sm:$0x3]
      %v269 = vld [vmem:[%s230 + $0xd8] sm:$0xff]
      %v270 = vld [vmem:[%s230 + $0xe0] sm:$0xff]
      %v271 = vld [vmem:[%s230 + $0xe8] sm:$0x3]
      %v272 = vld [vmem:[%s230 + $0xf0] sm:$0xff]
      %v273 = vld [vmem:[%s230 + $0xf8] sm:$0xff]
      %v274 = vld [vmem:[%s230 + $0x100] sm:$0x3]
      %v275 = vld [vmem:[%s230 + $0x108] sm:$0xff]
      %v276 = vld [vmem:[%s230 + $0x110] sm:$0xff]
      %v277 = vld [vmem:[%s230 + $0x118] sm:$0x3]
      %v278 = vld [vmem:[%s230 + $0x120] sm:$0xff]
      %v279 = vld [vmem:[%s230 + $0x128] sm:$0xff]
      %v280 = vld [vmem:[%s230 + $0x130] sm:$0x3]
      %v281 = vld [vmem:[%s230 + $0x138] sm:$0xff]
      %v282 = vld [vmem:[%s230 + $0x140] sm:$0xff]
      %v283 = vld [vmem:[%s230 + $0x148] sm:$0x3]
      %v284 = vld [vmem:[%s230 + $0x150] sm:$0xff]
      %v285 = vld [vmem:[%s230 + $0x158] sm:$0xff]
      %v286 = vld [vmem:[%s230 + $0x160] sm:$0x3]
      %v287 = vld [vmem:[%s230 + $0x168] sm:$0xff]
      %v288 = vld [vmem:[%s230 + $0x170] sm:$0xff]
      %v289 = vld [vmem:[%s230 + $0x178] sm:$0x3]
      %v290 = vld [vmem:[%s230 + $0x180] sm:$0xff]
      %v291 = vld [vmem:[%s230 + $0x188] sm:$0xff]
      %v292 = vld [vmem:[%s230 + $0x190] sm:$0x3]
      %v293 = vld [vmem:[%s230 + $0x198] sm:$0xff]
      %v294 = vld [vmem:[%s230 + $0x1a0] sm:$0xff]
      %v295 = vld [vmem:[%s230 + $0x1a8] sm:$0x3]
      %v296 = vld [vmem:[%s1] sm:$0x1]
      %v297 = vlaneseq
      %v298 = vshrl.u32 %v297, 7
      %v299 = vsub.s32 0, %v298
      %v300 = vrot.slane %v296, %v299
      %v301 = vmul.f32 %v242, %v300
      %v302 = vmul.f32 %v243, %v300
      %v303 = vmul.f32 %v245, %v300
      %v304 = vmul.f32 %v246, %v300
      %v305 = vmul.f32 %v248, %v300
      %v306 = vmul.f32 %v249, %v300
      %v307 = vmul.f32 %v251, %v300
      %v308 = vmul.f32 %v252, %v300
      %v309 = vmul.f32 %v254, %v300
      %v310 = vmul.f32 %v255, %v300
      %v311 = vmul.f32 %v257, %v300
      %v312 = vmul.f32 %v258, %v300
      %v313 = vmul.f32 %v260, %v300
      %v314 = vmul.f32 %v261, %v300
      %v315 = vmul.f32 %v263, %v300
      %v316 = vmul.f32 %v264, %v300
      %v317 = vmul.f32 %v266, %v300
      %v318 = vmul.f32 %v267, %v300
      %v319 = vmul.f32 %v269, %v300
      %v320 = vmul.f32 %v270, %v300
      %v321 = vmul.f32 %v272, %v300
      %v322 = vmul.f32 %v273, %v300
      %v323 = vmul.f32 %v275, %v300
      %v324 = vmul.f32 %v276, %v300
      %v325 = vmul.f32 %v278, %v300
      %v326 = vmul.f32 %v279, %v300
      %v327 = vmul.f32 %v281, %v300
      %v328 = vmul.f32 %v282, %v300
      %v329 = vmul.f32 %v284, %v300
      %v330 = vmul.f32 %v285, %v300
      %v331 = vmul.f32 %v287, %v300
      %v332 = vmul.f32 %v288, %v300
      %v333 = vld [vmem:[%s1 + $0x1] sm:$0x1]
      %v334 = vlaneseq
      %v335 = vshrl.u32 %v334, 7
      %v336 = vsub.s32 0, %v335
      %v337 = vrot.slane %v333, %v336
      %v338 = vmul.f32 %v242, %v337
      %v339 = vmul.f32 %v243, %v337
      %v340 = vmul.f32 %v244, %v337
      %v341 = vmul.f32 %v245, %v337
      %v342 = vmul.f32 %v246, %v337
      %v343 = vmul.f32 %v247, %v337
      %v344 = vmul.f32 %v248, %v337
      %v345 = vmul.f32 %v249, %v337
      %v346 = vmul.f32 %v250, %v337
      %v347 = vmul.f32 %v251, %v337
      %v348 = vmul.f32 %v252, %v337
      %v349 = vmul.f32 %v253, %v337
      %v350 = vmul.f32 %v254, %v337
      %v351 = vmul.f32 %v255, %v337
      %v352 = vmul.f32 %v256, %v337
      %v353 = vmul.f32 %v257, %v337
      %v354 = vmul.f32 %v258, %v337
      %v355 = vmul.f32 %v259, %v337
      %v356 = vmul.f32 %v260, %v337
      %v357 = vmul.f32 %v261, %v337
      %v358 = vmul.f32 %v262, %v337
      %v359 = vmul.f32 %v263, %v337
      %v360 = vmul.f32 %v264, %v337
      %v361 = vmul.f32 %v265, %v337
      %v362 = vmul.f32 %v266, %v337
      %v363 = vmul.f32 %v267, %v337
      %v364 = vmul.f32 %v268, %v337
      %v365 = vmul.f32 %v269, %v337
      %v366 = vmul.f32 %v270, %v337
      %v367 = vmul.f32 %v271, %v337
      %v368 = vmul.f32 %v272, %v337
      %v369 = vmul.f32 %v273, %v337
      %v370 = vmul.f32 %v274, %v337
      %v371 = vmul.f32 %v275, %v337
      %v372 = vmul.f32 %v276, %v337
      %v373 = vmul.f32 %v277, %v337
      %v374 = vmul.f32 %v278, %v337
      %v375 = vmul.f32 %v279, %v337
      %v376 = vmul.f32 %v280, %v337
      %v377 = vmul.f32 %v281, %v337
      %v378 = vmul.f32 %v282, %v337
      %v379 = vmul.f32 %v283, %v337
      %v380 = vmul.f32 %v284, %v337
      %v381 = vmul.f32 %v285, %v337
      %v382 = vmul.f32 %v286, %v337
      %v383 = vmul.f32 %v287, %v337
      %v384 = vmul.f32 %v288, %v337
      %v385 = vmul.f32 %v289, %v337
      %vm434 = vcmask 1046528
      %v435 = vrot.slane %v338, 1
      %v436 = vrot.slane %v339, 1
      %v437 = vsel %vm434, %v435, %v436
      %v438 = vrot.slane %v340, 1
      %v439 = vsel %vm434, %v436, %v438
      %v440 = vrot.slane %v341, 1
      %v441 = vrot.slane %v342, 1
      %v442 = vsel %vm434, %v440, %v441
      %v443 = vrot.slane %v343, 1
      %v444 = vsel %vm434, %v441, %v443
      %v445 = vrot.slane %v344, 1
      %v446 = vrot.slane %v345, 1
      %v447 = vsel %vm434, %v445, %v446
      %v448 = vrot.slane %v346, 1
      %v449 = vsel %vm434, %v446, %v448
      %v450 = vrot.slane %v347, 1
      %v451 = vrot.slane %v348, 1
      %v452 = vsel %vm434, %v450, %v451
      %v453 = vrot.slane %v349, 1
      %v454 = vsel %vm434, %v451, %v453
      %v455 = vrot.slane %v350, 1
      %v456 = vrot.slane %v351, 1
      %v457 = vsel %vm434, %v455, %v456
      %v458 = vrot.slane %v352, 1
      %v459 = vsel %vm434, %v456, %v458
      %v460 = vrot.slane %v353, 1
      %v461 = vrot.slane %v354, 1
      %v462 = vsel %vm434, %v460, %v461
      %v463 = vrot.slane %v355, 1
      %v464 = vsel %vm434, %v461, %v463
      %v465 = vrot.slane %v356, 1
      %v466 = vrot.slane %v357, 1
      %v467 = vsel %vm434, %v465, %v466
      %v468 = vrot.slane %v358, 1
      %v469 = vsel %vm434, %v466, %v468
      %v470 = vrot.slane %v359, 1
      %v471 = vrot.slane %v360, 1
      %v472 = vsel %vm434, %v470, %v471
      %v473 = vrot.slane %v361, 1
      %v474 = vsel %vm434, %v471, %v473
      %v475 = vrot.slane %v362, 1
      %v476 = vrot.slane %v363, 1
      %v477 = vsel %vm434, %v475, %v476
      %v478 = vrot.slane %v364, 1
      %v479 = vsel %vm434, %v476, %v478
      %v480 = vrot.slane %v365, 1
      %v481 = vrot.slane %v366, 1
      %v482 = vsel %vm434, %v480, %v481
      %v483 = vrot.slane %v367, 1
      %v484 = vsel %vm434, %v481, %v483
      %v485 = vrot.slane %v368, 1
      %v486 = vrot.slane %v369, 1
      %v487 = vsel %vm434, %v485, %v486
      %v488 = vrot.slane %v370, 1
      %v489 = vsel %vm434, %v486, %v488
      %v490 = vrot.slane %v371, 1
      %v491 = vrot.slane %v372, 1
      %v492 = vsel %vm434, %v490, %v491
      %v493 = vrot.slane %v373, 1
      %v494 = vsel %vm434, %v491, %v493
      %v495 = vrot.slane %v374, 1
      %v496 = vrot.slane %v375, 1
      %v497 = vsel %vm434, %v495, %v496
      %v498 = vrot.slane %v376, 1
      %v499 = vsel %vm434, %v496, %v498
      %v500 = vrot.slane %v377, 1
      %v501 = vrot.slane %v378, 1
      %v502 = vsel %vm434, %v500, %v501
      %v503 = vrot.slane %v379, 1
      %v504 = vsel %vm434, %v501, %v503
      %v505 = vrot.slane %v380, 1
      %v506 = vrot.slane %v381, 1
      %v507 = vsel %vm434, %v505, %v506
      %v508 = vrot.slane %v382, 1
      %v509 = vsel %vm434, %v506, %v508
      %v510 = vrot.slane %v383, 1
      %v511 = vrot.slane %v384, 1
      %v512 = vsel %vm434, %v510, %v511
      %v513 = vrot.slane %v385, 1
      %v514 = vsel %vm434, %v511, %v513
      %v547 = vadd.f32 %v301, %v437
      %v548 = vadd.f32 %v302, %v439
      %v549 = vadd.f32 %v303, %v442
      %v550 = vadd.f32 %v304, %v444
      %v551 = vadd.f32 %v305, %v447
      %v552 = vadd.f32 %v306, %v449
      %v553 = vadd.f32 %v307, %v452
      %v554 = vadd.f32 %v308, %v454
      %v555 = vadd.f32 %v309, %v457
      %v556 = vadd.f32 %v310, %v459
      %v557 = vadd.f32 %v311, %v462
      %v558 = vadd.f32 %v312, %v464
      %v559 = vadd.f32 %v313, %v467
      %v560 = vadd.f32 %v314, %v469
      %v561 = vadd.f32 %v315, %v472
      %v562 = vadd.f32 %v316, %v474
      %v563 = vadd.f32 %v317, %v477
      %v564 = vadd.f32 %v318, %v479
      %v565 = vadd.f32 %v319, %v482
      %v566 = vadd.f32 %v320, %v484
      %v567 = vadd.f32 %v321, %v487
      %v568 = vadd.f32 %v322, %v489
      %v569 = vadd.f32 %v323, %v492
      %v570 = vadd.f32 %v324, %v494
      %v571 = vadd.f32 %v325, %v497
      %v572 = vadd.f32 %v326, %v499
      %v573 = vadd.f32 %v327, %v502
      %v574 = vadd.f32 %v328, %v504
      %v575 = vadd.f32 %v329, %v507
      %v576 = vadd.f32 %v330, %v509
      %v577 = vadd.f32 %v331, %v512
      %v578 = vadd.f32 %v332, %v514
      %v579 = vld [vmem:[%s1 + $0x2] sm:$0x1]
      %v580 = vlaneseq
      %v581 = vshrl.u32 %v580, 7
      %v582 = vsub.s32 0, %v581
      %v583 = vrot.slane %v579, %v582
      %v584 = vmul.f32 %v242, %v583
      %v585 = vmul.f32 %v243, %v583
      %v586 = vmul.f32 %v244, %v583
      %v587 = vmul.f32 %v245, %v583
      %v588 = vmul.f32 %v246, %v583
      %v589 = vmul.f32 %v247, %v583
      %v590 = vmul.f32 %v248, %v583
      %v591 = vmul.f32 %v249, %v583
      %v592 = vmul.f32 %v250, %v583
      %v593 = vmul.f32 %v251, %v583
      %v594 = vmul.f32 %v252, %v583
      %v595 = vmul.f32 %v253, %v583
      %v596 = vmul.f32 %v254, %v583
      %v597 = vmul.f32 %v255, %v583
      %v598 = vmul.f32 %v256, %v583
      %v599 = vmul.f32 %v257, %v583
      %v600 = vmul.f32 %v258, %v583
      %v601 = vmul.f32 %v259, %v583
      %v602 = vmul.f32 %v260, %v583
      %v603 = vmul.f32 %v261, %v583
      %v604 = vmul.f32 %v262, %v583
      %v605 = vmul.f32 %v263, %v583
      %v606 = vmul.f32 %v264, %v583
      %v607 = vmul.f32 %v265, %v583
      %v608 = vmul.f32 %v266, %v583
      %v609 = vmul.f32 %v267, %v583
      %v610 = vmul.f32 %v268, %v583
      %v611 = vmul.f32 %v269, %v583
      %v612 = vmul.f32 %v270, %v583
      %v613 = vmul.f32 %v271, %v583
      %v614 = vmul.f32 %v272, %v583
      %v615 = vmul.f32 %v273, %v583
      %v616 = vmul.f32 %v274, %v583
      %v617 = vmul.f32 %v275, %v583
      %v618 = vmul.f32 %v276, %v583
      %v619 = vmul.f32 %v277, %v583
      %v620 = vmul.f32 %v278, %v583
      %v621 = vmul.f32 %v279, %v583
      %v622 = vmul.f32 %v280, %v583
      %v623 = vmul.f32 %v281, %v583
      %v624 = vmul.f32 %v282, %v583
      %v625 = vmul.f32 %v283, %v583
      %v626 = vmul.f32 %v284, %v583
      %v627 = vmul.f32 %v285, %v583
      %v628 = vmul.f32 %v286, %v583
      %v629 = vmul.f32 %v287, %v583
      %v630 = vmul.f32 %v288, %v583
      %v631 = vmul.f32 %v289, %v583
      %vm680 = vcmask 1045504
      %v681 = vrot.slane %v584, 2
      %v682 = vrot.slane %v585, 2
      %v683 = vsel %vm680, %v681, %v682
      %v684 = vrot.slane %v586, 2
      %v685 = vsel %vm680, %v682, %v684
      %v686 = vrot.slane %v587, 2
      %v687 = vrot.slane %v588, 2
      %v688 = vsel %vm680, %v686, %v687
      %v689 = vrot.slane %v589, 2
      %v690 = vsel %vm680, %v687, %v689
      %v691 = vrot.slane %v590, 2
      %v692 = vrot.slane %v591, 2
      %v693 = vsel %vm680, %v691, %v692
      %v694 = vrot.slane %v592, 2
      %v695 = vsel %vm680, %v692, %v694
      %v696 = vrot.slane %v593, 2
      %v697 = vrot.slane %v594, 2
      %v698 = vsel %vm680, %v696, %v697
      %v699 = vrot.slane %v595, 2
      %v700 = vsel %vm680, %v697, %v699
      %v701 = vrot.slane %v596, 2
      %v702 = vrot.slane %v597, 2
      %v703 = vsel %vm680, %v701, %v702
      %v704 = vrot.slane %v598, 2
      %v705 = vsel %vm680, %v702, %v704
      %v706 = vrot.slane %v599, 2
      %v707 = vrot.slane %v600, 2
      %v708 = vsel %vm680, %v706, %v707
      %v709 = vrot.slane %v601, 2
      %v710 = vsel %vm680, %v707, %v709
      %v711 = vrot.slane %v602, 2
      %v712 = vrot.slane %v603, 2
      %v713 = vsel %vm680, %v711, %v712
      %v714 = vrot.slane %v604, 2
      %v715 = vsel %vm680, %v712, %v714
      %v716 = vrot.slane %v605, 2
      %v717 = vrot.slane %v606, 2
      %v718 = vsel %vm680, %v716, %v717
      %v719 = vrot.slane %v607, 2
      %v720 = vsel %vm680, %v717, %v719
      %v721 = vrot.slane %v608, 2
      %v722 = vrot.slane %v609, 2
      %v723 = vsel %vm680, %v721, %v722
      %v724 = vrot.slane %v610, 2
      %v725 = vsel %vm680, %v722, %v724
      %v726 = vrot.slane %v611, 2
      %v727 = vrot.slane %v612, 2
      %v728 = vsel %vm680, %v726, %v727
      %v729 = vrot.slane %v613, 2
      %v730 = vsel %vm680, %v727, %v729
      %v731 = vrot.slane %v614, 2
      %v732 = vrot.slane %v615, 2
      %v733 = vsel %vm680, %v731, %v732
      %v734 = vrot.slane %v616, 2
      %v735 = vsel %vm680, %v732, %v734
      %v736 = vrot.slane %v617, 2
      %v737 = vrot.slane %v618, 2
      %v738 = vsel %vm680, %v736, %v737
      %v739 = vrot.slane %v619, 2
      %v740 = vsel %vm680, %v737, %v739
      %v741 = vrot.slane %v620, 2
      %v742 = vrot.slane %v621, 2
      %v743 = vsel %vm680, %v741, %v742
      %v744 = vrot.slane %v622, 2
      %v745 = vsel %vm680, %v742, %v744
      %v746 = vrot.slane %v623, 2
      %v747 = vrot.slane %v624, 2
      %v748 = vsel %vm680, %v746, %v747
      %v749 = vrot.slane %v625, 2
      %v750 = vsel %vm680, %v747, %v749
      %v751 = vrot.slane %v626, 2
      %v752 = vrot.slane %v627, 2
      %v753 = vsel %vm680, %v751, %v752
      %v754 = vrot.slane %v628, 2
      %v755 = vsel %vm680, %v752, %v754
      %v756 = vrot.slane %v629, 2
      %v757 = vrot.slane %v630, 2
      %v758 = vsel %vm680, %v756, %v757
      %v759 = vrot.slane %v631, 2
      %v760 = vsel %vm680, %v757, %v759
      %v793 = vadd.f32 %v547, %v683
      %v794 = vadd.f32 %v548, %v685
      %v795 = vadd.f32 %v549, %v688
      %v796 = vadd.f32 %v550, %v690
      %v797 = vadd.f32 %v551, %v693
      %v798 = vadd.f32 %v552, %v695
      %v799 = vadd.f32 %v553, %v698
      %v800 = vadd.f32 %v554, %v700
      %v801 = vadd.f32 %v555, %v703
      %v802 = vadd.f32 %v556, %v705
      %v803 = vadd.f32 %v557, %v708
      %v804 = vadd.f32 %v558, %v710
      %v805 = vadd.f32 %v559, %v713
      %v806 = vadd.f32 %v560, %v715
      %v807 = vadd.f32 %v561, %v718
      %v808 = vadd.f32 %v562, %v720
      %v809 = vadd.f32 %v563, %v723
      %v810 = vadd.f32 %v564, %v725
      %v811 = vadd.f32 %v565, %v728
      %v812 = vadd.f32 %v566, %v730
      %v813 = vadd.f32 %v567, %v733
      %v814 = vadd.f32 %v568, %v735
      %v815 = vadd.f32 %v569, %v738
      %v816 = vadd.f32 %v570, %v740
      %v817 = vadd.f32 %v571, %v743
      %v818 = vadd.f32 %v572, %v745
      %v819 = vadd.f32 %v573, %v748
      %v820 = vadd.f32 %v574, %v750
      %v821 = vadd.f32 %v575, %v753
      %v822 = vadd.f32 %v576, %v755
      %v823 = vadd.f32 %v577, %v758
      %v824 = vadd.f32 %v578, %v760
      %v825 = vld [vmem:[%s1 + $0x3] sm:$0x1]
      %v826 = vlaneseq
      %v827 = vshrl.u32 %v826, 7
      %v828 = vsub.s32 0, %v827
      %v829 = vrot.slane %v825, %v828
      %v830 = vmul.f32 %v245, %v829
      %v831 = vmul.f32 %v246, %v829
      %v832 = vmul.f32 %v248, %v829
      %v833 = vmul.f32 %v249, %v829
      %v834 = vmul.f32 %v251, %v829
      %v835 = vmul.f32 %v252, %v829
      %v836 = vmul.f32 %v254, %v829
      %v837 = vmul.f32 %v255, %v829
      %v838 = vmul.f32 %v257, %v829
      %v839 = vmul.f32 %v258, %v829
      %v840 = vmul.f32 %v260, %v829
      %v841 = vmul.f32 %v261, %v829
      %v842 = vmul.f32 %v263, %v829
      %v843 = vmul.f32 %v264, %v829
      %v844 = vmul.f32 %v266, %v829
      %v845 = vmul.f32 %v267, %v829
      %v846 = vmul.f32 %v269, %v829
      %v847 = vmul.f32 %v270, %v829
      %v848 = vmul.f32 %v272, %v829
      %v849 = vmul.f32 %v273, %v829
      %v850 = vmul.f32 %v275, %v829
      %v851 = vmul.f32 %v276, %v829
      %v852 = vmul.f32 %v278, %v829
      %v853 = vmul.f32 %v279, %v829
      %v854 = vmul.f32 %v281, %v829
      %v855 = vmul.f32 %v282, %v829
      %v856 = vmul.f32 %v284, %v829
      %v857 = vmul.f32 %v285, %v829
      %v858 = vmul.f32 %v287, %v829
      %v859 = vmul.f32 %v288, %v829
      %v860 = vmul.f32 %v290, %v829
      %v861 = vmul.f32 %v291, %v829
      %v862 = vadd.f32 %v793, %v830
      %v863 = vadd.f32 %v794, %v831
      %v864 = vadd.f32 %v795, %v832
      %v865 = vadd.f32 %v796, %v833
      %v866 = vadd.f32 %v797, %v834
      %v867 = vadd.f32 %v798, %v835
      %v868 = vadd.f32 %v799, %v836
      %v869 = vadd.f32 %v800, %v837
      %v870 = vadd.f32 %v801, %v838
      %v871 = vadd.f32 %v802, %v839
      %v872 = vadd.f32 %v803, %v840
      %v873 = vadd.f32 %v804, %v841
      %v874 = vadd.f32 %v805, %v842
      %v875 = vadd.f32 %v806, %v843
      %v876 = vadd.f32 %v807, %v844
      %v877 = vadd.f32 %v808, %v845
      %v878 = vadd.f32 %v809, %v846
      %v879 = vadd.f32 %v810, %v847
      %v880 = vadd.f32 %v811, %v848
      %v881 = vadd.f32 %v812, %v849
      %v882 = vadd.f32 %v813, %v850
      %v883 = vadd.f32 %v814, %v851
      %v884 = vadd.f32 %v815, %v852
      %v885 = vadd.f32 %v816, %v853
      %v886 = vadd.f32 %v817, %v854
      %v887 = vadd.f32 %v818, %v855
      %v888 = vadd.f32 %v819, %v856
      %v889 = vadd.f32 %v820, %v857
      %v890 = vadd.f32 %v821, %v858
      %v891 = vadd.f32 %v822, %v859
      %v892 = vadd.f32 %v823, %v860
      %v893 = vadd.f32 %v824, %v861
      %v894 = vld [vmem:[%s1 + $0x4] sm:$0x1]
      %v895 = vlaneseq
      %v896 = vshrl.u32 %v895, 7
      %v897 = vsub.s32 0, %v896
      %v898 = vrot.slane %v894, %v897
      %v899 = vmul.f32 %v245, %v898
      %v900 = vmul.f32 %v246, %v898
      %v901 = vmul.f32 %v247, %v898
      %v902 = vmul.f32 %v248, %v898
      %v903 = vmul.f32 %v249, %v898
      %v904 = vmul.f32 %v250, %v898
      %v905 = vmul.f32 %v251, %v898
      %v906 = vmul.f32 %v252, %v898
      %v907 = vmul.f32 %v253, %v898
      %v908 = vmul.f32 %v254, %v898
      %v909 = vmul.f32 %v255, %v898
      %v910 = vmul.f32 %v256, %v898
      %v911 = vmul.f32 %v257, %v898
      %v912 = vmul.f32 %v258, %v898
      %v913 = vmul.f32 %v259, %v898
      %v914 = vmul.f32 %v260, %v898
      %v915 = vmul.f32 %v261, %v898
      %v916 = vmul.f32 %v262, %v898
      %v917 = vmul.f32 %v263, %v898
      %v918 = vmul.f32 %v264, %v898
      %v919 = vmul.f32 %v265, %v898
      %v920 = vmul.f32 %v266, %v898
      %v921 = vmul.f32 %v267, %v898
      %v922 = vmul.f32 %v268, %v898
      %v923 = vmul.f32 %v269, %v898
      %v924 = vmul.f32 %v270, %v898
      %v925 = vmul.f32 %v271, %v898
      %v926 = vmul.f32 %v272, %v898
      %v927 = vmul.f32 %v273, %v898
      %v928 = vmul.f32 %v274, %v898
      %v929 = vmul.f32 %v275, %v898
      %v930 = vmul.f32 %v276, %v898
      %v931 = vmul.f32 %v277, %v898
      %v932 = vmul.f32 %v278, %v898
      %v933 = vmul.f32 %v279, %v898
      %v934 = vmul.f32 %v280, %v898
      %v935 = vmul.f32 %v281, %v898
      %v936 = vmul.f32 %v282, %v898
      %v937 = vmul.f32 %v283, %v898
      %v938 = vmul.f32 %v284, %v898
      %v939 = vmul.f32 %v285, %v898
      %v940 = vmul.f32 %v286, %v898
      %v941 = vmul.f32 %v287, %v898
      %v942 = vmul.f32 %v288, %v898
      %v943 = vmul.f32 %v289, %v898
      %v944 = vmul.f32 %v290, %v898
      %v945 = vmul.f32 %v291, %v898
      %v946 = vmul.f32 %v292, %v898
      %v995 = vrot.slane %v899, 1
      %v996 = vrot.slane %v900, 1
      %v997 = vsel %vm434, %v995, %v996
      %v998 = vrot.slane %v901, 1
      %v999 = vsel %vm434, %v996, %v998
      %v1000 = vrot.slane %v902, 1
      %v1001 = vrot.slane %v903, 1
      %v1002 = vsel %vm434, %v1000, %v1001
      %v1003 = vrot.slane %v904, 1
      %v1004 = vsel %vm434, %v1001, %v1003
      %v1005 = vrot.slane %v905, 1
      %v1006 = vrot.slane %v906, 1
      %v1007 = vsel %vm434, %v1005, %v1006
      %v1008 = vrot.slane %v907, 1
      %v1009 = vsel %vm434, %v1006, %v1008
      %v1010 = vrot.slane %v908, 1
      %v1011 = vrot.slane %v909, 1
      %v1012 = vsel %vm434, %v1010, %v1011
      %v1013 = vrot.slane %v910, 1
      %v1014 = vsel %vm434, %v1011, %v1013
      %v1015 = vrot.slane %v911, 1
      %v1016 = vrot.slane %v912, 1
      %v1017 = vsel %vm434, %v1015, %v1016
      %v1018 = vrot.slane %v913, 1
      %v1019 = vsel %vm434, %v1016, %v1018
      %v1020 = vrot.slane %v914, 1
      %v1021 = vrot.slane %v915, 1
      %v1022 = vsel %vm434, %v1020, %v1021
      %v1023 = vrot.slane %v916, 1
      %v1024 = vsel %vm434, %v1021, %v1023
      %v1025 = vrot.slane %v917, 1
      %v1026 = vrot.slane %v918, 1
      %v1027 = vsel %vm434, %v1025, %v1026
      %v1028 = vrot.slane %v919, 1
      %v1029 = vsel %vm434, %v1026, %v1028
      %v1030 = vrot.slane %v920, 1
      %v1031 = vrot.slane %v921, 1
      %v1032 = vsel %vm434, %v1030, %v1031
      %v1033 = vrot.slane %v922, 1
      %v1034 = vsel %vm434, %v1031, %v1033
      %v1035 = vrot.slane %v923, 1
      %v1036 = vrot.slane %v924, 1
      %v1037 = vsel %vm434, %v1035, %v1036
      %v1038 = vrot.slane %v925, 1
      %v1039 = vsel %vm434, %v1036, %v1038
      %v1040 = vrot.slane %v926, 1
      %v1041 = vrot.slane %v927, 1
      %v1042 = vsel %vm434, %v1040, %v1041
      %v1043 = vrot.slane %v928, 1
      %v1044 = vsel %vm434, %v1041, %v1043
      %v1045 = vrot.slane %v929, 1
      %v1046 = vrot.slane %v930, 1
      %v1047 = vsel %vm434, %v1045, %v1046
      %v1048 = vrot.slane %v931, 1
      %v1049 = vsel %vm434, %v1046, %v1048
      %v1050 = vrot.slane %v932, 1
      %v1051 = vrot.slane %v933, 1
      %v1052 = vsel %vm434, %v1050, %v1051
      %v1053 = vrot.slane %v934, 1
      %v1054 = vsel %vm434, %v1051, %v1053
      %v1055 = vrot.slane %v935, 1
      %v1056 = vrot.slane %v936, 1
      %v1057 = vsel %vm434, %v1055, %v1056
      %v1058 = vrot.slane %v937, 1
      %v1059 = vsel %vm434, %v1056, %v1058
      %v1060 = vrot.slane %v938, 1
      %v1061 = vrot.slane %v939, 1
      %v1062 = vsel %vm434, %v1060, %v1061
      %v1063 = vrot.slane %v940, 1
      %v1064 = vsel %vm434, %v1061, %v1063
      %v1065 = vrot.slane %v941, 1
      %v1066 = vrot.slane %v942, 1
      %v1067 = vsel %vm434, %v1065, %v1066
      %v1068 = vrot.slane %v943, 1
      %v1069 = vsel %vm434, %v1066, %v1068
      %v1070 = vrot.slane %v944, 1
      %v1071 = vrot.slane %v945, 1
      %v1072 = vsel %vm434, %v1070, %v1071
      %v1073 = vrot.slane %v946, 1
      %v1074 = vsel %vm434, %v1071, %v1073
      %v1107 = vadd.f32 %v862, %v997
      %v1108 = vadd.f32 %v863, %v999
      %v1109 = vadd.f32 %v864, %v1002
      %v1110 = vadd.f32 %v865, %v1004
      %v1111 = vadd.f32 %v866, %v1007
      %v1112 = vadd.f32 %v867, %v1009
      %v1113 = vadd.f32 %v868, %v1012
      %v1114 = vadd.f32 %v869, %v1014
      %v1115 = vadd.f32 %v870, %v1017
      %v1116 = vadd.f32 %v871, %v1019
      %v1117 = vadd.f32 %v872, %v1022
      %v1118 = vadd.f32 %v873, %v1024
      %v1119 = vadd.f32 %v874, %v1027
      %v1120 = vadd.f32 %v875, %v1029
      %v1121 = vadd.f32 %v876, %v1032
      %v1122 = vadd.f32 %v877, %v1034
      %v1123 = vadd.f32 %v878, %v1037
      %v1124 = vadd.f32 %v879, %v1039
      %v1125 = vadd.f32 %v880, %v1042
      %v1126 = vadd.f32 %v881, %v1044
      %v1127 = vadd.f32 %v882, %v1047
      %v1128 = vadd.f32 %v883, %v1049
      %v1129 = vadd.f32 %v884, %v1052
      %v1130 = vadd.f32 %v885, %v1054
      %v1131 = vadd.f32 %v886, %v1057
      %v1132 = vadd.f32 %v887, %v1059
      %v1133 = vadd.f32 %v888, %v1062
      %v1134 = vadd.f32 %v889, %v1064
      %v1135 = vadd.f32 %v890, %v1067
      %v1136 = vadd.f32 %v891, %v1069
      %v1137 = vadd.f32 %v892, %v1072
      %v1138 = vadd.f32 %v893, %v1074
      %v1139 = vld [vmem:[%s1 + $0x5] sm:$0x1]
      %v1140 = vlaneseq
      %v1141 = vshrl.u32 %v1140, 7
      %v1142 = vsub.s32 0, %v1141
      %v1143 = vrot.slane %v1139, %v1142
      %v1144 = vmul.f32 %v245, %v1143
      %v1145 = vmul.f32 %v246, %v1143
      %v1146 = vmul.f32 %v247, %v1143
      %v1147 = vmul.f32 %v248, %v1143
      %v1148 = vmul.f32 %v249, %v1143
      %v1149 = vmul.f32 %v250, %v1143
      %v1150 = vmul.f32 %v251, %v1143
      %v1151 = vmul.f32 %v252, %v1143
      %v1152 = vmul.f32 %v253, %v1143
      %v1153 = vmul.f32 %v254, %v1143
      %v1154 = vmul.f32 %v255, %v1143
      %v1155 = vmul.f32 %v256, %v1143
      %v1156 = vmul.f32 %v257, %v1143
      %v1157 = vmul.f32 %v258, %v1143
      %v1158 = vmul.f32 %v259, %v1143
      %v1159 = vmul.f32 %v260, %v1143
      %v1160 = vmul.f32 %v261, %v1143
      %v1161 = vmul.f32 %v262, %v1143
      %v1162 = vmul.f32 %v263, %v1143
      %v1163 = vmul.f32 %v264, %v1143
      %v1164 = vmul.f32 %v265, %v1143
      %v1165 = vmul.f32 %v266, %v1143
      %v1166 = vmul.f32 %v267, %v1143
      %v1167 = vmul.f32 %v268, %v1143
      %v1168 = vmul.f32 %v269, %v1143
      %v1169 = vmul.f32 %v270, %v1143
      %v1170 = vmul.f32 %v271, %v1143
      %v1171 = vmul.f32 %v272, %v1143
      %v1172 = vmul.f32 %v273, %v1143
      %v1173 = vmul.f32 %v274, %v1143
      %v1174 = vmul.f32 %v275, %v1143
      %v1175 = vmul.f32 %v276, %v1143
      %v1176 = vmul.f32 %v277, %v1143
      %v1177 = vmul.f32 %v278, %v1143
      %v1178 = vmul.f32 %v279, %v1143
      %v1179 = vmul.f32 %v280, %v1143
      %v1180 = vmul.f32 %v281, %v1143
      %v1181 = vmul.f32 %v282, %v1143
      %v1182 = vmul.f32 %v283, %v1143
      %v1183 = vmul.f32 %v284, %v1143
      %v1184 = vmul.f32 %v285, %v1143
      %v1185 = vmul.f32 %v286, %v1143
      %v1186 = vmul.f32 %v287, %v1143
      %v1187 = vmul.f32 %v288, %v1143
      %v1188 = vmul.f32 %v289, %v1143
      %v1189 = vmul.f32 %v290, %v1143
      %v1190 = vmul.f32 %v291, %v1143
      %v1191 = vmul.f32 %v292, %v1143
      %v1240 = vrot.slane %v1144, 2
      %v1241 = vrot.slane %v1145, 2
      %v1242 = vsel %vm680, %v1240, %v1241
      %v1243 = vrot.slane %v1146, 2
      %v1244 = vsel %vm680, %v1241, %v1243
      %v1245 = vrot.slane %v1147, 2
      %v1246 = vrot.slane %v1148, 2
      %v1247 = vsel %vm680, %v1245, %v1246
      %v1248 = vrot.slane %v1149, 2
      %v1249 = vsel %vm680, %v1246, %v1248
      %v1250 = vrot.slane %v1150, 2
      %v1251 = vrot.slane %v1151, 2
      %v1252 = vsel %vm680, %v1250, %v1251
      %v1253 = vrot.slane %v1152, 2
      %v1254 = vsel %vm680, %v1251, %v1253
      %v1255 = vrot.slane %v1153, 2
      %v1256 = vrot.slane %v1154, 2
      %v1257 = vsel %vm680, %v1255, %v1256
      %v1258 = vrot.slane %v1155, 2
      %v1259 = vsel %vm680, %v1256, %v1258
      %v1260 = vrot.slane %v1156, 2
      %v1261 = vrot.slane %v1157, 2
      %v1262 = vsel %vm680, %v1260, %v1261
      %v1263 = vrot.slane %v1158, 2
      %v1264 = vsel %vm680, %v1261, %v1263
      %v1265 = vrot.slane %v1159, 2
      %v1266 = vrot.slane %v1160, 2
      %v1267 = vsel %vm680, %v1265, %v1266
      %v1268 = vrot.slane %v1161, 2
      %v1269 = vsel %vm680, %v1266, %v1268
      %v1270 = vrot.slane %v1162, 2
      %v1271 = vrot.slane %v1163, 2
      %v1272 = vsel %vm680, %v1270, %v1271
      %v1273 = vrot.slane %v1164, 2
      %v1274 = vsel %vm680, %v1271, %v1273
      %v1275 = vrot.slane %v1165, 2
      %v1276 = vrot.slane %v1166, 2
      %v1277 = vsel %vm680, %v1275, %v1276
      %v1278 = vrot.slane %v1167, 2
      %v1279 = vsel %vm680, %v1276, %v1278
      %v1280 = vrot.slane %v1168, 2
      %v1281 = vrot.slane %v1169, 2
      %v1282 = vsel %vm680, %v1280, %v1281
      %v1283 = vrot.slane %v1170, 2
      %v1284 = vsel %vm680, %v1281, %v1283
      %v1285 = vrot.slane %v1171, 2
      %v1286 = vrot.slane %v1172, 2
      %v1287 = vsel %vm680, %v1285, %v1286
      %v1288 = vrot.slane %v1173, 2
      %v1289 = vsel %vm680, %v1286, %v1288
      %v1290 = vrot.slane %v1174, 2
      %v1291 = vrot.slane %v1175, 2
      %v1292 = vsel %vm680, %v1290, %v1291
      %v1293 = vrot.slane %v1176, 2
      %v1294 = vsel %vm680, %v1291, %v1293
      %v1295 = vrot.slane %v1177, 2
      %v1296 = vrot.slane %v1178, 2
      %v1297 = vsel %vm680, %v1295, %v1296
      %v1298 = vrot.slane %v1179, 2
      %v1299 = vsel %vm680, %v1296, %v1298
      %v1300 = vrot.slane %v1180, 2
      %v1301 = vrot.slane %v1181, 2
      %v1302 = vsel %vm680, %v1300, %v1301
      %v1303 = vrot.slane %v1182, 2
      %v1304 = vsel %vm680, %v1301, %v1303
      %v1305 = vrot.slane %v1183, 2
      %v1306 = vrot.slane %v1184, 2
      %v1307 = vsel %vm680, %v1305, %v1306
      %v1308 = vrot.slane %v1185, 2
      %v1309 = vsel %vm680, %v1306, %v1308
      %v1310 = vrot.slane %v1186, 2
      %v1311 = vrot.slane %v1187, 2
      %v1312 = vsel %vm680, %v1310, %v1311
      %v1313 = vrot.slane %v1188, 2
      %v1314 = vsel %vm680, %v1311, %v1313
      %v1315 = vrot.slane %v1189, 2
      %v1316 = vrot.slane %v1190, 2
      %v1317 = vsel %vm680, %v1315, %v1316
      %v1318 = vrot.slane %v1191, 2
      %v1319 = vsel %vm680, %v1316, %v1318
      %v1352 = vadd.f32 %v1107, %v1242
      %v1353 = vadd.f32 %v1108, %v1244
      %v1354 = vadd.f32 %v1109, %v1247
      %v1355 = vadd.f32 %v1110, %v1249
      %v1356 = vadd.f32 %v1111, %v1252
      %v1357 = vadd.f32 %v1112, %v1254
      %v1358 = vadd.f32 %v1113, %v1257
      %v1359 = vadd.f32 %v1114, %v1259
      %v1360 = vadd.f32 %v1115, %v1262
      %v1361 = vadd.f32 %v1116, %v1264
      %v1362 = vadd.f32 %v1117, %v1267
      %v1363 = vadd.f32 %v1118, %v1269
      %v1364 = vadd.f32 %v1119, %v1272
      %v1365 = vadd.f32 %v1120, %v1274
      %v1366 = vadd.f32 %v1121, %v1277
      %v1367 = vadd.f32 %v1122, %v1279
      %v1368 = vadd.f32 %v1123, %v1282
      %v1369 = vadd.f32 %v1124, %v1284
      %v1370 = vadd.f32 %v1125, %v1287
      %v1371 = vadd.f32 %v1126, %v1289
      %v1372 = vadd.f32 %v1127, %v1292
      %v1373 = vadd.f32 %v1128, %v1294
      %v1374 = vadd.f32 %v1129, %v1297
      %v1375 = vadd.f32 %v1130, %v1299
      %v1376 = vadd.f32 %v1131, %v1302
      %v1377 = vadd.f32 %v1132, %v1304
      %v1378 = vadd.f32 %v1133, %v1307
      %v1379 = vadd.f32 %v1134, %v1309
      %v1380 = vadd.f32 %v1135, %v1312
      %v1381 = vadd.f32 %v1136, %v1314
      %v1382 = vadd.f32 %v1137, %v1317
      %v1383 = vadd.f32 %v1138, %v1319
      %v1384 = vld [vmem:[%s1 + $0x6] sm:$0x1]
      %v1385 = vlaneseq
      %v1386 = vshrl.u32 %v1385, 7
      %v1387 = vsub.s32 0, %v1386
      %v1388 = vrot.slane %v1384, %v1387
      %v1389 = vmul.f32 %v248, %v1388
      %v1390 = vmul.f32 %v249, %v1388
      %v1391 = vmul.f32 %v251, %v1388
      %v1392 = vmul.f32 %v252, %v1388
      %v1393 = vmul.f32 %v254, %v1388
      %v1394 = vmul.f32 %v255, %v1388
      %v1395 = vmul.f32 %v257, %v1388
      %v1396 = vmul.f32 %v258, %v1388
      %v1397 = vmul.f32 %v260, %v1388
      %v1398 = vmul.f32 %v261, %v1388
      %v1399 = vmul.f32 %v263, %v1388
      %v1400 = vmul.f32 %v264, %v1388
      %v1401 = vmul.f32 %v266, %v1388
      %v1402 = vmul.f32 %v267, %v1388
      %v1403 = vmul.f32 %v269, %v1388
      %v1404 = vmul.f32 %v270, %v1388
      %v1405 = vmul.f32 %v272, %v1388
      %v1406 = vmul.f32 %v273, %v1388
      %v1407 = vmul.f32 %v275, %v1388
      %v1408 = vmul.f32 %v276, %v1388
      %v1409 = vmul.f32 %v278, %v1388
      %v1410 = vmul.f32 %v279, %v1388
      %v1411 = vmul.f32 %v281, %v1388
      %v1412 = vmul.f32 %v282, %v1388
      %v1413 = vmul.f32 %v284, %v1388
      %v1414 = vmul.f32 %v285, %v1388
      %v1415 = vmul.f32 %v287, %v1388
      %v1416 = vmul.f32 %v288, %v1388
      %v1417 = vmul.f32 %v290, %v1388
      %v1418 = vmul.f32 %v291, %v1388
      %v1419 = vmul.f32 %v293, %v1388
      %v1420 = vmul.f32 %v294, %v1388
      %v1421 = vadd.f32 %v1352, %v1389
      %v1422 = vadd.f32 %v1353, %v1390
      %v1423 = vadd.f32 %v1354, %v1391
      %v1424 = vadd.f32 %v1355, %v1392
      %v1425 = vadd.f32 %v1356, %v1393
      %v1426 = vadd.f32 %v1357, %v1394
      %v1427 = vadd.f32 %v1358, %v1395
      %v1428 = vadd.f32 %v1359, %v1396
      %v1429 = vadd.f32 %v1360, %v1397
      %v1430 = vadd.f32 %v1361, %v1398
      %v1431 = vadd.f32 %v1362, %v1399
      %v1432 = vadd.f32 %v1363, %v1400
      %v1433 = vadd.f32 %v1364, %v1401
      %v1434 = vadd.f32 %v1365, %v1402
      %v1435 = vadd.f32 %v1366, %v1403
      %v1436 = vadd.f32 %v1367, %v1404
      %v1437 = vadd.f32 %v1368, %v1405
      %v1438 = vadd.f32 %v1369, %v1406
      %v1439 = vadd.f32 %v1370, %v1407
      %v1440 = vadd.f32 %v1371, %v1408
      %v1441 = vadd.f32 %v1372, %v1409
      %v1442 = vadd.f32 %v1373, %v1410
      %v1443 = vadd.f32 %v1374, %v1411
      %v1444 = vadd.f32 %v1375, %v1412
      %v1445 = vadd.f32 %v1376, %v1413
      %v1446 = vadd.f32 %v1377, %v1414
      %v1447 = vadd.f32 %v1378, %v1415
      %v1448 = vadd.f32 %v1379, %v1416
      %v1449 = vadd.f32 %v1380, %v1417
      %v1450 = vadd.f32 %v1381, %v1418
      %v1451 = vadd.f32 %v1382, %v1419
      %v1452 = vadd.f32 %v1383, %v1420
      %v1453 = vld [vmem:[%s1 + $0x7] sm:$0x1]
      %v1454 = vlaneseq
      %v1455 = vshrl.u32 %v1454, 7
      %v1456 = vsub.s32 0, %v1455
      %v1457 = vrot.slane %v1453, %v1456
      %v1458 = vmul.f32 %v248, %v1457
      %v1459 = vmul.f32 %v249, %v1457
      %v1460 = vmul.f32 %v250, %v1457
      %v1461 = vmul.f32 %v251, %v1457
      %v1462 = vmul.f32 %v252, %v1457
      %v1463 = vmul.f32 %v253, %v1457
      %v1464 = vmul.f32 %v254, %v1457
      %v1465 = vmul.f32 %v255, %v1457
      %v1466 = vmul.f32 %v256, %v1457
      %v1467 = vmul.f32 %v257, %v1457
      %v1468 = vmul.f32 %v258, %v1457
      %v1469 = vmul.f32 %v259, %v1457
      %v1470 = vmul.f32 %v260, %v1457
      %v1471 = vmul.f32 %v261, %v1457
      %v1472 = vmul.f32 %v262, %v1457
      %v1473 = vmul.f32 %v263, %v1457
      %v1474 = vmul.f32 %v264, %v1457
      %v1475 = vmul.f32 %v265, %v1457
      %v1476 = vmul.f32 %v266, %v1457
      %v1477 = vmul.f32 %v267, %v1457
      %v1478 = vmul.f32 %v268, %v1457
      %v1479 = vmul.f32 %v269, %v1457
      %v1480 = vmul.f32 %v270, %v1457
      %v1481 = vmul.f32 %v271, %v1457
      %v1482 = vmul.f32 %v272, %v1457
      %v1483 = vmul.f32 %v273, %v1457
      %v1484 = vmul.f32 %v274, %v1457
      %v1485 = vmul.f32 %v275, %v1457
      %v1486 = vmul.f32 %v276, %v1457
      %v1487 = vmul.f32 %v277, %v1457
      %v1488 = vmul.f32 %v278, %v1457
      %v1489 = vmul.f32 %v279, %v1457
      %v1490 = vmul.f32 %v280, %v1457
      %v1491 = vmul.f32 %v281, %v1457
      %v1492 = vmul.f32 %v282, %v1457
      %v1493 = vmul.f32 %v283, %v1457
      %v1494 = vmul.f32 %v284, %v1457
      %v1495 = vmul.f32 %v285, %v1457
      %v1496 = vmul.f32 %v286, %v1457
      %v1497 = vmul.f32 %v287, %v1457
      %v1498 = vmul.f32 %v288, %v1457
      %v1499 = vmul.f32 %v289, %v1457
      %v1500 = vmul.f32 %v290, %v1457
      %v1501 = vmul.f32 %v291, %v1457
      %v1502 = vmul.f32 %v292, %v1457
      %v1503 = vmul.f32 %v293, %v1457
      %v1504 = vmul.f32 %v294, %v1457
      %v1505 = vmul.f32 %v295, %v1457
      %v1554 = vrot.slane %v1458, 1
      %v1555 = vrot.slane %v1459, 1
      %v1556 = vsel %vm434, %v1554, %v1555
      %v1557 = vrot.slane %v1460, 1
      %v1558 = vsel %vm434, %v1555, %v1557
      %v1559 = vrot.slane %v1461, 1
      %v1560 = vrot.slane %v1462, 1
      %v1561 = vsel %vm434, %v1559, %v1560
      %v1562 = vrot.slane %v1463, 1
      %v1563 = vsel %vm434, %v1560, %v1562
      %v1564 = vrot.slane %v1464, 1
      %v1565 = vrot.slane %v1465, 1
      %v1566 = vsel %vm434, %v1564, %v1565
      %v1567 = vrot.slane %v1466, 1
      %v1568 = vsel %vm434, %v1565, %v1567
      %v1569 = vrot.slane %v1467, 1
      %v1570 = vrot.slane %v1468, 1
      %v1571 = vsel %vm434, %v1569, %v1570
      %v1572 = vrot.slane %v1469, 1
      %v1573 = vsel %vm434, %v1570, %v1572
      %v1574 = vrot.slane %v1470, 1
      %v1575 = vrot.slane %v1471, 1
      %v1576 = vsel %vm434, %v1574, %v1575
      %v1577 = vrot.slane %v1472, 1
      %v1578 = vsel %vm434, %v1575, %v1577
      %v1579 = vrot.slane %v1473, 1
      %v1580 = vrot.slane %v1474, 1
      %v1581 = vsel %vm434, %v1579, %v1580
      %v1582 = vrot.slane %v1475, 1
      %v1583 = vsel %vm434, %v1580, %v1582
      %v1584 = vrot.slane %v1476, 1
      %v1585 = vrot.slane %v1477, 1
      %v1586 = vsel %vm434, %v1584, %v1585
      %v1587 = vrot.slane %v1478, 1
      %v1588 = vsel %vm434, %v1585, %v1587
      %v1589 = vrot.slane %v1479, 1
      %v1590 = vrot.slane %v1480, 1
      %v1591 = vsel %vm434, %v1589, %v1590
      %v1592 = vrot.slane %v1481, 1
      %v1593 = vsel %vm434, %v1590, %v1592
      %v1594 = vrot.slane %v1482, 1
      %v1595 = vrot.slane %v1483, 1
      %v1596 = vsel %vm434, %v1594, %v1595
      %v1597 = vrot.slane %v1484, 1
      %v1598 = vsel %vm434, %v1595, %v1597
      %v1599 = vrot.slane %v1485, 1
      %v1600 = vrot.slane %v1486, 1
      %v1601 = vsel %vm434, %v1599, %v1600
      %v1602 = vrot.slane %v1487, 1
      %v1603 = vsel %vm434, %v1600, %v1602
      %v1604 = vrot.slane %v1488, 1
      %v1605 = vrot.slane %v1489, 1
      %v1606 = vsel %vm434, %v1604, %v1605
      %v1607 = vrot.slane %v1490, 1
      %v1608 = vsel %vm434, %v1605, %v1607
      %v1609 = vrot.slane %v1491, 1
      %v1610 = vrot.slane %v1492, 1
      %v1611 = vsel %vm434, %v1609, %v1610
      %v1612 = vrot.slane %v1493, 1
      %v1613 = vsel %vm434, %v1610, %v1612
      %v1614 = vrot.slane %v1494, 1
      %v1615 = vrot.slane %v1495, 1
      %v1616 = vsel %vm434, %v1614, %v1615
      %v1617 = vrot.slane %v1496, 1
      %v1618 = vsel %vm434, %v1615, %v1617
      %v1619 = vrot.slane %v1497, 1
      %v1620 = vrot.slane %v1498, 1
      %v1621 = vsel %vm434, %v1619, %v1620
      %v1622 = vrot.slane %v1499, 1
      %v1623 = vsel %vm434, %v1620, %v1622
      %v1624 = vrot.slane %v1500, 1
      %v1625 = vrot.slane %v1501, 1
      %v1626 = vsel %vm434, %v1624, %v1625
      %v1627 = vrot.slane %v1502, 1
      %v1628 = vsel %vm434, %v1625, %v1627
      %v1629 = vrot.slane %v1503, 1
      %v1630 = vrot.slane %v1504, 1
      %v1631 = vsel %vm434, %v1629, %v1630
      %v1632 = vrot.slane %v1505, 1
      %v1633 = vsel %vm434, %v1630, %v1632
      %v1666 = vadd.f32 %v1421, %v1556
      %v1667 = vadd.f32 %v1422, %v1558
      %v1668 = vadd.f32 %v1423, %v1561
      %v1669 = vadd.f32 %v1424, %v1563
      %v1670 = vadd.f32 %v1425, %v1566
      %v1671 = vadd.f32 %v1426, %v1568
      %v1672 = vadd.f32 %v1427, %v1571
      %v1673 = vadd.f32 %v1428, %v1573
      %v1674 = vadd.f32 %v1429, %v1576
      %v1675 = vadd.f32 %v1430, %v1578
      %v1676 = vadd.f32 %v1431, %v1581
      %v1677 = vadd.f32 %v1432, %v1583
      %v1678 = vadd.f32 %v1433, %v1586
      %v1679 = vadd.f32 %v1434, %v1588
      %v1680 = vadd.f32 %v1435, %v1591
      %v1681 = vadd.f32 %v1436, %v1593
      %v1682 = vadd.f32 %v1437, %v1596
      %v1683 = vadd.f32 %v1438, %v1598
      %v1684 = vadd.f32 %v1439, %v1601
      %v1685 = vadd.f32 %v1440, %v1603
      %v1686 = vadd.f32 %v1441, %v1606
      %v1687 = vadd.f32 %v1442, %v1608
      %v1688 = vadd.f32 %v1443, %v1611
      %v1689 = vadd.f32 %v1444, %v1613
      %v1690 = vadd.f32 %v1445, %v1616
      %v1691 = vadd.f32 %v1446, %v1618
      %v1692 = vadd.f32 %v1447, %v1621
      %v1693 = vadd.f32 %v1448, %v1623
      %v1694 = vadd.f32 %v1449, %v1626
      %v1695 = vadd.f32 %v1450, %v1628
      %v1696 = vadd.f32 %v1451, %v1631
      %v1697 = vadd.f32 %v1452, %v1633
      %v1698 = vld [vmem:[%s1 + $0x8] sm:$0x1]
      %v1699 = vlaneseq
      %v1700 = vshrl.u32 %v1699, 7
      %v1701 = vsub.s32 0, %v1700
      %v1702 = vrot.slane %v1698, %v1701
      %v1703 = vmul.f32 %v248, %v1702
      %v1704 = vmul.f32 %v249, %v1702
      %v1705 = vmul.f32 %v250, %v1702
      %v1706 = vmul.f32 %v251, %v1702
      %v1707 = vmul.f32 %v252, %v1702
      %v1708 = vmul.f32 %v253, %v1702
      %v1709 = vmul.f32 %v254, %v1702
      %v1710 = vmul.f32 %v255, %v1702
      %v1711 = vmul.f32 %v256, %v1702
      %v1712 = vmul.f32 %v257, %v1702
      %v1713 = vmul.f32 %v258, %v1702
      %v1714 = vmul.f32 %v259, %v1702
      %v1715 = vmul.f32 %v260, %v1702
      %v1716 = vmul.f32 %v261, %v1702
      %v1717 = vmul.f32 %v262, %v1702
      %v1718 = vmul.f32 %v263, %v1702
      %v1719 = vmul.f32 %v264, %v1702
      %v1720 = vmul.f32 %v265, %v1702
      %v1721 = vmul.f32 %v266, %v1702
      %v1722 = vmul.f32 %v267, %v1702
      %v1723 = vmul.f32 %v268, %v1702
      %v1724 = vmul.f32 %v269, %v1702
      %v1725 = vmul.f32 %v270, %v1702
      %v1726 = vmul.f32 %v271, %v1702
      %v1727 = vmul.f32 %v272, %v1702
      %v1728 = vmul.f32 %v273, %v1702
      %v1729 = vmul.f32 %v274, %v1702
      %v1730 = vmul.f32 %v275, %v1702
      %v1731 = vmul.f32 %v276, %v1702
      %v1732 = vmul.f32 %v277, %v1702
      %v1733 = vmul.f32 %v278, %v1702
      %v1734 = vmul.f32 %v279, %v1702
      %v1735 = vmul.f32 %v280, %v1702
      %v1736 = vmul.f32 %v281, %v1702
      %v1737 = vmul.f32 %v282, %v1702
      %v1738 = vmul.f32 %v283, %v1702
      %v1739 = vmul.f32 %v284, %v1702
      %v1740 = vmul.f32 %v285, %v1702
      %v1741 = vmul.f32 %v286, %v1702
      %v1742 = vmul.f32 %v287, %v1702
      %v1743 = vmul.f32 %v288, %v1702
      %v1744 = vmul.f32 %v289, %v1702
      %v1745 = vmul.f32 %v290, %v1702
      %v1746 = vmul.f32 %v291, %v1702
      %v1747 = vmul.f32 %v292, %v1702
      %v1748 = vmul.f32 %v293, %v1702
      %v1749 = vmul.f32 %v294, %v1702
      %v1750 = vmul.f32 %v295, %v1702
      %v1799 = vrot.slane %v1703, 2
      %v1800 = vrot.slane %v1704, 2
      %v1801 = vsel %vm680, %v1799, %v1800
      %v1802 = vrot.slane %v1705, 2
      %v1803 = vsel %vm680, %v1800, %v1802
      %v1804 = vrot.slane %v1706, 2
      %v1805 = vrot.slane %v1707, 2
      %v1806 = vsel %vm680, %v1804, %v1805
      %v1807 = vrot.slane %v1708, 2
      %v1808 = vsel %vm680, %v1805, %v1807
      %v1809 = vrot.slane %v1709, 2
      %v1810 = vrot.slane %v1710, 2
      %v1811 = vsel %vm680, %v1809, %v1810
      %v1812 = vrot.slane %v1711, 2
      %v1813 = vsel %vm680, %v1810, %v1812
      %v1814 = vrot.slane %v1712, 2
      %v1815 = vrot.slane %v1713, 2
      %v1816 = vsel %vm680, %v1814, %v1815
      %v1817 = vrot.slane %v1714, 2
      %v1818 = vsel %vm680, %v1815, %v1817
      %v1819 = vrot.slane %v1715, 2
      %v1820 = vrot.slane %v1716, 2
      %v1821 = vsel %vm680, %v1819, %v1820
      %v1822 = vrot.slane %v1717, 2
      %v1823 = vsel %vm680, %v1820, %v1822
      %v1824 = vrot.slane %v1718, 2
      %v1825 = vrot.slane %v1719, 2
      %v1826 = vsel %vm680, %v1824, %v1825
      %v1827 = vrot.slane %v1720, 2
      %v1828 = vsel %vm680, %v1825, %v1827
      %v1829 = vrot.slane %v1721, 2
      %v1830 = vrot.slane %v1722, 2
      %v1831 = vsel %vm680, %v1829, %v1830
      %v1832 = vrot.slane %v1723, 2
      %v1833 = vsel %vm680, %v1830, %v1832
      %v1834 = vrot.slane %v1724, 2
      %v1835 = vrot.slane %v1725, 2
      %v1836 = vsel %vm680, %v1834, %v1835
      %v1837 = vrot.slane %v1726, 2
      %v1838 = vsel %vm680, %v1835, %v1837
      %v1839 = vrot.slane %v1727, 2
      %v1840 = vrot.slane %v1728, 2
      %v1841 = vsel %vm680, %v1839, %v1840
      %v1842 = vrot.slane %v1729, 2
      %v1843 = vsel %vm680, %v1840, %v1842
      %v1844 = vrot.slane %v1730, 2
      %v1845 = vrot.slane %v1731, 2
      %v1846 = vsel %vm680, %v1844, %v1845
      %v1847 = vrot.slane %v1732, 2
      %v1848 = vsel %vm680, %v1845, %v1847
      %v1849 = vrot.slane %v1733, 2
      %v1850 = vrot.slane %v1734, 2
      %v1851 = vsel %vm680, %v1849, %v1850
      %v1852 = vrot.slane %v1735, 2
      %v1853 = vsel %vm680, %v1850, %v1852
      %v1854 = vrot.slane %v1736, 2
      %v1855 = vrot.slane %v1737, 2
      %v1856 = vsel %vm680, %v1854, %v1855
      %v1857 = vrot.slane %v1738, 2
      %v1858 = vsel %vm680, %v1855, %v1857
      %v1859 = vrot.slane %v1739, 2
      %v1860 = vrot.slane %v1740, 2
      %v1861 = vsel %vm680, %v1859, %v1860
      %v1862 = vrot.slane %v1741, 2
      %v1863 = vsel %vm680, %v1860, %v1862
      %v1864 = vrot.slane %v1742, 2
      %v1865 = vrot.slane %v1743, 2
      %v1866 = vsel %vm680, %v1864, %v1865
      %v1867 = vrot.slane %v1744, 2
      %v1868 = vsel %vm680, %v1865, %v1867
      %v1869 = vrot.slane %v1745, 2
      %v1870 = vrot.slane %v1746, 2
      %v1871 = vsel %vm680, %v1869, %v1870
      %v1872 = vrot.slane %v1747, 2
      %v1873 = vsel %vm680, %v1870, %v1872
      %v1874 = vrot.slane %v1748, 2
      %v1875 = vrot.slane %v1749, 2
      %v1876 = vsel %vm680, %v1874, %v1875
      %v1877 = vrot.slane %v1750, 2
      %v1878 = vsel %vm680, %v1875, %v1877
      %v1911 = vadd.f32 %v1666, %v1801
      %v1912 = vadd.f32 %v1667, %v1803
      %v1913 = vadd.f32 %v1668, %v1806
      %v1914 = vadd.f32 %v1669, %v1808
      %v1915 = vadd.f32 %v1670, %v1811
      %v1916 = vadd.f32 %v1671, %v1813
      %v1917 = vadd.f32 %v1672, %v1816
      %v1918 = vadd.f32 %v1673, %v1818
      %v1919 = vadd.f32 %v1674, %v1821
      %v1920 = vadd.f32 %v1675, %v1823
      %v1921 = vadd.f32 %v1676, %v1826
      %v1922 = vadd.f32 %v1677, %v1828
      %v1923 = vadd.f32 %v1678, %v1831
      %v1924 = vadd.f32 %v1679, %v1833
      %v1925 = vadd.f32 %v1680, %v1836
      %v1926 = vadd.f32 %v1681, %v1838
      %v1927 = vadd.f32 %v1682, %v1841
      %v1928 = vadd.f32 %v1683, %v1843
      %v1929 = vadd.f32 %v1684, %v1846
      %v1930 = vadd.f32 %v1685, %v1848
      %v1931 = vadd.f32 %v1686, %v1851
      %v1932 = vadd.f32 %v1687, %v1853
      %v1933 = vadd.f32 %v1688, %v1856
      %v1934 = vadd.f32 %v1689, %v1858
      %v1935 = vadd.f32 %v1690, %v1861
      %v1936 = vadd.f32 %v1691, %v1863
      %v1937 = vadd.f32 %v1692, %v1866
      %v1938 = vadd.f32 %v1693, %v1868
      %v1939 = vadd.f32 %v1694, %v1871
      %v1940 = vadd.f32 %v1695, %v1873
      %v1941 = vadd.f32 %v1696, %v1876
      %v1942 = vadd.f32 %v1697, %v1878
      %v1943 = vld [vmem:[%s2] sm:$0x1]
      %v1945 = vlaneseq
      %v1946 = vshrl.u32 %v1945, 7
      %v1947 = vsub.s32 0, %v1946
      %v1948 = vrot.slane %v1943, %v1947
      %v1950 = vadd.f32 %v1911, %v1948
      %v1951 = vadd.f32 %v1912, %v1948
      %v1952 = vadd.f32 %v1913, %v1948
      %v1953 = vadd.f32 %v1914, %v1948
      %v1954 = vadd.f32 %v1915, %v1948
      %v1955 = vadd.f32 %v1916, %v1948
      %v1956 = vadd.f32 %v1917, %v1948
      %v1957 = vadd.f32 %v1918, %v1948
      %v1958 = vadd.f32 %v1919, %v1948
      %v1959 = vadd.f32 %v1920, %v1948
      %v1960 = vadd.f32 %v1921, %v1948
      %v1961 = vadd.f32 %v1922, %v1948
      %v1962 = vadd.f32 %v1923, %v1948
      %v1963 = vadd.f32 %v1924, %v1948
      %v1964 = vadd.f32 %v1925, %v1948
      %v1965 = vadd.f32 %v1926, %v1948
      %v1966 = vadd.f32 %v1927, %v1948
      %v1967 = vadd.f32 %v1928, %v1948
      %v1968 = vadd.f32 %v1929, %v1948
      %v1969 = vadd.f32 %v1930, %v1948
      %v1970 = vadd.f32 %v1931, %v1948
      %v1971 = vadd.f32 %v1932, %v1948
      %v1972 = vadd.f32 %v1933, %v1948
      %v1973 = vadd.f32 %v1934, %v1948
      %v1974 = vadd.f32 %v1935, %v1948
      %v1975 = vadd.f32 %v1936, %v1948
      %v1976 = vadd.f32 %v1937, %v1948
      %v1977 = vadd.f32 %v1938, %v1948
      %v1978 = vadd.f32 %v1939, %v1948
      %v1979 = vadd.f32 %v1940, %v1948
      %v1980 = vadd.f32 %v1941, %v1948
      %v1981 = vadd.f32 %v1942, %v1948
      %v1982 = vpack.c.bf16 %v1951, %v1950
      %v1983 = vpack.c.bf16 %v1953, %v1952
      %v1984 = vpack.c.bf16 %v1955, %v1954
      %v1985 = vpack.c.bf16 %v1957, %v1956
      %v1986 = vpack.c.bf16 %v1959, %v1958
      %v1987 = vpack.c.bf16 %v1961, %v1960
      %v1988 = vpack.c.bf16 %v1963, %v1962
      %v1989 = vpack.c.bf16 %v1965, %v1964
      %v1990 = vpack.c.bf16 %v1967, %v1966
      %v1991 = vpack.c.bf16 %v1969, %v1968
      %v1992 = vpack.c.bf16 %v1971, %v1970
      %v1993 = vpack.c.bf16 %v1973, %v1972
      %v1994 = vpack.c.bf16 %v1975, %v1974
      %v1995 = vpack.c.bf16 %v1977, %v1976
      %v1996 = vpack.c.bf16 %v1979, %v1978
      %v1997 = vpack.c.bf16 %v1981, %v1980
      %v2014 = vunpack.c.l.b16 %v1982
      %v2015 = vunpack.c.h.b16 %v1982
      %v2016 = vunpack.c.l.b16 %v1983
      %v2017 = vunpack.c.h.b16 %v1983
      %v2018 = vunpack.c.l.b16 %v1984
      %v2019 = vunpack.c.h.b16 %v1984
      %v2020 = vunpack.c.l.b16 %v1985
      %v2021 = vunpack.c.h.b16 %v1985
      %v2022 = vunpack.c.l.b16 %v1986
      %v2023 = vunpack.c.h.b16 %v1986
      %v2024 = vunpack.c.l.b16 %v1987
      %v2025 = vunpack.c.h.b16 %v1987
      %v2026 = vunpack.c.l.b16 %v1988
      %v2027 = vunpack.c.h.b16 %v1988
      %v2028 = vunpack.c.l.b16 %v1989
      %v2029 = vunpack.c.h.b16 %v1989
      %v2030 = vunpack.c.l.b16 %v1990
      %v2031 = vunpack.c.h.b16 %v1990
      %v2032 = vunpack.c.l.b16 %v1991
      %v2033 = vunpack.c.h.b16 %v1991
      %v2034 = vunpack.c.l.b16 %v1992
      %v2035 = vunpack.c.h.b16 %v1992
      %v2036 = vunpack.c.l.b16 %v1993
      %v2037 = vunpack.c.h.b16 %v1993
      %v2038 = vunpack.c.l.b16 %v1994
      %v2039 = vunpack.c.h.b16 %v1994
      %v2040 = vunpack.c.l.b16 %v1995
      %v2041 = vunpack.c.h.b16 %v1995
      %v2042 = vunpack.c.l.b16 %v1996
      %v2043 = vunpack.c.h.b16 %v1996
      %v2044 = vunpack.c.l.b16 %v1997
      %v2045 = vunpack.c.h.b16 %v1997
      %v2046 = vpack.c.b16 %v2014, %v2014
      %v2047 = vpack.c.b16 %v2015, %v2015
      %v2048 = vpack.c.b16 %v2016, %v2016
      %v2049 = vpack.c.b16 %v2017, %v2017
      %v2050 = vpack.c.b16 %v2018, %v2018
      %v2051 = vpack.c.b16 %v2019, %v2019
      %v2052 = vpack.c.b16 %v2020, %v2020
      %v2053 = vpack.c.b16 %v2021, %v2021
      %v2054 = vpack.c.b16 %v2022, %v2022
      %v2055 = vpack.c.b16 %v2023, %v2023
      %v2056 = vpack.c.b16 %v2024, %v2024
      %v2057 = vpack.c.b16 %v2025, %v2025
      %v2058 = vpack.c.b16 %v2026, %v2026
      %v2059 = vpack.c.b16 %v2027, %v2027
      %v2060 = vpack.c.b16 %v2028, %v2028
      %v2061 = vpack.c.b16 %v2029, %v2029
      %v2062 = vpack.c.b16 %v2030, %v2030
      %v2063 = vpack.c.b16 %v2031, %v2031
      %v2064 = vpack.c.b16 %v2032, %v2032
      %v2065 = vpack.c.b16 %v2033, %v2033
      %v2066 = vpack.c.b16 %v2034, %v2034
      %v2067 = vpack.c.b16 %v2035, %v2035
      %v2068 = vpack.c.b16 %v2036, %v2036
      %v2069 = vpack.c.b16 %v2037, %v2037
      %v2070 = vpack.c.b16 %v2038, %v2038
      %v2071 = vpack.c.b16 %v2039, %v2039
      %v2072 = vpack.c.b16 %v2040, %v2040
      %v2073 = vpack.c.b16 %v2041, %v2041
      %v2074 = vpack.c.b16 %v2042, %v2042
      %v2075 = vpack.c.b16 %v2043, %v2043
      %v2076 = vpack.c.b16 %v2044, %v2044
      %v2077 = vpack.c.b16 %v2045, %v2045
      %2110 = vst [vmem:[%s235] sm:$0xf] %v2046
      %2111 = vst [vmem:[%s235 + $0x4] sm:$0xf] %v2047
      %2112 = vst [vmem:[%s235 + $0x8] sm:$0xf] %v2048
      %2113 = vst [vmem:[%s235 + $0xc] sm:$0xf] %v2049
      %2114 = vst [vmem:[%s235 + $0x10] sm:$0xf] %v2050
      %2115 = vst [vmem:[%s235 + $0x14] sm:$0xf] %v2051
      %2116 = vst [vmem:[%s235 + $0x18] sm:$0xf] %v2052
      %2117 = vst [vmem:[%s235 + $0x1c] sm:$0xf] %v2053
      %2118 = vst [vmem:[%s235 + $0x20] sm:$0xf] %v2054
      %2119 = vst [vmem:[%s235 + $0x24] sm:$0xf] %v2055
      %2120 = vst [vmem:[%s235 + $0x28] sm:$0xf] %v2056
      %2121 = vst [vmem:[%s235 + $0x2c] sm:$0xf] %v2057
      %2122 = vst [vmem:[%s235 + $0x30] sm:$0xf] %v2058
      %2123 = vst [vmem:[%s235 + $0x34] sm:$0xf] %v2059
      %2124 = vst [vmem:[%s235 + $0x38] sm:$0xf] %v2060
      %2125 = vst [vmem:[%s235 + $0x3c] sm:$0xf] %v2061
      %2126 = vst [vmem:[%s235 + $0x40] sm:$0xf] %v2062
      %2127 = vst [vmem:[%s235 + $0x44] sm:$0xf] %v2063
      %2128 = vst [vmem:[%s235 + $0x48] sm:$0xf] %v2064
      %2129 = vst [vmem:[%s235 + $0x4c] sm:$0xf] %v2065
      %2130 = vst [vmem:[%s235 + $0x50] sm:$0xf] %v2066
      %2131 = vst [vmem:[%s235 + $0x54] sm:$0xf] %v2067
      %2132 = vst [vmem:[%s235 + $0x58] sm:$0xf] %v2068
      %2133 = vst [vmem:[%s235 + $0x5c] sm:$0xf] %v2069
      %2134 = vst [vmem:[%s235 + $0x60] sm:$0xf] %v2070
      %2135 = vst [vmem:[%s235 + $0x64] sm:$0xf] %v2071
      %2136 = vst [vmem:[%s235 + $0x68] sm:$0xf] %v2072
      %2137 = vst [vmem:[%s235 + $0x6c] sm:$0xf] %v2073
      %2138 = vst [vmem:[%s235 + $0x70] sm:$0xf] %v2074
      %2139 = vst [vmem:[%s235 + $0x74] sm:$0xf] %v2075
      %2140 = vst [vmem:[%s235 + $0x78] sm:$0xf] %v2076
      %2141 = vst [vmem:[%s235 + $0x7c] sm:$0xf] %v2077
      %v2142 = vadd.f32 %v1950, %v1952
      %v2143 = vadd.f32 %v2142, %v1954
      %v2144 = vadd.f32 %v2143, %v1956
      %v2145 = vadd.f32 %v2144, %v1958
      %v2146 = vadd.f32 %v2145, %v1960
      %v2147 = vadd.f32 %v2146, %v1962
      %v2148 = vadd.f32 %v2147, %v1964
      %v2149 = vadd.f32 %v2148, %v1966
      %v2150 = vadd.f32 %v2149, %v1968
      %v2151 = vadd.f32 %v2150, %v1970
      %v2152 = vadd.f32 %v2151, %v1972
      %v2153 = vadd.f32 %v2152, %v1974
      %v2154 = vadd.f32 %v2153, %v1976
      %v2155 = vadd.f32 %v2154, %v1978
      %v2156 = vadd.f32 %v2155, %v1980
      %v2157 = vadd.f32 %v1951, %v1953
      %v2158 = vadd.f32 %v2157, %v1955
      %v2159 = vadd.f32 %v2158, %v1957
      %v2160 = vadd.f32 %v2159, %v1959
      %v2161 = vadd.f32 %v2160, %v1961
      %v2162 = vadd.f32 %v2161, %v1963
      %v2163 = vadd.f32 %v2162, %v1965
      %v2164 = vadd.f32 %v2163, %v1967
      %v2165 = vadd.f32 %v2164, %v1969
      %v2166 = vadd.f32 %v2165, %v1971
      %v2167 = vadd.f32 %v2166, %v1973
      %v2168 = vadd.f32 %v2167, %v1975
      %v2169 = vadd.f32 %v2168, %v1977
      %v2170 = vadd.f32 %v2169, %v1979
      %v2171 = vadd.f32 %v2170, %v1981
      %v2172 = vmul.f32 %v1950, %v1950
      %v2173 = vmul.f32 %v1951, %v1951
      %v2174 = vmul.f32 %v1952, %v1952
      %v2175 = vmul.f32 %v1953, %v1953
      %v2176 = vmul.f32 %v1954, %v1954
      %v2177 = vmul.f32 %v1955, %v1955
      %v2178 = vmul.f32 %v1956, %v1956
      %v2179 = vmul.f32 %v1957, %v1957
      %v2180 = vmul.f32 %v1958, %v1958
      %v2181 = vmul.f32 %v1959, %v1959
      %v2182 = vmul.f32 %v1960, %v1960
      %v2183 = vmul.f32 %v1961, %v1961
      %v2184 = vmul.f32 %v1962, %v1962
      %v2185 = vmul.f32 %v1963, %v1963
      %v2186 = vmul.f32 %v1964, %v1964
      %v2187 = vmul.f32 %v1965, %v1965
      %v2188 = vmul.f32 %v1966, %v1966
      %v2189 = vmul.f32 %v1967, %v1967
      %v2190 = vmul.f32 %v1968, %v1968
      %v2191 = vmul.f32 %v1969, %v1969
      %v2192 = vmul.f32 %v1970, %v1970
      %v2193 = vmul.f32 %v1971, %v1971
      %v2194 = vmul.f32 %v1972, %v1972
      %v2195 = vmul.f32 %v1973, %v1973
      %v2196 = vmul.f32 %v1974, %v1974
      %v2197 = vmul.f32 %v1975, %v1975
      %v2198 = vmul.f32 %v1976, %v1976
      %v2199 = vmul.f32 %v1977, %v1977
      %v2200 = vmul.f32 %v1978, %v1978
      %v2201 = vmul.f32 %v1979, %v1979
      %v2202 = vmul.f32 %v1980, %v1980
      %v2203 = vmul.f32 %v1981, %v1981
      %v2204 = vadd.f32 %v2172, %v2174
      %v2205 = vadd.f32 %v2204, %v2176
      %v2206 = vadd.f32 %v2205, %v2178
      %v2207 = vadd.f32 %v2206, %v2180
      %v2208 = vadd.f32 %v2207, %v2182
      %v2209 = vadd.f32 %v2208, %v2184
      %v2210 = vadd.f32 %v2209, %v2186
      %v2211 = vadd.f32 %v2210, %v2188
      %v2212 = vadd.f32 %v2211, %v2190
      %v2213 = vadd.f32 %v2212, %v2192
      %v2214 = vadd.f32 %v2213, %v2194
      %v2215 = vadd.f32 %v2214, %v2196
      %v2216 = vadd.f32 %v2215, %v2198
      %v2217 = vadd.f32 %v2216, %v2200
      %v2218 = vadd.f32 %v2217, %v2202
      %v2219 = vadd.f32 %v2173, %v2175
      %v2220 = vadd.f32 %v2219, %v2177
      %v2221 = vadd.f32 %v2220, %v2179
      %v2222 = vadd.f32 %v2221, %v2181
      %v2223 = vadd.f32 %v2222, %v2183
      %v2224 = vadd.f32 %v2223, %v2185
      %v2225 = vadd.f32 %v2224, %v2187
      %v2226 = vadd.f32 %v2225, %v2189
      %v2227 = vadd.f32 %v2226, %v2191
      %v2228 = vadd.f32 %v2227, %v2193
      %v2229 = vadd.f32 %v2228, %v2195
      %v2230 = vadd.f32 %v2229, %v2197
      %v2231 = vadd.f32 %v2230, %v2199
      %v2232 = vadd.f32 %v2231, %v2201
      %v2233 = vadd.f32 %v2232, %v2203
      %v2234 = vadd.f32 %v2156, %v2171
      %v2235 = vrot.slane %v2234, 4
      %v2236 = vadd.f32 %v2234, %v2235
      %v2237 = vrot.slane %v2236, 2
      %v2238 = vadd.f32 %v2236, %v2237
      %v2239 = vrot.slane %v2238, 1
      %v2240 = vadd.f32 %v2238, %v2239
      %2241 = vst [vmem:[%s238] sm:$0x1] %v2240
      %v2242 = vadd.f32 %v2218, %v2233
      %v2243 = vrot.slane %v2242, 4
      %v2244 = vadd.f32 %v2242, %v2243
      %v2245 = vrot.slane %v2244, 2
      %v2246 = vadd.f32 %v2244, %v2245
      %v2247 = vrot.slane %v2246, 1
      %v2248 = vadd.f32 %v2246, %v2247
      %2249 = vst [vmem:[%s241] sm:$0x1] %v2248
      %p2250 = scmp.lt.s32.totalorder %s17, 1
      %s2251 = scalar_select %p2250, %s17, 1
      %s2252 = smul.addr %s2251, 32
      %s2253 = smul.addr %s2252, 4
      %s2254 = scalar_lea.vmem %s3, %s2253
      %p2255 = scmp.lt.s32.totalorder %s17, 1
      %s2256 = scalar_select %p2255, %s17, 1
      %s2257 = scalar_lea.vmem %s4, %s2256
      %p2258 = scmp.lt.s32.totalorder %s17, 1
      %s2259 = scalar_select %p2258, %s17, 1
      %s2260 = scalar_lea.vmem %s5, %s2259
      // Predicated region
      $region33: #{dwpw_conv.3} parent=31 // pred_check
        %p2261 = pneg %p103
      $region34: #{dwpw_conv.3} parent=31 // pred_check_branch
        %2263 = sbr.rel (%p2261) target = $region36
      $region35: #{dwpw_conv.3} parent=31 // pred_region
        _
      $region36: #{dwpw_conv.3} parent=31 // pred_fallthru
        _
      // Predicated region
      $region37: #{dwpw_conv.3} parent=31 // pred_check
        %p2264 = pneg %p129
      $region38: #{dwpw_conv.3} parent=31 // pred_check_branch
        %2266 = sbr.rel (%p2264) target = $region40
      $region39: #{dwpw_conv.3} parent=31 // pred_region
        _
      $region40: #{dwpw_conv.3} parent=31 // pred_fallthru
        _
      // Predicated region
      $region41: #{dwpw_conv.3} parent=31 // pred_check
        %p2267 = pneg %p155
      $region42: #{dwpw_conv.3} parent=31 // pred_check_branch
        %2269 = sbr.rel (%p2267) target = $region44
      $region43: #{dwpw_conv.3} parent=31 // pred_region
        _
      $region44: #{dwpw_conv.3} parent=31 // pred_fallthru
        _
    $region32: #{dwpw_conv.3} parent=5 // pred_fallthru
      _
    %p2270 = scmp.le.s32.totalorder 2, %s12
    // Predicated region
    $region45: #{dwpw_conv.3} parent=5 // pred_check
      %p2271 = pneg %p2270
    $region46: #{dwpw_conv.3} parent=5 // pred_check_branch
      %2273 = sbr.rel (%p2271) target = $region48
    $region47: #{dwpw_conv.3} parent=5 // pred_region
      %s2274 = ssub.s32 %s12, 2
      // Predicated region
      $region49: #{dwpw_conv.3} parent=47 // pred_check
        %p2275 = pneg %p109
      $region50: #{dwpw_conv.3} parent=47 // pred_check_branch
        %2277 = sbr.rel (%p2275) target = $region52
      $region51: #{dwpw_conv.3} parent=47 // pred_region
        %p2278 = scmp.lt.s32.totalorder %s18, 1
        %s2279 = scalar_select %p2278, %s18, 1
        %s2280 = smul.addr %s2279, 32
        %s2281 = smul.addr %s2280, 4
        %s2282 = scalar_lea.vmem %s3, %s2281
      $region52: #{dwpw_conv.3} parent=47 // pred_fallthru
        _
      // Predicated region
      $region53: #{dwpw_conv.3} parent=47 // pred_check
        %p2283 = pneg %p135
      $region54: #{dwpw_conv.3} parent=47 // pred_check_branch
        %2285 = sbr.rel (%p2283) target = $region56
      $region55: #{dwpw_conv.3} parent=47 // pred_region
        %p2286 = scmp.lt.s32.totalorder %s18, 1
        %s2287 = scalar_select %p2286, %s18, 1
        %s2288 = scalar_lea.vmem %s4, %s2287
      $region56: #{dwpw_conv.3} parent=47 // pred_fallthru
        _
      // Predicated region
      $region57: #{dwpw_conv.3} parent=47 // pred_check
        %p2289 = pneg %p161
      $region58: #{dwpw_conv.3} parent=47 // pred_check_branch
        %2291 = sbr.rel (%p2289) target = $region60
      $region59: #{dwpw_conv.3} parent=47 // pred_region
        %p2292 = scmp.lt.s32.totalorder %s18, 1
        %s2293 = scalar_select %p2292, %s18, 1
        %s2294 = scalar_lea.vmem %s5, %s2293
      $region60: #{dwpw_conv.3} parent=47 // pred_fallthru
        _
    $region48: #{dwpw_conv.3} parent=5 // pred_fallthru
      _
  $region6: #{dwpw_conv.3} parent=0 // loop_footer
    %s16 = sadd.s32 1, %s12
  $region7: #{dwpw_conv.3} parent=0 // loop_footer_branch
    %11 = sbr.rel target = $region3
  $region8: #{dwpw_conv.3} parent=0 // loop_exit
    _

// kernel: dwpw_conv.5
$region0: #{dwpw_conv.5}
  #allocation0 [shape = 'u32[]', space=smem, size = 0x4, offset = 0x4, fixed_abs, tag = 'smem constant byte address 0x4 - core index']
  #allocation1 [shape = 'u32[144,128]{1,0:T(1,128)}', space=vmem, size = 0x12000, scoped, tag = 'internal scratch']
  %s0 = inlined_call_operand.vmem [shape: bf16[512,128], index: 0, kind: input, shape index: {}, may-alias: {0,3}]
  %s1 = inlined_call_operand.vmem [shape: f32[1,128], index: 1, kind: input, shape index: {}]
  %s2 = inlined_call_operand.vmem [shape: f32[1,128], index: 2, kind: input, shape index: {}]
  %s3 = inlined_call_operand.vmem [shape: bf16[512,128], index: 3, kind: output, shape index: {}, may-alias: {0,3}]
  %s4 = sld [smem:[#allocation0]]
  $region45: #{dwpw_conv.5} parent=0
    _
  %s6 = ssub.s32 1, %s4
  %s7 = scalar_select 0, %s6, %s4
  loop: start=0, step=1, limit=4
  $region2: #{dwpw_conv.5} parent=0 // loop_pre_header
    _
  $region3: #{dwpw_conv.5} parent=0 // loop_header
    %s9 = sphi 0, %s13
    %p10 = scmp.ge.s32.totalorder %s9, 4
    %s19 = sphi 0, %s21
    %s22 = sphi 0, %s19
    %s23 = sphi 0, %s22
    %s39 = sphi 0, %s23
    %s43 = sphi 0, %s43
    %s45 = sphi 0, %s43
    %s46 = sphi 0, %s45
    %s60 = sphi 0, %s46
    %s64 = sphi 0, %s64
    %s66 = sphi 0, %s64
    %s67 = sphi 0, %s66
    %s81 = sphi 0, %s67
    %s87 = sphi 0, %s89
    %s90 = sphi 0, %s87
    %s91 = sphi 0, %s90
    %s107 = sphi 0, %s91
  $region4: #{dwpw_conv.5} parent=0 // loop_header_branch
    %12 = sbr.rel (%p10) target = $region8
  $region5: #{dwpw_conv.5} parent=0 // loop_body
    %s14 = ssub.s32 %s9, 1
    %s15 = ssub.s32 %s9, 2
    %s16 = sadd.s32 %s9, 1
    %s17 = ssub.s32 %s9, %s16
    %p18 = scmp.eq.s32.totalorder %s17, 0
    %s20 = sadd.s32 %s19, 1
    %s21 = scalar_select %p18, %s19, %s20
    %p24 = pneg %p18
    %p25 = scmp.eq.s32.totalorder %s9, 1
    %p26 = por %p24, %p25
    %p27 = scmp.ne.s32.totalorder %s19, %s22
    %p28 = scmp.eq.s32.totalorder %s9, 0
    %p29 = por %p27, %p28
    %p30 = scmp.ne.s32.totalorder %s19, %s22
    %p31 = scmp.eq.s32.totalorder %s14, 1
    %p32 = por %p30, %p31
    %p33 = scmp.ne.s32.totalorder %s22, %s23
    %p34 = scmp.eq.s32.totalorder %s14, 0
    %p35 = por %p33, %p34
    %p36 = scmp.ne.s32.totalorder %s22, %s23
    %p37 = scmp.eq.s32.totalorder %s15, 1
    %p38 = por %p36, %p37
    %p40 = scmp.ne.s32.totalorder %s23, %s39
    %p41 = scmp.eq.s32.totalorder %s15, 0
    %p42 = por %p40, %p41
    %s44 = sadd.s32 %s43, 1
    %p47 = scmp.eq.s32.totalorder %s9, 1
    %p48 = scmp.ne.s32.totalorder %s43, %s45
    %p49 = scmp.eq.s32.totalorder %s9, 0
    %p50 = por %p48, %p49
    %p51 = scmp.ne.s32.totalorder %s43, %s45
    %p52 = scmp.eq.s32.totalorder %s14, 1
    %p53 = por %p51, %p52
    %p54 = scmp.ne.s32.totalorder %s45, %s46
    %p55 = scmp.eq.s32.totalorder %s14, 0
    %p56 = por %p54, %p55
    %p57 = scmp.ne.s32.totalorder %s45, %s46
    %p58 = scmp.eq.s32.totalorder %s15, 1
    %p59 = por %p57, %p58
    %p61 = scmp.ne.s32.totalorder %s46, %s60
    %p62 = scmp.eq.s32.totalorder %s15, 0
    %p63 = por %p61, %p62
    %s65 = sadd.s32 %s64, 1
    %p68 = scmp.eq.s32.totalorder %s9, 1
    %p69 = scmp.ne.s32.totalorder %s64, %s66
    %p70 = scmp.eq.s32.totalorder %s9, 0
    %p71 = por %p69, %p70
    %p72 = scmp.ne.s32.totalorder %s64, %s66
    %p73 = scmp.eq.s32.totalorder %s14, 1
    %p74 = por %p72, %p73
    %p75 = scmp.ne.s32.totalorder %s66, %s67
    %p76 = scmp.eq.s32.totalorder %s14, 0
    %p77 = por %p75, %p76
    %p78 = scmp.ne.s32.totalorder %s66, %s67
    %p79 = scmp.eq.s32.totalorder %s15, 1
    %p80 = por %p78, %p79
    %p82 = scmp.ne.s32.totalorder %s67, %s81
    %p83 = scmp.eq.s32.totalorder %s15, 0
    %p84 = por %p82, %p83
    %s85 = ssub.s32 %s9, %s16
    %p86 = scmp.eq.s32.totalorder %s85, 0
    %s88 = sadd.s32 %s87, 1
    %s89 = scalar_select %p86, %s87, %s88
    %p92 = pneg %p86
    %p93 = scmp.eq.s32.totalorder %s9, 1
    %p94 = por %p92, %p93
    %p95 = scmp.ne.s32.totalorder %s87, %s90
    %p96 = scmp.eq.s32.totalorder %s9, 0
    %p97 = por %p95, %p96
    %p98 = scmp.ne.s32.totalorder %s87, %s90
    %p99 = scmp.eq.s32.totalorder %s14, 1
    %p100 = por %p98, %p99
    %p101 = scmp.ne.s32.totalorder %s90, %s91
    %p102 = scmp.eq.s32.totalorder %s14, 0
    %p103 = por %p101, %p102
    %p104 = scmp.ne.s32.totalorder %s90, %s91
    %p105 = scmp.eq.s32.totalorder %s15, 1
    %p106 = por %p104, %p105
    %p108 = scmp.ne.s32.totalorder %s91, %s107
    %p109 = scmp.eq.s32.totalorder %s15, 0
    %p110 = por %p108, %p109
    %p111 = scmp.le.s32.totalorder 1, %s9
    %p112 = scmp.lt.s32.totalorder %s9, 3
    %p113 = pnand %p111, %p112
    %p114 = pneg %p113
    // Predicated region
    $region9: #{dwpw_conv.5} parent=5 // pred_check
      _
    $region10: #{dwpw_conv.5} parent=5 // pred_check_branch
      %116 = sbr.rel (%p113) target = $region12
    $region11: #{dwpw_conv.5} parent=5 // pred_region
      %s117 = ssub.s32 %s9, 1
      // Predicated region
      $region13: #{dwpw_conv.5} parent=11 // pred_check
        %p118 = pneg %p56
      $region14: #{dwpw_conv.5} parent=11 // pred_check_branch
        %120 = sbr.rel (%p118) target = $region16
      $region15: #{dwpw_conv.5} parent=11 // pred_region
        _
      $region16: #{dwpw_conv.5} parent=11 // pred_fallthru
        _
      // Predicated region
      $region17: #{dwpw_conv.5} parent=11 // pred_check
        %p121 = pneg %p77
      $region18: #{dwpw_conv.5} parent=11 // pred_check_branch
        %123 = sbr.rel (%p121) target = $region20
      $region19: #{dwpw_conv.5} parent=11 // pred_region
        _
      $region20: #{dwpw_conv.5} parent=11 // pred_fallthru
        _
    $region12: #{dwpw_conv.5} parent=5 // pred_fallthru
      _
    %p124 = scmp.lt.s32.totalorder %s9, 2
    // Predicated region
    $region21: #{dwpw_conv.5} parent=5 // pred_check
      %p125 = pneg %p124
    $region22: #{dwpw_conv.5} parent=5 // pred_check_branch
      %127 = sbr.rel (%p125) target = $region24
    $region23: #{dwpw_conv.5} parent=5 // pred_region
      // Predicated region
      $region25: #{dwpw_conv.5} parent=23 // pred_check
        %p128 = pneg %p29
      $region26: #{dwpw_conv.5} parent=23 // pred_check_branch
        %130 = sbr.rel (%p128) target = $region28
      $region27: #{dwpw_conv.5} parent=23 // pred_region
        %s131 = smul.u32 32, %s9
        %p132 = scmp.lt.s32.totalorder %s131, 63
        %s133 = scalar_select %p132, %s131, 63
        %s134 = smul.addr %s133, 4
        %s135 = scalar_lea.vmem %s0, %s134
        %s136 = smul.u32 32, %s9
      $region28: #{dwpw_conv.5} parent=23 // pred_fallthru
        _
    $region24: #{dwpw_conv.5} parent=5 // pred_fallthru
      _
    %p137 = scmp.le.s32.totalorder 1, %s9
    %p138 = scmp.lt.s32.totalorder %s9, 3
    %p139 = pnand %p137, %p138
    %p140 = pneg %p139
    // Predicated region
    $region29: #{dwpw_conv.5} parent=5 // pred_check
      _
    $region30: #{dwpw_conv.5} parent=5 // pred_check_branch
      %142 = sbr.rel (%p139) target = $region32
    $region31: #{dwpw_conv.5} parent=5 // pred_region
      %s143 = ssub.s32 %s9, 1
      %s144 = smul.u32 32, %s14
      %p145 = scmp.lt.s32.totalorder %s144, 63
      %s146 = scalar_select %p145, %s144, 63
      %s147 = smul.addr %s146, 4
      %s148 = scalar_lea.vmem %s0, %s147
      %p149 = pneg %p35
      %p150 = pneg %p32
      %p151 = pneg %p56
      %p152 = pneg %p53
      %p153 = pneg %p77
      %p154 = pneg %p74
      %p155 = pneg %p103
      %p156 = pneg %p100
      %s157 = smul.u32 32, %s14
      %p158 = scmp.lt.s32.totalorder %s157, 63
      %s159 = scalar_select %p158, %s157, 63
      %s160 = smul.addr %s159, 4
      %s161 = scalar_lea.vmem %s3, %s160
      %s162 = smul.u32 32, %s14
      %p163 = scmp.lt.s32.totalorder %s162, 63
      %s164 = scalar_select %p163, %s162, 63
      %s165 = smul.addr %s164, 4
      %s166 = scalar_lea.vmem %s0, %s165
      %s167 = smul.u32 32, %s14
      %s168 = smul.u32 32, %s14
      %p169 = scmp.lt.s32.totalorder %s168, 63
      %s170 = scalar_select %p169, %s168, 63
      %s171 = smul.addr %s170, 4
      %s172 = scalar_lea.vmem %s3, %s171
      %s173 = smul.u32 32, %s14
      %v174 = vld [vmem:[%s166] sm:$0xf]
      %v175 = vld [vmem:[%s166 + $0x4] sm:$0xf]
      %v176 = vld [vmem:[%s166 + $0x8] sm:$0xf]
      %v177 = vld [vmem:[%s166 + $0xc] sm:$0xf]
      %v178 = vld [vmem:[%s166 + $0x10] sm:$0xf]
      %v179 = vld [vmem:[%s166 + $0x14] sm:$0xf]
      %v180 = vld [vmem:[%s166 + $0x18] sm:$0xf]
      %v181 = vld [vmem:[%s166 + $0x1c] sm:$0xf]
      %v182 = vld [vmem:[%s166 + $0x20] sm:$0xf]
      %v183 = vld [vmem:[%s166 + $0x24] sm:$0xf]
      %v184 = vld [vmem:[%s166 + $0x28] sm:$0xf]
      %v185 = vld [vmem:[%s166 + $0x2c] sm:$0xf]
      %v186 = vld [vmem:[%s166 + $0x30] sm:$0xf]
      %v187 = vld [vmem:[%s166 + $0x34] sm:$0xf]
      %v188 = vld [vmem:[%s166 + $0x38] sm:$0xf]
      %v189 = vld [vmem:[%s166 + $0x3c] sm:$0xf]
      %v190 = vld [vmem:[%s166 + $0x40] sm:$0xf]
      %v191 = vld [vmem:[%s166 + $0x44] sm:$0xf]
      %v192 = vld [vmem:[%s166 + $0x48] sm:$0xf]
      %v193 = vld [vmem:[%s166 + $0x4c] sm:$0xf]
      %v194 = vld [vmem:[%s166 + $0x50] sm:$0xf]
      %v195 = vld [vmem:[%s166 + $0x54] sm:$0xf]
      %v196 = vld [vmem:[%s166 + $0x58] sm:$0xf]
      %v197 = vld [vmem:[%s166 + $0x5c] sm:$0xf]
      %v198 = vld [vmem:[%s166 + $0x60] sm:$0xf]
      %v199 = vld [vmem:[%s166 + $0x64] sm:$0xf]
      %v200 = vld [vmem:[%s166 + $0x68] sm:$0xf]
      %v201 = vld [vmem:[%s166 + $0x6c] sm:$0xf]
      %v202 = vld [vmem:[%s166 + $0x70] sm:$0xf]
      %v203 = vld [vmem:[%s166 + $0x74] sm:$0xf]
      %v204 = vld [vmem:[%s166 + $0x78] sm:$0xf]
      %v205 = vld [vmem:[%s166 + $0x7c] sm:$0xf]
      %v206 = vunpack.c.l.bf16 %v174
      %v207 = vunpack.c.l.bf16 %v175
      %v208 = vunpack.c.l.bf16 %v176
      %v209 = vunpack.c.l.bf16 %v177
      %v210 = vunpack.c.l.bf16 %v178
      %v211 = vunpack.c.l.bf16 %v179
      %v212 = vunpack.c.l.bf16 %v180
      %v213 = vunpack.c.l.bf16 %v181
      %v214 = vunpack.c.l.bf16 %v182
      %v215 = vunpack.c.l.bf16 %v183
      %v216 = vunpack.c.l.bf16 %v184
      %v217 = vunpack.c.l.bf16 %v185
      %v218 = vunpack.c.l.bf16 %v186
      %v219 = vunpack.c.l.bf16 %v187
      %v220 = vunpack.c.l.bf16 %v188
      %v221 = vunpack.c.l.bf16 %v189
      %v222 = vunpack.c.l.bf16 %v190
      %v223 = vunpack.c.l.bf16 %v191
      %v224 = vunpack.c.l.bf16 %v192
      %v225 = vunpack.c.l.bf16 %v193
      %v226 = vunpack.c.l.bf16 %v194
      %v227 = vunpack.c.l.bf16 %v195
      %v228 = vunpack.c.l.bf16 %v196
      %v229 = vunpack.c.l.bf16 %v197
      %v230 = vunpack.c.l.bf16 %v198
      %v231 = vunpack.c.l.bf16 %v199
      %v232 = vunpack.c.l.bf16 %v200
      %v233 = vunpack.c.l.bf16 %v201
      %v234 = vunpack.c.l.bf16 %v202
      %v235 = vunpack.c.l.bf16 %v203
      %v236 = vunpack.c.l.bf16 %v204
      %v237 = vunpack.c.l.bf16 %v205
      %v238 = vld [vmem:[%s1] sm:$0x1]
      %v240 = vlaneseq
      %v241 = vshrl.u32 %v240, 7
      %v242 = vsub.s32 0, %v241
      %v243 = vrot.slane %v238, %v242
      %v245 = vmul.f32 %v206, %v243
      %v246 = vmul.f32 %v207, %v243
      %v247 = vmul.f32 %v208, %v243
      %v248 = vmul.f32 %v209, %v243
      %v249 = vmul.f32 %v210, %v243
      %v250 = vmul.f32 %v211, %v243
      %v251 = vmul.f32 %v212, %v243
      %v252 = vmul.f32 %v213, %v243
      %v253 = vmul.f32 %v214, %v243
      %v254 = vmul.f32 %v215, %v243
      %v255 = vmul.f32 %v216, %v243
      %v256 = vmul.f32 %v217, %v243
      %v257 = vmul.f32 %v218, %v243
      %v258 = vmul.f32 %v219, %v243
      %v259 = vmul.f32 %v220, %v243
      %v260 = vmul.f32 %v221, %v243
      %v261 = vmul.f32 %v222, %v243
      %v262 = vmul.f32 %v223, %v243
      %v263 = vmul.f32 %v224, %v243
      %v264 = vmul.f32 %v225, %v243
      %v265 = vmul.f32 %v226, %v243
      %v266 = vmul.f32 %v227, %v243
      %v267 = vmul.f32 %v228, %v243
      %v268 = vmul.f32 %v229, %v243
      %v269 = vmul.f32 %v230, %v243
      %v270 = vmul.f32 %v231, %v243
      %v271 = vmul.f32 %v232, %v243
      %v272 = vmul.f32 %v233, %v243
      %v273 = vmul.f32 %v234, %v243
      %v274 = vmul.f32 %v235, %v243
      %v275 = vmul.f32 %v236, %v243
      %v276 = vmul.f32 %v237, %v243
      %v277 = vld [vmem:[%s2] sm:$0x1]
      %v279 = vlaneseq
      %v280 = vshrl.u32 %v279, 7
      %v281 = vsub.s32 0, %v280
      %v282 = vrot.slane %v277, %v281
      %v284 = vadd.f32 %v245, %v282
      %v285 = vadd.f32 %v246, %v282
      %v286 = vadd.f32 %v247, %v282
      %v287 = vadd.f32 %v248, %v282
      %v288 = vadd.f32 %v249, %v282
      %v289 = vadd.f32 %v250, %v282
      %v290 = vadd.f32 %v251, %v282
      %v291 = vadd.f32 %v252, %v282
      %v292 = vadd.f32 %v253, %v282
      %v293 = vadd.f32 %v254, %v282
      %v294 = vadd.f32 %v255, %v282
      %v295 = vadd.f32 %v256, %v282
      %v296 = vadd.f32 %v257, %v282
      %v297 = vadd.f32 %v258, %v282
      %v298 = vadd.f32 %v259, %v282
      %v299 = vadd.f32 %v260, %v282
      %v300 = vadd.f32 %v261, %v282
      %v301 = vadd.f32 %v262, %v282
      %v302 = vadd.f32 %v263, %v282
      %v303 = vadd.f32 %v264, %v282
      %v304 = vadd.f32 %v265, %v282
      %v305 = vadd.f32 %v266, %v282
      %v306 = vadd.f32 %v267, %v282
      %v307 = vadd.f32 %v268, %v282
      %v308 = vadd.f32 %v269, %v282
      %v309 = vadd.f32 %v270, %v282
      %v310 = vadd.f32 %v271, %v282
      %v311 = vadd.f32 %v272, %v282
      %v312 = vadd.f32 %v273, %v282
      %v313 = vadd.f32 %v274, %v282
      %v314 = vadd.f32 %v275, %v282
      %v315 = vadd.f32 %v276, %v282
      %v316 = vmul.f32 %v284, 0.5
      %v317 = vmul.f32 %v285, 0.5
      %v318 = vmul.f32 %v286, 0.5
      %v319 = vmul.f32 %v287, 0.5
      %v320 = vmul.f32 %v288, 0.5
      %v321 = vmul.f32 %v289, 0.5
      %v322 = vmul.f32 %v290, 0.5
      %v323 = vmul.f32 %v291, 0.5
      %v324 = vmul.f32 %v292, 0.5
      %v325 = vmul.f32 %v293, 0.5
      %v326 = vmul.f32 %v294, 0.5
      %v327 = vmul.f32 %v295, 0.5
      %v328 = vmul.f32 %v296, 0.5
      %v329 = vmul.f32 %v297, 0.5
      %v330 = vmul.f32 %v298, 0.5
      %v331 = vmul.f32 %v299, 0.5
      %v332 = vmul.f32 %v300, 0.5
      %v333 = vmul.f32 %v301, 0.5
      %v334 = vmul.f32 %v302, 0.5
      %v335 = vmul.f32 %v303, 0.5
      %v336 = vmul.f32 %v304, 0.5
      %v337 = vmul.f32 %v305, 0.5
      %v338 = vmul.f32 %v306, 0.5
      %v339 = vmul.f32 %v307, 0.5
      %v340 = vmul.f32 %v308, 0.5
      %v341 = vmul.f32 %v309, 0.5
      %v342 = vmul.f32 %v310, 0.5
      %v343 = vmul.f32 %v311, 0.5
      %v344 = vmul.f32 %v312, 0.5
      %v345 = vmul.f32 %v313, 0.5
      %v346 = vmul.f32 %v314, 0.5
      %v347 = vmul.f32 %v315, 0.5
      %v348 = vmul.f32 %v284, 0.70710677
      %v349 = vmul.f32 %v285, 0.70710677
      %v350 = vmul.f32 %v286, 0.70710677
      %v351 = vmul.f32 %v287, 0.70710677
      %v352 = vmul.f32 %v288, 0.70710677
      %v353 = vmul.f32 %v289, 0.70710677
      %v354 = vmul.f32 %v290, 0.70710677
      %v355 = vmul.f32 %v291, 0.70710677
      %v356 = vmul.f32 %v292, 0.70710677
      %v357 = vmul.f32 %v293, 0.70710677
      %v358 = vmul.f32 %v294, 0.70710677
      %v359 = vmul.f32 %v295, 0.70710677
      %v360 = vmul.f32 %v296, 0.70710677
      %v361 = vmul.f32 %v297, 0.70710677
      %v362 = vmul.f32 %v298, 0.70710677
      %v363 = vmul.f32 %v299, 0.70710677
      %v364 = vmul.f32 %v300, 0.70710677
      %v365 = vmul.f32 %v301, 0.70710677
      %v366 = vmul.f32 %v302, 0.70710677
      %v367 = vmul.f32 %v303, 0.70710677
      %v368 = vmul.f32 %v304, 0.70710677
      %v369 = vmul.f32 %v305, 0.70710677
      %v370 = vmul.f32 %v306, 0.70710677
      %v371 = vmul.f32 %v307, 0.70710677
      %v372 = vmul.f32 %v308, 0.70710677
      %v373 = vmul.f32 %v309, 0.70710677
      %v374 = vmul.f32 %v310, 0.70710677
      %v375 = vmul.f32 %v311, 0.70710677
      %v376 = vmul.f32 %v312, 0.70710677
      %v377 = vmul.f32 %v313, 0.70710677
      %v378 = vmul.f32 %v314, 0.70710677
      %v379 = vmul.f32 %v315, 0.70710677
      %v380 = vand.u32 2147483647, %v348
      %v381 = vand.u32 2147483647, %v349
      %v382 = vand.u32 2147483647, %v350
      %v383 = vand.u32 2147483647, %v351
      %v384 = vand.u32 2147483647, %v352
      %v385 = vand.u32 2147483647, %v353
      %v386 = vand.u32 2147483647, %v354
      %v387 = vand.u32 2147483647, %v355
      %v388 = vand.u32 2147483647, %v356
      %v389 = vand.u32 2147483647, %v357
      %v390 = vand.u32 2147483647, %v358
      %v391 = vand.u32 2147483647, %v359
      %v392 = vand.u32 2147483647, %v360
      %v393 = vand.u32 2147483647, %v361
      %v394 = vand.u32 2147483647, %v362
      %v395 = vand.u32 2147483647, %v363
      %v396 = vand.u32 2147483647, %v364
      %v397 = vand.u32 2147483647, %v365
      %v398 = vand.u32 2147483647, %v366
      %v399 = vand.u32 2147483647, %v367
      %v400 = vand.u32 2147483647, %v368
      %v401 = vand.u32 2147483647, %v369
      %v402 = vand.u32 2147483647, %v370
      %v403 = vand.u32 2147483647, %v371
      %v404 = vand.u32 2147483647, %v372
      %v405 = vand.u32 2147483647, %v373
      %v406 = vand.u32 2147483647, %v374
      %v407 = vand.u32 2147483647, %v375
      %v408 = vand.u32 2147483647, %v376
      %v409 = vand.u32 2147483647, %v377
      %v410 = vand.u32 2147483647, %v378
      %v411 = vand.u32 2147483647, %v379
      %v412 = vmul.f32 %v380, 0.3275911
      %v413 = vmul.f32 %v381, 0.3275911
      %v414 = vmul.f32 %v382, 0.3275911
      %v415 = vmul.f32 %v383, 0.3275911
      %v416 = vmul.f32 %v384, 0.3275911
      %v417 = vmul.f32 %v385, 0.3275911
      %v418 = vmul.f32 %v386, 0.3275911
      %v419 = vmul.f32 %v387, 0.3275911
      %v420 = vmul.f32 %v388, 0.3275911
      %v421 = vmul.f32 %v389, 0.3275911
      %v422 = vmul.f32 %v390, 0.3275911
      %v423 = vmul.f32 %v391, 0.3275911
      %v424 = vmul.f32 %v392, 0.3275911
      %v425 = vmul.f32 %v393, 0.3275911
      %v426 = vmul.f32 %v394, 0.3275911
      %v427 = vmul.f32 %v395, 0.3275911
      %v428 = vmul.f32 %v396, 0.3275911
      %v429 = vmul.f32 %v397, 0.3275911
      %v430 = vmul.f32 %v398, 0.3275911
      %v431 = vmul.f32 %v399, 0.3275911
      %v432 = vmul.f32 %v400, 0.3275911
      %v433 = vmul.f32 %v401, 0.3275911
      %v434 = vmul.f32 %v402, 0.3275911
      %v435 = vmul.f32 %v403, 0.3275911
      %v436 = vmul.f32 %v404, 0.3275911
      %v437 = vmul.f32 %v405, 0.3275911
      %v438 = vmul.f32 %v406, 0.3275911
      %v439 = vmul.f32 %v407, 0.3275911
      %v440 = vmul.f32 %v408, 0.3275911
      %v441 = vmul.f32 %v409, 0.3275911
      %v442 = vmul.f32 %v410, 0.3275911
      %v443 = vmul.f32 %v411, 0.3275911
      %v444 = vadd.f32 %v412, 1.0
      %v445 = vadd.f32 %v413, 1.0
      %v446 = vadd.f32 %v414, 1.0
      %v447 = vadd.f32 %v415, 1.0
      %v448 = vadd.f32 %v416, 1.0
      %v449 = vadd.f32 %v417, 1.0
      %v450 = vadd.f32 %v418, 1.0
      %v451 = vadd.f32 %v419, 1.0
      %v452 = vadd.f32 %v420, 1.0
      %v453 = vadd.f32 %v421, 1.0
      %v454 = vadd.f32 %v422, 1.0
      %v455 = vadd.f32 %v423, 1.0
      %v456 = vadd.f32 %v424, 1.0
      %v457 = vadd.f32 %v425, 1.0
      %v458 = vadd.f32 %v426, 1.0
      %v459 = vadd.f32 %v427, 1.0
      %v460 = vadd.f32 %v428, 1.0
      %v461 = vadd.f32 %v429, 1.0
      %v462 = vadd.f32 %v430, 1.0
      %v463 = vadd.f32 %v431, 1.0
      %v464 = vadd.f32 %v432, 1.0
      %v465 = vadd.f32 %v433, 1.0
      %v466 = vadd.f32 %v434, 1.0
      %v467 = vadd.f32 %v435, 1.0
      %v468 = vadd.f32 %v436, 1.0
      %v469 = vadd.f32 %v437, 1.0
      %v470 = vadd.f32 %v438, 1.0
      %v471 = vadd.f32 %v439, 1.0
      %v472 = vadd.f32 %v440, 1.0
      %v473 = vadd.f32 %v441, 1.0
      %v474 = vadd.f32 %v442, 1.0
      %v475 = vadd.f32 %v443, 1.0
      %v476 = vrcp.pop %v444
      %v477 = vmul.f32 1.0, %v476
      %v478 = vrcp.pop %v445
      %v479 = vmul.f32 1.0, %v478
      %v480 = vrcp.pop %v446
      %v481 = vmul.f32 1.0, %v480
      %v482 = vrcp.pop %v447
      %v483 = vmul.f32 1.0, %v482
      %v484 = vrcp.pop %v448
      %v485 = vmul.f32 1.0, %v484
      %v486 = vrcp.pop %v449
      %v487 = vmul.f32 1.0, %v486
      %v488 = vrcp.pop %v450
      %v489 = vmul.f32 1.0, %v488
      %v490 = vrcp.pop %v451
      %v491 = vmul.f32 1.0, %v490
      %v492 = vrcp.pop %v452
      %v493 = vmul.f32 1.0, %v492
      %v494 = vrcp.pop %v453
      %v495 = vmul.f32 1.0, %v494
      %v496 = vrcp.pop %v454
      %v497 = vmul.f32 1.0, %v496
      %v498 = vrcp.pop %v455
      %v499 = vmul.f32 1.0, %v498
      %v500 = vrcp.pop %v456
      %v501 = vmul.f32 1.0, %v500
      %v502 = vrcp.pop %v457
      %v503 = vmul.f32 1.0, %v502
      %v504 = vrcp.pop %v458
      %v505 = vmul.f32 1.0, %v504
      %v506 = vrcp.pop %v459
      %v507 = vmul.f32 1.0, %v506
      %v508 = vrcp.pop %v460
      %v509 = vmul.f32 1.0, %v508
      %v510 = vrcp.pop %v461
      %v511 = vmul.f32 1.0, %v510
      %v512 = vrcp.pop %v462
      %v513 = vmul.f32 1.0, %v512
      %v514 = vrcp.pop %v463
      %v515 = vmul.f32 1.0, %v514
      %v516 = vrcp.pop %v464
      %v517 = vmul.f32 1.0, %v516
      %v518 = vrcp.pop %v465
      %v519 = vmul.f32 1.0, %v518
      %v520 = vrcp.pop %v466
      %v521 = vmul.f32 1.0, %v520
      %v522 = vrcp.pop %v467
      %v523 = vmul.f32 1.0, %v522
      %v524 = vrcp.pop %v468
      %v525 = vmul.f32 1.0, %v524
      %v526 = vrcp.pop %v469
      %v527 = vmul.f32 1.0, %v526
      %v528 = vrcp.pop %v470
      %v529 = vmul.f32 1.0, %v528
      %v530 = vrcp.pop %v471
      %v531 = vmul.f32 1.0, %v530
      %v532 = vrcp.pop %v472
      %v533 = vmul.f32 1.0, %v532
      %v534 = vrcp.pop %v473
      %v535 = vmul.f32 1.0, %v534
      %v536 = vrcp.pop %v474
      %v537 = vmul.f32 1.0, %v536
      %v538 = vrcp.pop %v475
      %v539 = vmul.f32 1.0, %v538
      %v540 = vmul.f32 %v477, 1.0614054
      %v541 = vmul.f32 %v479, 1.0614054
      %v542 = vmul.f32 %v481, 1.0614054
      %v543 = vmul.f32 %v483, 1.0614054
      %v544 = vmul.f32 %v485, 1.0614054
      %v545 = vmul.f32 %v487, 1.0614054
      %v546 = vmul.f32 %v489, 1.0614054
      %v547 = vmul.f32 %v491, 1.0614054
      %v548 = vmul.f32 %v493, 1.0614054
      %v549 = vmul.f32 %v495, 1.0614054
      %v550 = vmul.f32 %v497, 1.0614054
      %v551 = vmul.f32 %v499, 1.0614054
      %v552 = vmul.f32 %v501, 1.0614054
      %v553 = vmul.f32 %v503, 1.0614054
      %v554 = vmul.f32 %v505, 1.0614054
      %v555 = vmul.f32 %v507, 1.0614054
      %v556 = vmul.f32 %v509, 1.0614054
      %v557 = vmul.f32 %v511, 1.0614054
      %v558 = vmul.f32 %v513, 1.0614054
      %v559 = vmul.f32 %v515, 1.0614054
      %v560 = vmul.f32 %v517, 1.0614054
      %v561 = vmul.f32 %v519, 1.0614054
      %v562 = vmul.f32 %v521, 1.0614054
      %v563 = vmul.f32 %v523, 1.0614054
      %v564 = vmul.f32 %v525, 1.0614054
      %v565 = vmul.f32 %v527, 1.0614054
      %v566 = vmul.f32 %v529, 1.0614054
      %v567 = vmul.f32 %v531, 1.0614054
      %v568 = vmul.f32 %v533, 1.0614054
      %v569 = vmul.f32 %v535, 1.0614054
      %v570 = vmul.f32 %v537, 1.0614054
      %v571 = vmul.f32 %v539, 1.0614054
      %v572 = vadd.f32 %v540, -1.4531521
      %v573 = vadd.f32 %v541, -1.4531521
      %v574 = vadd.f32 %v542, -1.4531521
      %v575 = vadd.f32 %v543, -1.4531521
      %v576 = vadd.f32 %v544, -1.4531521
      %v577 = vadd.f32 %v545, -1.4531521
      %v578 = vadd.f32 %v546, -1.4531521
      %v579 = vadd.f32 %v547, -1.4531521
      %v580 = vadd.f32 %v548, -1.4531521
      %v581 = vadd.f32 %v549, -1.4531521
      %v582 = vadd.f32 %v550, -1.4531521
      %v583 = vadd.f32 %v551, -1.4531521
      %v584 = vadd.f32 %v552, -1.4531521
      %v585 = vadd.f32 %v553, -1.4531521
      %v586 = vadd.f32 %v554, -1.4531521
      %v587 = vadd.f32 %v555, -1.4531521
      %v588 = vadd.f32 %v556, -1.4531521
      %v589 = vadd.f32 %v557, -1.4531521
      %v590 = vadd.f32 %v558, -1.4531521
      %v591 = vadd.f32 %v559, -1.4531521
      %v592 = vadd.f32 %v560, -1.4531521
      %v593 = vadd.f32 %v561, -1.4531521
      %v594 = vadd.f32 %v562, -1.4531521
      %v595 = vadd.f32 %v563, -1.4531521
      %v596 = vadd.f32 %v564, -1.4531521
      %v597 = vadd.f32 %v565, -1.4531521
      %v598 = vadd.f32 %v566, -1.4531521
      %v599 = vadd.f32 %v567, -1.4531521
      %v600 = vadd.f32 %v568, -1.4531521
      %v601 = vadd.f32 %v569, -1.4531521
      %v602 = vadd.f32 %v570, -1.4531521
      %v603 = vadd.f32 %v571, -1.4531521
      %v604 = vmul.f32 %v572, %v477
      %v605 = vmul.f32 %v573, %v479
      %v606 = vmul.f32 %v574, %v481
      %v607 = vmul.f32 %v575, %v483
      %v608 = vmul.f32 %v576, %v485
      %v609 = vmul.f32 %v577, %v487
      %v610 = vmul.f32 %v578, %v489
      %v611 = vmul.f32 %v579, %v491
      %v612 = vmul.f32 %v580, %v493
      %v613 = vmul.f32 %v581, %v495
      %v614 = vmul.f32 %v582, %v497
      %v615 = vmul.f32 %v583, %v499
      %v616 = vmul.f32 %v584, %v501
      %v617 = vmul.f32 %v585, %v503
      %v618 = vmul.f32 %v586, %v505
      %v619 = vmul.f32 %v587, %v507
      %v620 = vmul.f32 %v588, %v509
      %v621 = vmul.f32 %v589, %v511
      %v622 = vmul.f32 %v590, %v513
      %v623 = vmul.f32 %v591, %v515
      %v624 = vmul.f32 %v592, %v517
      %v625 = vmul.f32 %v593, %v519
      %v626 = vmul.f32 %v594, %v521
      %v627 = vmul.f32 %v595, %v523
      %v628 = vmul.f32 %v596, %v525
      %v629 = vmul.f32 %v597, %v527
      %v630 = vmul.f32 %v598, %v529
      %v631 = vmul.f32 %v599, %v531
      %v632 = vmul.f32 %v600, %v533
      %v633 = vmul.f32 %v601, %v535
      %v634 = vmul.f32 %v602, %v537
      %v635 = vmul.f32 %v603, %v539
      %v636 = vadd.f32 %v604, 1.4214138
      %v637 = vadd.f32 %v605, 1.4214138
      %v638 = vadd.f32 %v606, 1.4214138
      %v639 = vadd.f32 %v607, 1.4214138
      %v640 = vadd.f32 %v608, 1.4214138
      %v641 = vadd.f32 %v609, 1.4214138
      %v642 = vadd.f32 %v610, 1.4214138
      %v643 = vadd.f32 %v611, 1.4214138
      %v644 = vadd.f32 %v612, 1.4214138
      %v645 = vadd.f32 %v613, 1.4214138
      %v646 = vadd.f32 %v614, 1.4214138
      %v647 = vadd.f32 %v615, 1.4214138
      %v648 = vadd.f32 %v616, 1.4214138
      %v649 = vadd.f32 %v617, 1.4214138
      %v650 = vadd.f32 %v618, 1.4214138
      %v651 = vadd.f32 %v619, 1.4214138
      %v652 = vadd.f32 %v620, 1.4214138
      %v653 = vadd.f32 %v621, 1.4214138
      %v654 = vadd.f32 %v622, 1.4214138
      %v655 = vadd.f32 %v623, 1.4214138
      %v656 = vadd.f32 %v624, 1.4214138
      %v657 = vadd.f32 %v625, 1.4214138
      %v658 = vadd.f32 %v626, 1.4214138
      %v659 = vadd.f32 %v627, 1.4214138
      %v660 = vadd.f32 %v628, 1.4214138
      %v661 = vadd.f32 %v629, 1.4214138
      %v662 = vadd.f32 %v630, 1.4214138
      %v663 = vadd.f32 %v631, 1.4214138
      %v664 = vadd.f32 %v632, 1.4214138
      %v665 = vadd.f32 %v633, 1.4214138
      %v666 = vadd.f32 %v634, 1.4214138
      %v667 = vadd.f32 %v635, 1.4214138
      %v668 = vmul.f32 %v636, %v477
      %v669 = vmul.f32 %v637, %v479
      %v670 = vmul.f32 %v638, %v481
      %v671 = vmul.f32 %v639, %v483
      %v672 = vmul.f32 %v640, %v485
      %v673 = vmul.f32 %v641, %v487
      %v674 = vmul.f32 %v642, %v489
      %v675 = vmul.f32 %v643, %v491
      %v676 = vmul.f32 %v644, %v493
      %v677 = vmul.f32 %v645, %v495
      %v678 = vmul.f32 %v646, %v497
      %v679 = vmul.f32 %v647, %v499
      %v680 = vmul.f32 %v648, %v501
      %v681 = vmul.f32 %v649, %v503
      %v682 = vmul.f32 %v650, %v505
      %v683 = vmul.f32 %v651, %v507
      %v684 = vmul.f32 %v652, %v509
      %v685 = vmul.f32 %v653, %v511
      %v686 = vmul.f32 %v654, %v513
      %v687 = vmul.f32 %v655, %v515
      %v688 = vmul.f32 %v656, %v517
      %v689 = vmul.f32 %v657, %v519
      %v690 = vmul.f32 %v658, %v521
      %v691 = vmul.f32 %v659, %v523
      %v692 = vmul.f32 %v660, %v525
      %v693 = vmul.f32 %v661, %v527
      %v694 = vmul.f32 %v662, %v529
      %v695 = vmul.f32 %v663, %v531
      %v696 = vmul.f32 %v664, %v533
      %v697 = vmul.f32 %v665, %v535
      %v698 = vmul.f32 %v666, %v537
      %v699 = vmul.f32 %v667, %v539
      %v700 = vadd.f32 %v668, -0.28449672
      %v701 = vadd.f32 %v669, -0.28449672
      %v702 = vadd.f32 %v670, -0.28449672
      %v703 = vadd.f32 %v671, -0.28449672
      %v704 = vadd.f32 %v672, -0.28449672
      %v705 = vadd.f32 %v673, -0.28449672
      %v706 = vadd.f32 %v674, -0.28449672
      %v707 = vadd.f32 %v675, -0.28449672
      %v708 = vadd.f32 %v676, -0.28449672
      %v709 = vadd.f32 %v677, -0.28449672
      %v710 = vadd.f32 %v678, -0.28449672
      %v711 = vadd.f32 %v679, -0.28449672
      %v712 = vadd.f32 %v680, -0.28449672
      %v713 = vadd.f32 %v681, -0.28449672
      %v714 = vadd.f32 %v682, -0.28449672
      %v715 = vadd.f32 %v683, -0.28449672
      %v716 = vadd.f32 %v684, -0.28449672
      %v717 = vadd.f32 %v685, -0.28449672
      %v718 = vadd.f32 %v686, -0.28449672
      %v719 = vadd.f32 %v687, -0.28449672
      %v720 = vadd.f32 %v688, -0.28449672
      %v721 = vadd.f32 %v689, -0.28449672
      %v722 = vadd.f32 %v690, -0.28449672
      %v723 = vadd.f32 %v691, -0.28449672
      %v724 = vadd.f32 %v692, -0.28449672
      %v725 = vadd.f32 %v693, -0.28449672
      %v726 = vadd.f32 %v694, -0.28449672
      %v727 = vadd.f32 %v695, -0.28449672
      %v728 = vadd.f32 %v696, -0.28449672
      %v729 = vadd.f32 %v697, -0.28449672
      %v730 = vadd.f32 %v698, -0.28449672
      %v731 = vadd.f32 %v699, -0.28449672
      %v732 = vmul.f32 %v700, %v477
      %v733 = vmul.f32 %v701, %v479
      %v734 = vmul.f32 %v702, %v481
      %v735 = vmul.f32 %v703, %v483
      %v736 = vmul.f32 %v704, %v485
      %v737 = vmul.f32 %v705, %v487
      %v738 = vmul.f32 %v706, %v489
      %v739 = vmul.f32 %v707, %v491
      %v740 = vmul.f32 %v708, %v493
      %v741 = vmul.f32 %v709, %v495
      %v742 = vmul.f32 %v710, %v497
      %v743 = vmul.f32 %v711, %v499
      %v744 = vmul.f32 %v712, %v501
      %v745 = vmul.f32 %v713, %v503
      %v746 = vmul.f32 %v714, %v505
      %v747 = vmul.f32 %v715, %v507
      %v748 = vmul.f32 %v716, %v509
      %v749 = vmul.f32 %v717, %v511
      %v750 = vmul.f32 %v718, %v513
      %v751 = vmul.f32 %v719, %v515
      %v752 = vmul.f32 %v720, %v517
      %v753 = vmul.f32 %v721, %v519
      %v754 = vmul.f32 %v722, %v521
      %v755 = vmul.f32 %v723, %v523
      %v756 = vmul.f32 %v724, %v525
      %v757 = vmul.f32 %v725, %v527
      %v758 = vmul.f32 %v726, %v529
      %v759 = vmul.f32 %v727, %v531
      %v760 = vmul.f32 %v728, %v533
      %v761 = vmul.f32 %v729, %v535
      %v762 = vmul.f32 %v730, %v537
      %v763 = vmul.f32 %v731, %v539
      %v764 = vadd.f32 %v732, 0.2548296
      %v765 = vadd.f32 %v733, 0.2548296
      %v766 = vadd.f32 %v734, 0.2548296
      %v767 = vadd.f32 %v735, 0.2548296
      %v768 = vadd.f32 %v736, 0.2548296
      %v769 = vadd.f32 %v737, 0.2548296
      %v770 = vadd.f32 %v738, 0.2548296
      %v771 = vadd.f32 %v739, 0.2548296
      %v772 = vadd.f32 %v740, 0.2548296
      %v773 = vadd.f32 %v741, 0.2548296
      %v774 = vadd.f32 %v742, 0.2548296
      %v775 = vadd.f32 %v743, 0.2548296
      %v776 = vadd.f32 %v744, 0.2548296
      %v777 = vadd.f32 %v745, 0.2548296
      %v778 = vadd.f32 %v746, 0.2548296
      %v779 = vadd.f32 %v747, 0.2548296
      %v780 = vadd.f32 %v748, 0.2548296
      %v781 = vadd.f32 %v749, 0.2548296
      %v782 = vadd.f32 %v750, 0.2548296
      %v783 = vadd.f32 %v751, 0.2548296
      %v784 = vadd.f32 %v752, 0.2548296
      %v785 = vadd.f32 %v753, 0.2548296
      %v786 = vadd.f32 %v754, 0.2548296
      %v787 = vadd.f32 %v755, 0.2548296
      %v788 = vadd.f32 %v756, 0.2548296
      %v789 = vadd.f32 %v757, 0.2548296
      %v790 = vadd.f32 %v758, 0.2548296
      %v791 = vadd.f32 %v759, 0.2548296
      %v792 = vadd.f32 %v760, 0.2548296
      %v793 = vadd.f32 %v761, 0.2548296
      %v794 = vadd.f32 %v762, 0.2548296
      %v795 = vadd.f32 %v763, 0.2548296
      %v796 = vmul.f32 %v764, %v477
      %v797 = vmul.f32 %v765, %v479
      %v798 = vmul.f32 %v766, %v481
      %v799 = vmul.f32 %v767, %v483
      %v800 = vmul.f32 %v768, %v485
      %v801 = vmul.f32 %v769, %v487
      %v802 = vmul.f32 %v770, %v489
      %v803 = vmul.f32 %v771, %v491
      %v804 = vmul.f32 %v772, %v493
      %v805 = vmul.f32 %v773, %v495
      %v806 = vmul.f32 %v774, %v497
      %v807 = vmul.f32 %v775, %v499
      %v808 = vmul.f32 %v776, %v501
      %v809 = vmul.f32 %v777, %v503
      %v810 = vmul.f32 %v778, %v505
      %v811 = vmul.f32 %v779, %v507
      %v812 = vmul.f32 %v780, %v509
      %v813 = vmul.f32 %v781, %v511
      %v814 = vmul.f32 %v782, %v513
      %v815 = vmul.f32 %v783, %v515
      %v816 = vmul.f32 %v784, %v517
      %v817 = vmul.f32 %v785, %v519
      %v818 = vmul.f32 %v786, %v521
      %v819 = vmul.f32 %v787, %v523
      %v820 = vmul.f32 %v788, %v525
      %v821 = vmul.f32 %v789, %v527
      %v822 = vmul.f32 %v790, %v529
      %v823 = vmul.f32 %v791, %v531
      %v824 = vmul.f32 %v792, %v533
      %v825 = vmul.f32 %v793, %v535
      %v826 = vmul.f32 %v794, %v537
      %v827 = vmul.f32 %v795, %v539
      %v828 = vsub.f32 0.0, %v380
      %v829 = vsub.f32 0.0, %v381
      %v830 = vsub.f32 0.0, %v382
      %v831 = vsub.f32 0.0, %v383
      %v832 = vsub.f32 0.0, %v384
      %v833 = vsub.f32 0.0, %v385
      %v834 = vsub.f32 0.0, %v386
      %v835 = vsub.f32 0.0, %v387
      %v836 = vsub.f32 0.0, %v388
      %v837 = vsub.f32 0.0, %v389
      %v838 = vsub.f32 0.0, %v390
      %v839 = vsub.f32 0.0, %v391
      %v840 = vsub.f32 0.0, %v392
      %v841 = vsub.f32 0.0, %v393
      %v842 = vsub.f32 0.0, %v394
      %v843 = vsub.f32 0.0, %v395
      %v844 = vsub.f32 0.0, %v396
      %v845 = vsub.f32 0.0, %v397
      %v846 = vsub.f32 0.0, %v398
      %v847 = vsub.f32 0.0, %v399
      %v848 = vsub.f32 0.0, %v400
      %v849 = vsub.f32 0.0, %v401
      %v850 = vsub.f32 0.0, %v402
      %v851 = vsub.f32 0.0, %v403
      %v852 = vsub.f32 0.0, %v404
      %v853 = vsub.f32 0.0, %v405
      %v854 = vsub.f32 0.0, %v406
      %v855 = vsub.f32 0.0, %v407
      %v856 = vsub.f32 0.0, %v408
      %v857 = vsub.f32 0.0, %v409
      %v858 = vsub.f32 0.0, %v410
      %v859 = vsub.f32 0.0, %v411
      %v860 = vmul.f32 %v828, %v380
      %v861 = vmul.f32 %v829, %v381
      %v862 = vmul.f32 %v830, %v382
      %v863 = vmul.f32 %v831, %v383
      %v864 = vmul.f32 %v832, %v384
      %v865 = vmul.f32 %v833, %v385
      %v866 = vmul.f32 %v834, %v386
      %v867 = vmul.f32 %v835, %v387
      %v868 = vmul.f32 %v836, %v388
      %v869 = vmul.f32 %v837, %v389
      %v870 = vmul.f32 %v838, %v390
      %v871 = vmul.f32 %v839, %v391
      %v872 = vmul.f32 %v840, %v392
      %v873 = vmul.f32 %v841, %v393
      %v874 = vmul.f32 %v842, %v394
      %v875 = vmul.f32 %v843, %v395
      %v876 = vmul.f32 %v844, %v396
      %v877 = vmul.f32 %v845, %v397
      %v878 = vmul.f32 %v846, %v398
      %v879 = vmul.f32 %v847, %v399
      %v880 = vmul.f32 %v848, %v400
      %v881 = vmul.f32 %v849, %v401
      %v882 = vmul.f32 %v850, %v402
      %v883 = vmul.f32 %v851, %v403
      %v884 = vmul.f32 %v852, %v404
      %v885 = vmul.f32 %v853, %v405
      %v886 = vmul.f32 %v854, %v406
      %v887 = vmul.f32 %v855, %v407
      %v888 = vmul.f32 %v856, %v408
      %v889 = vmul.f32 %v857, %v409
      %v890 = vmul.f32 %v858, %v410
      %v891 = vmul.f32 %v859, %v411
      %v892 = vmul.f32 %v860, 1.442695
      %v893 = vpow.pop %v892
      %v894 = vmul.f32 %v861, 1.442695
      %v895 = vpow.pop %v894
      %v896 = vmul.f32 %v862, 1.442695
      %v897 = vpow.pop %v896
      %v898 = vmul.f32 %v863, 1.442695
      %v899 = vpow.pop %v898
      %v900 = vmul.f32 %v864, 1.442695
      %v901 = vpow.pop %v900
      %v902 = vmul.f32 %v865, 1.442695
      %v903 = vpow.pop %v902
      %v904 = vmul.f32 %v866, 1.442695
      %v905 = vpow.pop %v904
      %v906 = vmul.f32 %v867, 1.442695
      %v907 = vpow.pop %v906
      %v908 = vmul.f32 %v868, 1.442695
      %v909 = vpow.pop %v908
      %v910 = vmul.f32 %v869, 1.442695
      %v911 = vpow.pop %v910
      %v912 = vmul.f32 %v870, 1.442695
      %v913 = vpow.pop %v912
      %v914 = vmul.f32 %v871, 1.442695
      %v915 = vpow.pop %v914
      %v916 = vmul.f32 %v872, 1.442695
      %v917 = vpow.pop %v916
      %v918 = vmul.f32 %v873, 1.442695
      %v919 = vpow.pop %v918
      %v920 = vmul.f32 %v874, 1.442695
      %v921 = vpow.pop %v920
      %v922 = vmul.f32 %v875, 1.442695
      %v923 = vpow.pop %v922
      %v924 = vmul.f32 %v876, 1.442695
      %v925 = vpow.pop %v924
      %v926 = vmul.f32 %v877, 1.442695
      %v927 = vpow.pop %v926
      %v928 = vmul.f32 %v878, 1.442695
      %v929 = vpow.pop %v928
      %v930 = vmul.f32 %v879, 1.442695
      %v931 = vpow.pop %v930
      %v932 = vmul.f32 %v880, 1.442695
      %v933 = vpow.pop %v932
      %v934 = vmul.f32 %v881, 1.442695
      %v935 = vpow.pop %v934
      %v936 = vmul.f32 %v882, 1.442695
      %v937 = vpow.pop %v936
      %v938 = vmul.f32 %v883, 1.442695
      %v939 = vpow.pop %v938
      %v940 = vmul.f32 %v884, 1.442695
      %v941 = vpow.pop %v940
      %v942 = vmul.f32 %v885, 1.442695
      %v943 = vpow.pop %v942
      %v944 = vmul.f32 %v886, 1.442695
      %v945 = vpow.pop %v944
      %v946 = vmul.f32 %v887, 1.442695
      %v947 = vpow.pop %v946
      %v948 = vmul.f32 %v888, 1.442695
      %v949 = vpow.pop %v948
      %v950 = vmul.f32 %v889, 1.442695
      %v951 = vpow.pop %v950
      %v952 = vmul.f32 %v890, 1.442695
      %v953 = vpow.pop %v952
      %v954 = vmul.f32 %v891, 1.442695
      %v955 = vpow.pop %v954
      %v956 = vmul.f32 %v796, %v893
      %v957 = vmul.f32 %v797, %v895
      %v958 = vmul.f32 %v798, %v897
      %v959 = vmul.f32 %v799, %v899
      %v960 = vmul.f32 %v800, %v901
      %v961 = vmul.f32 %v801, %v903
      %v962 = vmul.f32 %v802, %v905
      %v963 = vmul.f32 %v803, %v907
      %v964 = vmul.f32 %v804, %v909
      %v965 = vmul.f32 %v805, %v911
      %v966 = vmul.f32 %v806, %v913
      %v967 = vmul.f32 %v807, %v915
      %v968 = vmul.f32 %v808, %v917
      %v969 = vmul.f32 %v809, %v919
      %v970 = vmul.f32 %v810, %v921
      %v971 = vmul.f32 %v811, %v923
      %v972 = vmul.f32 %v812, %v925
      %v973 = vmul.f32 %v813, %v927
      %v974 = vmul.f32 %v814, %v929
      %v975 = vmul.f32 %v815, %v931
      %v976 = vmul.f32 %v816, %v933
      %v977 = vmul.f32 %v817, %v935
      %v978 = vmul.f32 %v818, %v937
      %v979 = vmul.f32 %v819, %v939
      %v980 = vmul.f32 %v820, %v941
      %v981 = vmul.f32 %v821, %v943
      %v982 = vmul.f32 %v822, %v945
      %v983 = vmul.f32 %v823, %v947
      %v984 = vmul.f32 %v824, %v949
      %v985 = vmul.f32 %v825, %v951
      %v986 = vmul.f32 %v826, %v953
      %v987 = vmul.f32 %v827, %v955
      %v988 = vsub.f32 1.0, %v956
      %v989 = vsub.f32 1.0, %v957
      %v990 = vsub.f32 1.0, %v958
      %v991 = vsub.f32 1.0, %v959
      %v992 = vsub.f32 1.0, %v960
      %v993 = vsub.f32 1.0, %v961
      %v994 = vsub.f32 1.0, %v962
      %v995 = vsub.f32 1.0, %v963
      %v996 = vsub.f32 1.0, %v964
      %v997 = vsub.f32 1.0, %v965
      %v998 = vsub.f32 1.0, %v966
      %v999 = vsub.f32 1.0, %v967
      %v1000 = vsub.f32 1.0, %v968
      %v1001 = vsub.f32 1.0, %v969
      %v1002 = vsub.f32 1.0, %v970
      %v1003 = vsub.f32 1.0, %v971
      %v1004 = vsub.f32 1.0, %v972
      %v1005 = vsub.f32 1.0, %v973
      %v1006 = vsub.f32 1.0, %v974
      %v1007 = vsub.f32 1.0, %v975
      %v1008 = vsub.f32 1.0, %v976
      %v1009 = vsub.f32 1.0, %v977
      %v1010 = vsub.f32 1.0, %v978
      %v1011 = vsub.f32 1.0, %v979
      %v1012 = vsub.f32 1.0, %v980
      %v1013 = vsub.f32 1.0, %v981
      %v1014 = vsub.f32 1.0, %v982
      %v1015 = vsub.f32 1.0, %v983
      %v1016 = vsub.f32 1.0, %v984
      %v1017 = vsub.f32 1.0, %v985
      %v1018 = vsub.f32 1.0, %v986
      %v1019 = vsub.f32 1.0, %v987
      %vm1020 = vcmp.ge.f32.partialorder %v348, 0.0
      %vm1021 = vcmp.ge.f32.partialorder %v349, 0.0
      %vm1022 = vcmp.ge.f32.partialorder %v350, 0.0
      %vm1023 = vcmp.ge.f32.partialorder %v351, 0.0
      %vm1024 = vcmp.ge.f32.partialorder %v352, 0.0
      %vm1025 = vcmp.ge.f32.partialorder %v353, 0.0
      %vm1026 = vcmp.ge.f32.partialorder %v354, 0.0
      %vm1027 = vcmp.ge.f32.partialorder %v355, 0.0
      %vm1028 = vcmp.ge.f32.partialorder %v356, 0.0
      %vm1029 = vcmp.ge.f32.partialorder %v357, 0.0
      %vm1030 = vcmp.ge.f32.partialorder %v358, 0.0
      %vm1031 = vcmp.ge.f32.partialorder %v359, 0.0
      %vm1032 = vcmp.ge.f32.partialorder %v360, 0.0
      %vm1033 = vcmp.ge.f32.partialorder %v361, 0.0
      %vm1034 = vcmp.ge.f32.partialorder %v362, 0.0
      %vm1035 = vcmp.ge.f32.partialorder %v363, 0.0
      %vm1036 = vcmp.ge.f32.partialorder %v364, 0.0
      %vm1037 = vcmp.ge.f32.partialorder %v365, 0.0
      %vm1038 = vcmp.ge.f32.partialorder %v366, 0.0
      %vm1039 = vcmp.ge.f32.partialorder %v367, 0.0
      %vm1040 = vcmp.ge.f32.partialorder %v368, 0.0
      %vm1041 = vcmp.ge.f32.partialorder %v369, 0.0
      %vm1042 = vcmp.ge.f32.partialorder %v370, 0.0
      %vm1043 = vcmp.ge.f32.partialorder %v371, 0.0
      %vm1044 = vcmp.ge.f32.partialorder %v372, 0.0
      %vm1045 = vcmp.ge.f32.partialorder %v373, 0.0
      %vm1046 = vcmp.ge.f32.partialorder %v374, 0.0
      %vm1047 = vcmp.ge.f32.partialorder %v375, 0.0
      %vm1048 = vcmp.ge.f32.partialorder %v376, 0.0
      %vm1049 = vcmp.ge.f32.partialorder %v377, 0.0
      %vm1050 = vcmp.ge.f32.partialorder %v378, 0.0
      %vm1051 = vcmp.ge.f32.partialorder %v379, 0.0
      %v1052 = vsub.f32 0.0, %v988
      %v1053 = vsub.f32 0.0, %v989
      %v1054 = vsub.f32 0.0, %v990
      %v1055 = vsub.f32 0.0, %v991
      %v1056 = vsub.f32 0.0, %v992
      %v1057 = vsub.f32 0.0, %v993
      %v1058 = vsub.f32 0.0, %v994
      %v1059 = vsub.f32 0.0, %v995
      %v1060 = vsub.f32 0.0, %v996
      %v1061 = vsub.f32 0.0, %v997
      %v1062 = vsub.f32 0.0, %v998
      %v1063 = vsub.f32 0.0, %v999
      %v1064 = vsub.f32 0.0, %v1000
      %v1065 = vsub.f32 0.0, %v1001
      %v1066 = vsub.f32 0.0, %v1002
      %v1067 = vsub.f32 0.0, %v1003
      %v1068 = vsub.f32 0.0, %v1004
      %v1069 = vsub.f32 0.0, %v1005
      %v1070 = vsub.f32 0.0, %v1006
      %v1071 = vsub.f32 0.0, %v1007
      %v1072 = vsub.f32 0.0, %v1008
      %v1073 = vsub.f32 0.0, %v1009
      %v1074 = vsub.f32 0.0, %v1010
      %v1075 = vsub.f32 0.0, %v1011
      %v1076 = vsub.f32 0.0, %v1012
      %v1077 = vsub.f32 0.0, %v1013
      %v1078 = vsub.f32 0.0, %v1014
      %v1079 = vsub.f32 0.0, %v1015
      %v1080 = vsub.f32 0.0, %v1016
      %v1081 = vsub.f32 0.0, %v1017
      %v1082 = vsub.f32 0.0, %v1018
      %v1083 = vsub.f32 0.0, %v1019
      %v1084 = vsel %vm1020, %v988, %v1052
      %v1085 = vsel %vm1021, %v989, %v1053
      %v1086 = vsel %vm1022, %v990, %v1054
      %v1087 = vsel %vm1023, %v991, %v1055
      %v1088 = vsel %vm1024, %v992, %v1056
      %v1089 = vsel %vm1025, %v993, %v1057
      %v1090 = vsel %vm1026, %v994, %v1058
      %v1091 = vsel %vm1027, %v995, %v1059
      %v1092 = vsel %vm1028, %v996, %v1060
      %v1093 = vsel %vm1029, %v997, %v1061
      %v1094 = vsel %vm1030, %v998, %v1062
      %v1095 = vsel %vm1031, %v999, %v1063
      %v1096 = vsel %vm1032, %v1000, %v1064
      %v1097 = vsel %vm1033, %v1001, %v1065
      %v1098 = vsel %vm1034, %v1002, %v1066
      %v1099 = vsel %vm1035, %v1003, %v1067
      %v1100 = vsel %vm1036, %v1004, %v1068
      %v1101 = vsel %vm1037, %v1005, %v1069
      %v1102 = vsel %vm1038, %v1006, %v1070
      %v1103 = vsel %vm1039, %v1007, %v1071
      %v1104 = vsel %vm1040, %v1008, %v1072
      %v1105 = vsel %vm1041, %v1009, %v1073
      %v1106 = vsel %vm1042, %v1010, %v1074
      %v1107 = vsel %vm1043, %v1011, %v1075
      %v1108 = vsel %vm1044, %v1012, %v1076
      %v1109 = vsel %vm1045, %v1013, %v1077
      %v1110 = vsel %vm1046, %v1014, %v1078
      %v1111 = vsel %vm1047, %v1015, %v1079
      %v1112 = vsel %vm1048, %v1016, %v1080
      %v1113 = vsel %vm1049, %v1017, %v1081
      %v1114 = vsel %vm1050, %v1018, %v1082
      %v1115 = vsel %vm1051, %v1019, %v1083
      %v1116 = vadd.f32 %v1084, 1.0
      %v1117 = vadd.f32 %v1085, 1.0
      %v1118 = vadd.f32 %v1086, 1.0
      %v1119 = vadd.f32 %v1087, 1.0
      %v1120 = vadd.f32 %v1088, 1.0
      %v1121 = vadd.f32 %v1089, 1.0
      %v1122 = vadd.f32 %v1090, 1.0
      %v1123 = vadd.f32 %v1091, 1.0
      %v1124 = vadd.f32 %v1092, 1.0
      %v1125 = vadd.f32 %v1093, 1.0
      %v1126 = vadd.f32 %v1094, 1.0
      %v1127 = vadd.f32 %v1095, 1.0
      %v1128 = vadd.f32 %v1096, 1.0
      %v1129 = vadd.f32 %v1097, 1.0
      %v1130 = vadd.f32 %v1098, 1.0
      %v1131 = vadd.f32 %v1099, 1.0
      %v1132 = vadd.f32 %v1100, 1.0
      %v1133 = vadd.f32 %v1101, 1.0
      %v1134 = vadd.f32 %v1102, 1.0
      %v1135 = vadd.f32 %v1103, 1.0
      %v1136 = vadd.f32 %v1104, 1.0
      %v1137 = vadd.f32 %v1105, 1.0
      %v1138 = vadd.f32 %v1106, 1.0
      %v1139 = vadd.f32 %v1107, 1.0
      %v1140 = vadd.f32 %v1108, 1.0
      %v1141 = vadd.f32 %v1109, 1.0
      %v1142 = vadd.f32 %v1110, 1.0
      %v1143 = vadd.f32 %v1111, 1.0
      %v1144 = vadd.f32 %v1112, 1.0
      %v1145 = vadd.f32 %v1113, 1.0
      %v1146 = vadd.f32 %v1114, 1.0
      %v1147 = vadd.f32 %v1115, 1.0
      %v1148 = vmul.f32 %v316, %v1116
      %v1149 = vmul.f32 %v317, %v1117
      %v1150 = vmul.f32 %v318, %v1118
      %v1151 = vmul.f32 %v319, %v1119
      %v1152 = vmul.f32 %v320, %v1120
      %v1153 = vmul.f32 %v321, %v1121
      %v1154 = vmul.f32 %v322, %v1122
      %v1155 = vmul.f32 %v323, %v1123
      %v1156 = vmul.f32 %v324, %v1124
      %v1157 = vmul.f32 %v325, %v1125
      %v1158 = vmul.f32 %v326, %v1126
      %v1159 = vmul.f32 %v327, %v1127
      %v1160 = vmul.f32 %v328, %v1128
      %v1161 = vmul.f32 %v329, %v1129
      %v1162 = vmul.f32 %v330, %v1130
      %v1163 = vmul.f32 %v331, %v1131
      %v1164 = vmul.f32 %v332, %v1132
      %v1165 = vmul.f32 %v333, %v1133
      %v1166 = vmul.f32 %v334, %v1134
      %v1167 = vmul.f32 %v335, %v1135
      %v1168 = vmul.f32 %v336, %v1136
      %v1169 = vmul.f32 %v337, %v1137
      %v1170 = vmul.f32 %v338, %v1138
      %v1171 = vmul.f32 %v339, %v1139
      %v1172 = vmul.f32 %v340, %v1140
      %v1173 = vmul.f32 %v341, %v1141
      %v1174 = vmul.f32 %v342, %v1142
      %v1175 = vmul.f32 %v343, %v1143
      %v1176 = vmul.f32 %v344, %v1144
      %v1177 = vmul.f32 %v345, %v1145
      %v1178 = vmul.f32 %v346, %v1146
      %v1179 = vmul.f32 %v347, %v1147
      %v1180 = vpack.c.bf16 %v1149, %v1148
      %v1181 = vpack.c.bf16 %v1151, %v1150
      %v1182 = vpack.c.bf16 %v1153, %v1152
      %v1183 = vpack.c.bf16 %v1155, %v1154
      %v1184 = vpack.c.bf16 %v1157, %v1156
      %v1185 = vpack.c.bf16 %v1159, %v1158
      %v1186 = vpack.c.bf16 %v1161, %v1160
      %v1187 = vpack.c.bf16 %v1163, %v1162
      %v1188 = vpack.c.bf16 %v1165, %v1164
      %v1189 = vpack.c.bf16 %v1167, %v1166
      %v1190 = vpack.c.bf16 %v1169, %v1168
      %v1191 = vpack.c.bf16 %v1171, %v1170
      %v1192 = vpack.c.bf16 %v1173, %v1172
      %v1193 = vpack.c.bf16 %v1175, %v1174
      %v1194 = vpack.c.bf16 %v1177, %v1176
      %v1195 = vpack.c.bf16 %v1179, %v1178
      %v1212 = vunpack.c.l.b16 %v1180
      %v1213 = vunpack.c.h.b16 %v1180
      %v1214 = vunpack.c.l.b16 %v1181
      %v1215 = vunpack.c.h.b16 %v1181
      %v1216 = vunpack.c.l.b16 %v1182
      %v1217 = vunpack.c.h.b16 %v1182
      %v1218 = vunpack.c.l.b16 %v1183
      %v1219 = vunpack.c.h.b16 %v1183
      %v1220 = vunpack.c.l.b16 %v1184
      %v1221 = vunpack.c.h.b16 %v1184
      %v1222 = vunpack.c.l.b16 %v1185
      %v1223 = vunpack.c.h.b16 %v1185
      %v1224 = vunpack.c.l.b16 %v1186
      %v1225 = vunpack.c.h.b16 %v1186
      %v1226 = vunpack.c.l.b16 %v1187
      %v1227 = vunpack.c.h.b16 %v1187
      %v1228 = vunpack.c.l.b16 %v1188
      %v1229 = vunpack.c.h.b16 %v1188
      %v1230 = vunpack.c.l.b16 %v1189
      %v1231 = vunpack.c.h.b16 %v1189
      %v1232 = vunpack.c.l.b16 %v1190
      %v1233 = vunpack.c.h.b16 %v1190
      %v1234 = vunpack.c.l.b16 %v1191
      %v1235 = vunpack.c.h.b16 %v1191
      %v1236 = vunpack.c.l.b16 %v1192
      %v1237 = vunpack.c.h.b16 %v1192
      %v1238 = vunpack.c.l.b16 %v1193
      %v1239 = vunpack.c.h.b16 %v1193
      %v1240 = vunpack.c.l.b16 %v1194
      %v1241 = vunpack.c.h.b16 %v1194
      %v1242 = vunpack.c.l.b16 %v1195
      %v1243 = vunpack.c.h.b16 %v1195
      %v1244 = vpack.c.b16 %v1212, %v1212
      %v1245 = vpack.c.b16 %v1213, %v1213
      %v1246 = vpack.c.b16 %v1214, %v1214
      %v1247 = vpack.c.b16 %v1215, %v1215
      %v1248 = vpack.c.b16 %v1216, %v1216
      %v1249 = vpack.c.b16 %v1217, %v1217
      %v1250 = vpack.c.b16 %v1218, %v1218
      %v1251 = vpack.c.b16 %v1219, %v1219
      %v1252 = vpack.c.b16 %v1220, %v1220
      %v1253 = vpack.c.b16 %v1221, %v1221
      %v1254 = vpack.c.b16 %v1222, %v1222
      %v1255 = vpack.c.b16 %v1223, %v1223
      %v1256 = vpack.c.b16 %v1224, %v1224
      %v1257 = vpack.c.b16 %v1225, %v1225
      %v1258 = vpack.c.b16 %v1226, %v1226
      %v1259 = vpack.c.b16 %v1227, %v1227
      %v1260 = vpack.c.b16 %v1228, %v1228
      %v1261 = vpack.c.b16 %v1229, %v1229
      %v1262 = vpack.c.b16 %v1230, %v1230
      %v1263 = vpack.c.b16 %v1231, %v1231
      %v1264 = vpack.c.b16 %v1232, %v1232
      %v1265 = vpack.c.b16 %v1233, %v1233
      %v1266 = vpack.c.b16 %v1234, %v1234
      %v1267 = vpack.c.b16 %v1235, %v1235
      %v1268 = vpack.c.b16 %v1236, %v1236
      %v1269 = vpack.c.b16 %v1237, %v1237
      %v1270 = vpack.c.b16 %v1238, %v1238
      %v1271 = vpack.c.b16 %v1239, %v1239
      %v1272 = vpack.c.b16 %v1240, %v1240
      %v1273 = vpack.c.b16 %v1241, %v1241
      %v1274 = vpack.c.b16 %v1242, %v1242
      %v1275 = vpack.c.b16 %v1243, %v1243
      %1308 = vst [vmem:[%s172] sm:$0xf] %v1244
      %1309 = vst [vmem:[%s172 + $0x4] sm:$0xf] %v1245
      %1310 = vst [vmem:[%s172 + $0x8] sm:$0xf] %v1246
      %1311 = vst [vmem:[%s172 + $0xc] sm:$0xf] %v1247
      %1312 = vst [vmem:[%s172 + $0x10] sm:$0xf] %v1248
      %1313 = vst [vmem:[%s172 + $0x14] sm:$0xf] %v1249
      %1314 = vst [vmem:[%s172 + $0x18] sm:$0xf] %v1250
      %1315 = vst [vmem:[%s172 + $0x1c] sm:$0xf] %v1251
      %1316 = vst [vmem:[%s172 + $0x20] sm:$0xf] %v1252
      %1317 = vst [vmem:[%s172 + $0x24] sm:$0xf] %v1253
      %1318 = vst [vmem:[%s172 + $0x28] sm:$0xf] %v1254
      %1319 = vst [vmem:[%s172 + $0x2c] sm:$0xf] %v1255
      %1320 = vst [vmem:[%s172 + $0x30] sm:$0xf] %v1256
      %1321 = vst [vmem:[%s172 + $0x34] sm:$0xf] %v1257
      %1322 = vst [vmem:[%s172 + $0x38] sm:$0xf] %v1258
      %1323 = vst [vmem:[%s172 + $0x3c] sm:$0xf] %v1259
      %1324 = vst [vmem:[%s172 + $0x40] sm:$0xf] %v1260
      %1325 = vst [vmem:[%s172 + $0x44] sm:$0xf] %v1261
      %1326 = vst [vmem:[%s172 + $0x48] sm:$0xf] %v1262
      %1327 = vst [vmem:[%s172 + $0x4c] sm:$0xf] %v1263
      %1328 = vst [vmem:[%s172 + $0x50] sm:$0xf] %v1264
      %1329 = vst [vmem:[%s172 + $0x54] sm:$0xf] %v1265
      %1330 = vst [vmem:[%s172 + $0x58] sm:$0xf] %v1266
      %1331 = vst [vmem:[%s172 + $0x5c] sm:$0xf] %v1267
      %1332 = vst [vmem:[%s172 + $0x60] sm:$0xf] %v1268
      %1333 = vst [vmem:[%s172 + $0x64] sm:$0xf] %v1269
      %1334 = vst [vmem:[%s172 + $0x68] sm:$0xf] %v1270
      %1335 = vst [vmem:[%s172 + $0x6c] sm:$0xf] %v1271
      %1336 = vst [vmem:[%s172 + $0x70] sm:$0xf] %v1272
      %1337 = vst [vmem:[%s172 + $0x74] sm:$0xf] %v1273
      %1338 = vst [vmem:[%s172 + $0x78] sm:$0xf] %v1274
      %1339 = vst [vmem:[%s172 + $0x7c] sm:$0xf] %v1275
      %s1340 = smul.u32 32, %s14
      %p1341 = scmp.lt.s32.totalorder %s1340, 63
      %s1342 = scalar_select %p1341, %s1340, 63
      %s1343 = smul.addr %s1342, 4
      %s1344 = scalar_lea.vmem %s3, %s1343
      // Predicated region
      $region33: #{dwpw_conv.5} parent=31 // pred_check
        %p1345 = pneg %p100
      $region34: #{dwpw_conv.5} parent=31 // pred_check_branch
        %1347 = sbr.rel (%p1345) target = $region36
      $region35: #{dwpw_conv.5} parent=31 // pred_region
        %s1348 = smul.u32 32, %s14
      $region36: #{dwpw_conv.5} parent=31 // pred_fallthru
        _
    $region32: #{dwpw_conv.5} parent=5 // pred_fallthru
      _
    %p1349 = scmp.le.s32.totalorder 2, %s9
    // Predicated region
    $region37: #{dwpw_conv.5} parent=5 // pred_check
      %p1350 = pneg %p1349
    $region38: #{dwpw_conv.5} parent=5 // pred_check_branch
      %1352 = sbr.rel (%p1350) target = $region40
    $region39: #{dwpw_conv.5} parent=5 // pred_region
      %s1353 = ssub.s32 %s9, 2
      // Predicated region
      $region41: #{dwpw_conv.5} parent=39 // pred_check
        %p1354 = pneg %p106
      $region42: #{dwpw_conv.5} parent=39 // pred_check_branch
        %1356 = sbr.rel (%p1354) target = $region44
      $region43: #{dwpw_conv.5} parent=39 // pred_region
        %s1357 = smul.u32 32, %s15
        %p1358 = scmp.lt.s32.totalorder %s1357, 63
        %s1359 = scalar_select %p1358, %s1357, 63
        %s1360 = smul.addr %s1359, 4
        %s1361 = scalar_lea.vmem %s3, %s1360
      $region44: #{dwpw_conv.5} parent=39 // pred_fallthru
        _
    $region40: #{dwpw_conv.5} parent=5 // pred_fallthru
      _
  $region6: #{dwpw_conv.5} parent=0 // loop_footer
    %s13 = sadd.s32 1, %s9
  $region7: #{dwpw_conv.5} parent=0 // loop_footer_branch
    %8 = sbr.rel target = $region3
  $region8: #{dwpw_conv.5} parent=0 // loop_exit
    _

// kernel: dwpw_conv.4
$region0: #{dwpw_conv.4}
  #allocation0 [shape = 'u32[]', space=smem, size = 0x4, offset = 0x4, fixed_abs, tag = 'smem constant byte address 0x4 - core index']
  #allocation1 [shape = 'u32[144,128]{1,0:T(1,128)}', space=vmem, size = 0x12000, scoped, tag = 'internal scratch']
  %s0 = inlined_call_operand.vmem [shape: bf16[512,128], index: 0, kind: input, shape index: {}]
  %s1 = inlined_call_operand.vmem [shape: f32[1,128], index: 1, kind: input, shape index: {}]
  %s2 = inlined_call_operand.vmem [shape: f32[1,128], index: 2, kind: input, shape index: {}]
  %s3 = inlined_call_operand.vmem [shape: bf16[128,128], index: 3, kind: input, shape index: {}]
  %s4 = inlined_call_operand.vmem [shape: f32[1,128], index: 4, kind: input, shape index: {}]
  %s5 = inlined_call_operand.vmem [shape: bf16[512,128], index: 5, kind: output, shape index: {0}]
  %s6 = inlined_call_operand.vmem [shape: f32[2,1,128], index: 6, kind: output, shape index: {1}]
  %s7 = inlined_call_operand.vmem [shape: f32[2,1,128], index: 7, kind: output, shape index: {2}]
  %8 = xla_tuple %s5, %s6, %s7
  %s9 = sld [smem:[#allocation0]]
  $region69: #{dwpw_conv.4} parent=0
    _
  %s11 = ssub.s32 1, %s9
  %s12 = scalar_select 0, %s11, %s9
  loop: start=0, step=1, limit=4
  $region2: #{dwpw_conv.4} parent=0 // loop_pre_header
    _
  $region3: #{dwpw_conv.4} parent=0 // loop_header
    %s14 = sphi 0, %s18
    %p15 = scmp.ge.s32.totalorder %s14, 4
    %s24 = sphi 0, %s26
    %s27 = sphi 0, %s24
    %s28 = sphi 0, %s27
    %s44 = sphi 0, %s28
    %s48 = sphi 0, %s48
    %s50 = sphi 0, %s48
    %s51 = sphi 0, %s50
    %s65 = sphi 0, %s51
    %s69 = sphi 0, %s69
    %s71 = sphi 0, %s69
    %s72 = sphi 0, %s71
    %s86 = sphi 0, %s72
    %s90 = sphi 0, %s90
    %s92 = sphi 0, %s90
    %s93 = sphi 0, %s92
    %s107 = sphi 0, %s93
    %s111 = sphi 0, %s111
    %s113 = sphi 0, %s111
    %s114 = sphi 0, %s113
    %s128 = sphi 0, %s114
    %s134 = sphi 0, %s136
    %s137 = sphi 0, %s134
    %s138 = sphi 0, %s137
    %s154 = sphi 0, %s138
    %s160 = sphi 0, %s162
    %s163 = sphi 0, %s160
    %s164 = sphi 0, %s163
    %s180 = sphi 0, %s164
    %s186 = sphi 0, %s188
    %s189 = sphi 0, %s186
    %s190 = sphi 0, %s189
    %s206 = sphi 0, %s190
  $region4: #{dwpw_conv.4} parent=0 // loop_header_branch
    %17 = sbr.rel (%p15) target = $region8
  $region5: #{dwpw_conv.4} parent=0 // loop_body
    %s19 = ssub.s32 %s14, 1
    %s20 = ssub.s32 %s14, 2
    %s21 = sadd.s32 %s14, 1
    %s22 = ssub.s32 %s14, %s21
    %p23 = scmp.eq.s32.totalorder %s22, 0
    %s25 = sadd.s32 %s24, 1
    %s26 = scalar_select %p23, %s24, %s25
    %p29 = pneg %p23
    %p30 = scmp.eq.s32.totalorder %s14, 1
    %p31 = por %p29, %p30
    %p32 = scmp.ne.s32.totalorder %s24, %s27
    %p33 = scmp.eq.s32.totalorder %s14, 0
    %p34 = por %p32, %p33
    %p35 = scmp.ne.s32.totalorder %s24, %s27
    %p36 = scmp.eq.s32.totalorder %s19, 1
    %p37 = por %p35, %p36
    %p38 = scmp.ne.s32.totalorder %s27, %s28
    %p39 = scmp.eq.s32.totalorder %s19, 0
    %p40 = por %p38, %p39
    %p41 = scmp.ne.s32.totalorder %s27, %s28
    %p42 = scmp.eq.s32.totalorder %s20, 1
    %p43 = por %p41, %p42
    %p45 = scmp.ne.s32.totalorder %s28, %s44
    %p46 = scmp.eq.s32.totalorder %s20, 0
    %p47 = por %p45, %p46
    %s49 = sadd.s32 %s48, 1
    %p52 = scmp.eq.s32.totalorder %s14, 1
    %p53 = scmp.ne.s32.totalorder %s48, %s50
    %p54 = scmp.eq.s32.totalorder %s14, 0
    %p55 = por %p53, %p54
    %p56 = scmp.ne.s32.totalorder %s48, %s50
    %p57 = scmp.eq.s32.totalorder %s19, 1
    %p58 = por %p56, %p57
    %p59 = scmp.ne.s32.totalorder %s50, %s51
    %p60 = scmp.eq.s32.totalorder %s19, 0
    %p61 = por %p59, %p60
    %p62 = scmp.ne.s32.totalorder %s50, %s51
    %p63 = scmp.eq.s32.totalorder %s20, 1
    %p64 = por %p62, %p63
    %p66 = scmp.ne.s32.totalorder %s51, %s65
    %p67 = scmp.eq.s32.totalorder %s20, 0
    %p68 = por %p66, %p67
    %s70 = sadd.s32 %s69, 1
    %p73 = scmp.eq.s32.totalorder %s14, 1
    %p74 = scmp.ne.s32.totalorder %s69, %s71
    %p75 = scmp.eq.s32.totalorder %s14, 0
    %p76 = por %p74, %p75
    %p77 = scmp.ne.s32.totalorder %s69, %s71
    %p78 = scmp.eq.s32.totalorder %s19, 1
    %p79 = por %p77, %p78
    %p80 = scmp.ne.s32.totalorder %s71, %s72
    %p81 = scmp.eq.s32.totalorder %s19, 0
    %p82 = por %p80, %p81
    %p83 = scmp.ne.s32.totalorder %s71, %s72
    %p84 = scmp.eq.s32.totalorder %s20, 1
    %p85 = por %p83, %p84
    %p87 = scmp.ne.s32.totalorder %s72, %s86
    %p88 = scmp.eq.s32.totalorder %s20, 0
    %p89 = por %p87, %p88
    %s91 = sadd.s32 %s90, 1
    %p94 = scmp.eq.s32.totalorder %s14, 1
    %p95 = scmp.ne.s32.totalorder %s90, %s92
    %p96 = scmp.eq.s32.totalorder %s14, 0
    %p97 = por %p95, %p96
    %p98 = scmp.ne.s32.totalorder %s90, %s92
    %p99 = scmp.eq.s32.totalorder %s19, 1
    %p100 = por %p98, %p99
    %p101 = scmp.ne.s32.totalorder %s92, %s93
    %p102 = scmp.eq.s32.totalorder %s19, 0
    %p103 = por %p101, %p102
    %p104 = scmp.ne.s32.totalorder %s92, %s93
    %p105 = scmp.eq.s32.totalorder %s20, 1
    %p106 = por %p104, %p105
    %p108 = scmp.ne.s32.totalorder %s93, %s107
    %p109 = scmp.eq.s32.totalorder %s20, 0
    %p110 = por %p108, %p109
    %s112 = sadd.s32 %s111, 1
    %p115 = scmp.eq.s32.totalorder %s14, 1
    %p116 = scmp.ne.s32.totalorder %s111, %s113
    %p117 = scmp.eq.s32.totalorder %s14, 0
    %p118 = por %p116, %p117
    %p119 = scmp.ne.s32.totalorder %s111, %s113
    %p120 = scmp.eq.s32.totalorder %s19, 1
    %p121 = por %p119, %p120
    %p122 = scmp.ne.s32.totalorder %s113, %s114
    %p123 = scmp.eq.s32.totalorder %s19, 0
    %p124 = por %p122, %p123
    %p125 = scmp.ne.s32.totalorder %s113, %s114
    %p126 = scmp.eq.s32.totalorder %s20, 1
    %p127 = por %p125, %p126
    %p129 = scmp.ne.s32.totalorder %s114, %s128
    %p130 = scmp.eq.s32.totalorder %s20, 0
    %p131 = por %p129, %p130
    %s132 = ssub.s32 %s14, %s21
    %p133 = scmp.eq.s32.totalorder %s132, 0
    %s135 = sadd.s32 %s134, 1
    %s136 = scalar_select %p133, %s134, %s135
    %p139 = pneg %p133
    %p140 = scmp.eq.s32.totalorder %s14, 1
    %p141 = por %p139, %p140
    %p142 = scmp.ne.s32.totalorder %s134, %s137
    %p143 = scmp.eq.s32.totalorder %s14, 0
    %p144 = por %p142, %p143
    %p145 = scmp.ne.s32.totalorder %s134, %s137
    %p146 = scmp.eq.s32.totalorder %s19, 1
    %p147 = por %p145, %p146
    %p148 = scmp.ne.s32.totalorder %s137, %s138
    %p149 = scmp.eq.s32.totalorder %s19, 0
    %p150 = por %p148, %p149
    %p151 = scmp.ne.s32.totalorder %s137, %s138
    %p152 = scmp.eq.s32.totalorder %s20, 1
    %p153 = por %p151, %p152
    %p155 = scmp.ne.s32.totalorder %s138, %s154
    %p156 = scmp.eq.s32.totalorder %s20, 0
    %p157 = por %p155, %p156
    %s158 = ssub.s32 %s14, %s21
    %p159 = scmp.eq.s32.totalorder %s158, 0
    %s161 = sadd.s32 %s160, 1
    %s162 = scalar_select %p159, %s160, %s161
    %p165 = pneg %p159
    %p166 = scmp.eq.s32.totalorder %s14, 1
    %p167 = por %p165, %p166
    %p168 = scmp.ne.s32.totalorder %s160, %s163
    %p169 = scmp.eq.s32.totalorder %s14, 0
    %p170 = por %p168, %p169
    %p171 = scmp.ne.s32.totalorder %s160, %s163
    %p172 = scmp.eq.s32.totalorder %s19, 1
    %p173 = por %p171, %p172
    %p174 = scmp.ne.s32.totalorder %s163, %s164
    %p175 = scmp.eq.s32.totalorder %s19, 0
    %p176 = por %p174, %p175
    %p177 = scmp.ne.s32.totalorder %s163, %s164
    %p178 = scmp.eq.s32.totalorder %s20, 1
    %p179 = por %p177, %p178
    %p181 = scmp.ne.s32.totalorder %s164, %s180
    %p182 = scmp.eq.s32.totalorder %s20, 0
    %p183 = por %p181, %p182
    %s184 = ssub.s32 %s14, %s21
    %p185 = scmp.eq.s32.totalorder %s184, 0
    %s187 = sadd.s32 %s186, 1
    %s188 = scalar_select %p185, %s186, %s187
    %p191 = pneg %p185
    %p192 = scmp.eq.s32.totalorder %s14, 1
    %p193 = por %p191, %p192
    %p194 = scmp.ne.s32.totalorder %s186, %s189
    %p195 = scmp.eq.s32.totalorder %s14, 0
    %p196 = por %p194, %p195
    %p197 = scmp.ne.s32.totalorder %s186, %s189
    %p198 = scmp.eq.s32.totalorder %s19, 1
    %p199 = por %p197, %p198
    %p200 = scmp.ne.s32.totalorder %s189, %s190
    %p201 = scmp.eq.s32.totalorder %s19, 0
    %p202 = por %p200, %p201
    %p203 = scmp.ne.s32.totalorder %s189, %s190
    %p204 = scmp.eq.s32.totalorder %s20, 1
    %p205 = por %p203, %p204
    %p207 = scmp.ne.s32.totalorder %s190, %s206
    %p208 = scmp.eq.s32.totalorder %s20, 0
    %p209 = por %p207, %p208
    %p210 = scmp.le.s32.totalorder 1, %s14
    %p211 = scmp.lt.s32.totalorder %s14, 3
    %p212 = pnand %p210, %p211
    %p213 = pneg %p212
    // Predicated region
    $region9: #{dwpw_conv.4} parent=5 // pred_check
      _
    $region10: #{dwpw_conv.4} parent=5 // pred_check_branch
      %215 = sbr.rel (%p212) target = $region12
    $region11: #{dwpw_conv.4} parent=5 // pred_region
      %s216 = ssub.s32 %s14, 1
      // Predicated region
      $region13: #{dwpw_conv.4} parent=11 // pred_check
        %p217 = pneg %p61
      $region14: #{dwpw_conv.4} parent=11 // pred_check_branch
        %219 = sbr.rel (%p217) target = $region16
      $region15: #{dwpw_conv.4} parent=11 // pred_region
        _
      $region16: #{dwpw_conv.4} parent=11 // pred_fallthru
        _
      // Predicated region
      $region17: #{dwpw_conv.4} parent=11 // pred_check
        %p220 = pneg %p82
      $region18: #{dwpw_conv.4} parent=11 // pred_check_branch
        %222 = sbr.rel (%p220) target = $region20
      $region19: #{dwpw_conv.4} parent=11 // pred_region
        _
      $region20: #{dwpw_conv.4} parent=11 // pred_fallthru
        _
      // Predicated region
      $region21: #{dwpw_conv.4} parent=11 // pred_check
        %p223 = pneg %p103
      $region22: #{dwpw_conv.4} parent=11 // pred_check_branch
        %225 = sbr.rel (%p223) target = $region24
      $region23: #{dwpw_conv.4} parent=11 // pred_region
        _
      $region24: #{dwpw_conv.4} parent=11 // pred_fallthru
        _
      // Predicated region
      $region25: #{dwpw_conv.4} parent=11 // pred_check
        %p226 = pneg %p124
      $region26: #{dwpw_conv.4} parent=11 // pred_check_branch
        %228 = sbr.rel (%p226) target = $region28
      $region27: #{dwpw_conv.4} parent=11 // pred_region
        _
      $region28: #{dwpw_conv.4} parent=11 // pred_fallthru
        _
    $region12: #{dwpw_conv.4} parent=5 // pred_fallthru
      _
    %p229 = scmp.lt.s32.totalorder %s14, 2
    // Predicated region
    $region29: #{dwpw_conv.4} parent=5 // pred_check
      %p230 = pneg %p229
    $region30: #{dwpw_conv.4} parent=5 // pred_check_branch
      %232 = sbr.rel (%p230) target = $region32
    $region31: #{dwpw_conv.4} parent=5 // pred_region
      // Predicated region
      $region33: #{dwpw_conv.4} parent=31 // pred_check
        %p233 = pneg %p34
      $region34: #{dwpw_conv.4} parent=31 // pred_check_branch
        %235 = sbr.rel (%p233) target = $region36
      $region35: #{dwpw_conv.4} parent=31 // pred_region
        %s236 = smul.u32 32, %s14
        %p237 = scmp.lt.s32.totalorder %s236, 63
        %s238 = scalar_select %p237, %s236, 63
        %s239 = smul.addr %s238, 4
        %s240 = scalar_lea.vmem %s0, %s239
        %s241 = smul.u32 32, %s14
      $region36: #{dwpw_conv.4} parent=31 // pred_fallthru
        _
    $region32: #{dwpw_conv.4} parent=5 // pred_fallthru
      _
    %p242 = scmp.le.s32.totalorder 1, %s14
    %p243 = scmp.lt.s32.totalorder %s14, 3
    %p244 = pnand %p242, %p243
    %p245 = pneg %p244
    // Predicated region
    $region37: #{dwpw_conv.4} parent=5 // pred_check
      _
    $region38: #{dwpw_conv.4} parent=5 // pred_check_branch
      %247 = sbr.rel (%p244) target = $region40
    $region39: #{dwpw_conv.4} parent=5 // pred_region
      %s248 = ssub.s32 %s14, 1
      %s249 = smul.u32 32, %s19
      %p250 = scmp.lt.s32.totalorder %s249, 63
      %s251 = scalar_select %p250, %s249, 63
      %s252 = smul.addr %s251, 4
      %s253 = scalar_lea.vmem %s0, %s252
      %p254 = pneg %p40
      %p255 = pneg %p37
      %p256 = pneg %p61
      %p257 = pneg %p58
      %p258 = pneg %p82
      %p259 = pneg %p79
      %p260 = pneg %p103
      %p261 = pneg %p100
      %p262 = pneg %p124
      %p263 = pneg %p121
      %p264 = pneg %p150
      %p265 = pneg %p147
      %s266 = smul.u32 32, %s19
      %p267 = scmp.lt.s32.totalorder %s266, 63
      %s268 = scalar_select %p267, %s266, 63
      %s269 = smul.addr %s268, 4
      %s270 = scalar_lea.vmem %s5, %s269
      %p271 = pneg %p176
      %p272 = pneg %p173
      %p273 = scmp.lt.s32.totalorder %s19, 1
      %s274 = scalar_select %p273, %s19, 1
      %s275 = scalar_lea.vmem %s6, %s274
      %p276 = pneg %p202
      %p277 = pneg %p199
      %p278 = scmp.lt.s32.totalorder %s19, 1
      %s279 = scalar_select %p278, %s19, 1
      %s280 = scalar_lea.vmem %s7, %s279
      %s281 = smul.u32 32, %s19
      %p282 = scmp.lt.s32.totalorder %s281, 63
      %s283 = scalar_select %p282, %s281, 63
      %s284 = smul.addr %s283, 4
      %s285 = scalar_lea.vmem %s0, %s284
      %s286 = smul.u32 32, %s19
      %s287 = smul.u32 32, %s19
      %p288 = scmp.lt.s32.totalorder %s287, 63
      %s289 = scalar_select %p288, %s287, 63
      %s290 = smul.addr %s289, 4
      %s291 = scalar_lea.vmem %s5, %s290
      %s292 = smul.u32 32, %s19
      %p293 = scmp.lt.s32.totalorder %s19, 1
      %s294 = scalar_select %p293, %s19, 1
      %s295 = scalar_lea.vmem %s6, %s294
      %p296 = scmp.lt.s32.totalorder %s19, 1
      %s297 = scalar_select %p296, %s19, 1
      %s298 = scalar_lea.vmem %s7, %s297
      %v300 = vld [vmem:[%s285] sm:$0xf]
      %v301 = vld [vmem:[%s285 + $0x4] sm:$0xf]
      %v302 = vld [vmem:[%s285 + $0x8] sm:$0xf]
      %v303 = vld [vmem:[%s285 + $0xc] sm:$0xf]
      %v304 = vld [vmem:[%s285 + $0x10] sm:$0xf]
      %v305 = vld [vmem:[%s285 + $0x14] sm:$0xf]
      %v306 = vld [vmem:[%s285 + $0x18] sm:$0xf]
      %v307 = vld [vmem:[%s285 + $0x1c] sm:$0xf]
      %v308 = vld [vmem:[%s285 + $0x20] sm:$0xf]
      %v309 = vld [vmem:[%s285 + $0x24] sm:$0xf]
      %v310 = vld [vmem:[%s285 + $0x28] sm:$0xf]
      %v311 = vld [vmem:[%s285 + $0x2c] sm:$0xf]
      %v312 = vld [vmem:[%s285 + $0x30] sm:$0xf]
      %v313 = vld [vmem:[%s285 + $0x34] sm:$0xf]
      %v314 = vld [vmem:[%s285 + $0x38] sm:$0xf]
      %v315 = vld [vmem:[%s285 + $0x3c] sm:$0xf]
      %v316 = vld [vmem:[%s285 + $0x40] sm:$0xf]
      %v317 = vld [vmem:[%s285 + $0x44] sm:$0xf]
      %v318 = vld [vmem:[%s285 + $0x48] sm:$0xf]
      %v319 = vld [vmem:[%s285 + $0x4c] sm:$0xf]
      %v320 = vld [vmem:[%s285 + $0x50] sm:$0xf]
      %v321 = vld [vmem:[%s285 + $0x54] sm:$0xf]
      %v322 = vld [vmem:[%s285 + $0x58] sm:$0xf]
      %v323 = vld [vmem:[%s285 + $0x5c] sm:$0xf]
      %v324 = vld [vmem:[%s285 + $0x60] sm:$0xf]
      %v325 = vld [vmem:[%s285 + $0x64] sm:$0xf]
      %v326 = vld [vmem:[%s285 + $0x68] sm:$0xf]
      %v327 = vld [vmem:[%s285 + $0x6c] sm:$0xf]
      %v328 = vld [vmem:[%s285 + $0x70] sm:$0xf]
      %v329 = vld [vmem:[%s285 + $0x74] sm:$0xf]
      %v330 = vld [vmem:[%s285 + $0x78] sm:$0xf]
      %v331 = vld [vmem:[%s285 + $0x7c] sm:$0xf]
      %v332 = vunpack.c.l.bf16 %v300
      %v333 = vunpack.c.l.bf16 %v301
      %v334 = vunpack.c.l.bf16 %v302
      %v335 = vunpack.c.l.bf16 %v303
      %v336 = vunpack.c.l.bf16 %v304
      %v337 = vunpack.c.l.bf16 %v305
      %v338 = vunpack.c.l.bf16 %v306
      %v339 = vunpack.c.l.bf16 %v307
      %v340 = vunpack.c.l.bf16 %v308
      %v341 = vunpack.c.l.bf16 %v309
      %v342 = vunpack.c.l.bf16 %v310
      %v343 = vunpack.c.l.bf16 %v311
      %v344 = vunpack.c.l.bf16 %v312
      %v345 = vunpack.c.l.bf16 %v313
      %v346 = vunpack.c.l.bf16 %v314
      %v347 = vunpack.c.l.bf16 %v315
      %v348 = vunpack.c.l.bf16 %v316
      %v349 = vunpack.c.l.bf16 %v317
      %v350 = vunpack.c.l.bf16 %v318
      %v351 = vunpack.c.l.bf16 %v319
      %v352 = vunpack.c.l.bf16 %v320
      %v353 = vunpack.c.l.bf16 %v321
      %v354 = vunpack.c.l.bf16 %v322
      %v355 = vunpack.c.l.bf16 %v323
      %v356 = vunpack.c.l.bf16 %v324
      %v357 = vunpack.c.l.bf16 %v325
      %v358 = vunpack.c.l.bf16 %v326
      %v359 = vunpack.c.l.bf16 %v327
      %v360 = vunpack.c.l.bf16 %v328
      %v361 = vunpack.c.l.bf16 %v329
      %v362 = vunpack.c.l.bf16 %v330
      %v363 = vunpack.c.l.bf16 %v331
      %v364 = vld [vmem:[%s1] sm:$0x1]
      %v366 = vlaneseq
      %v367 = vshrl.u32 %v366, 7
      %v368 = vsub.s32 0, %v367
      %v369 = vrot.slane %v364, %v368
      %v371 = vmul.f32 %v332, %v369
      %v372 = vmul.f32 %v333, %v369
      %v373 = vmul.f32 %v334, %v369
      %v374 = vmul.f32 %v335, %v369
      %v375 = vmul.f32 %v336, %v369
      %v376 = vmul.f32 %v337, %v369
      %v377 = vmul.f32 %v338, %v369
      %v378 = vmul.f32 %v339, %v369
      %v379 = vmul.f32 %v340, %v369
      %v380 = vmul.f32 %v341, %v369
      %v381 = vmul.f32 %v342, %v369
      %v382 = vmul.f32 %v343, %v369
      %v383 = vmul.f32 %v344, %v369
      %v384 = vmul.f32 %v345, %v369
      %v385 = vmul.f32 %v346, %v369
      %v386 = vmul.f32 %v347, %v369
      %v387 = vmul.f32 %v348, %v369
      %v388 = vmul.f32 %v349, %v369
      %v389 = vmul.f32 %v350, %v369
      %v390 = vmul.f32 %v351, %v369
      %v391 = vmul.f32 %v352, %v369
      %v392 = vmul.f32 %v353, %v369
      %v393 = vmul.f32 %v354, %v369
      %v394 = vmul.f32 %v355, %v369
      %v395 = vmul.f32 %v356, %v369
      %v396 = vmul.f32 %v357, %v369
      %v397 = vmul.f32 %v358, %v369
      %v398 = vmul.f32 %v359, %v369
      %v399 = vmul.f32 %v360, %v369
      %v400 = vmul.f32 %v361, %v369
      %v401 = vmul.f32 %v362, %v369
      %v402 = vmul.f32 %v363, %v369
      %v403 = vld [vmem:[%s2] sm:$0x1]
      %v405 = vlaneseq
      %v406 = vshrl.u32 %v405, 7
      %v407 = vsub.s32 0, %v406
      %v408 = vrot.slane %v403, %v407
      %v410 = vadd.f32 %v371, %v408
      %v411 = vadd.f32 %v372, %v408
      %v412 = vadd.f32 %v373, %v408
      %v413 = vadd.f32 %v374, %v408
      %v414 = vadd.f32 %v375, %v408
      %v415 = vadd.f32 %v376, %v408
      %v416 = vadd.f32 %v377, %v408
      %v417 = vadd.f32 %v378, %v408
      %v418 = vadd.f32 %v379, %v408
      %v419 = vadd.f32 %v380, %v408
      %v420 = vadd.f32 %v381, %v408
      %v421 = vadd.f32 %v382, %v408
      %v422 = vadd.f32 %v383, %v408
      %v423 = vadd.f32 %v384, %v408
      %v424 = vadd.f32 %v385, %v408
      %v425 = vadd.f32 %v386, %v408
      %v426 = vadd.f32 %v387, %v408
      %v427 = vadd.f32 %v388, %v408
      %v428 = vadd.f32 %v389, %v408
      %v429 = vadd.f32 %v390, %v408
      %v430 = vadd.f32 %v391, %v408
      %v431 = vadd.f32 %v392, %v408
      %v432 = vadd.f32 %v393, %v408
      %v433 = vadd.f32 %v394, %v408
      %v434 = vadd.f32 %v395, %v408
      %v435 = vadd.f32 %v396, %v408
      %v436 = vadd.f32 %v397, %v408
      %v437 = vadd.f32 %v398, %v408
      %v438 = vadd.f32 %v399, %v408
      %v439 = vadd.f32 %v400, %v408
      %v440 = vadd.f32 %v401, %v408
      %v441 = vadd.f32 %v402, %v408
      %v442 = vmul.f32 %v410, 0.5
      %v443 = vmul.f32 %v411, 0.5
      %v444 = vmul.f32 %v412, 0.5
      %v445 = vmul.f32 %v413, 0.5
      %v446 = vmul.f32 %v414, 0.5
      %v447 = vmul.f32 %v415, 0.5
      %v448 = vmul.f32 %v416, 0.5
      %v449 = vmul.f32 %v417, 0.5
      %v450 = vmul.f32 %v418, 0.5
      %v451 = vmul.f32 %v419, 0.5
      %v452 = vmul.f32 %v420, 0.5
      %v453 = vmul.f32 %v421, 0.5
      %v454 = vmul.f32 %v422, 0.5
      %v455 = vmul.f32 %v423, 0.5
      %v456 = vmul.f32 %v424, 0.5
      %v457 = vmul.f32 %v425, 0.5
      %v458 = vmul.f32 %v426, 0.5
      %v459 = vmul.f32 %v427, 0.5
      %v460 = vmul.f32 %v428, 0.5
      %v461 = vmul.f32 %v429, 0.5
      %v462 = vmul.f32 %v430, 0.5
      %v463 = vmul.f32 %v431, 0.5
      %v464 = vmul.f32 %v432, 0.5
      %v465 = vmul.f32 %v433, 0.5
      %v466 = vmul.f32 %v434, 0.5
      %v467 = vmul.f32 %v435, 0.5
      %v468 = vmul.f32 %v436, 0.5
      %v469 = vmul.f32 %v437, 0.5
      %v470 = vmul.f32 %v438, 0.5
      %v471 = vmul.f32 %v439, 0.5
      %v472 = vmul.f32 %v440, 0.5
      %v473 = vmul.f32 %v441, 0.5
      %v474 = vmul.f32 %v410, 0.70710677
      %v475 = vmul.f32 %v411, 0.70710677
      %v476 = vmul.f32 %v412, 0.70710677
      %v477 = vmul.f32 %v413, 0.70710677
      %v478 = vmul.f32 %v414, 0.70710677
      %v479 = vmul.f32 %v415, 0.70710677
      %v480 = vmul.f32 %v416, 0.70710677
      %v481 = vmul.f32 %v417, 0.70710677
      %v482 = vmul.f32 %v418, 0.70710677
      %v483 = vmul.f32 %v419, 0.70710677
      %v484 = vmul.f32 %v420, 0.70710677
      %v485 = vmul.f32 %v421, 0.70710677
      %v486 = vmul.f32 %v422, 0.70710677
      %v487 = vmul.f32 %v423, 0.70710677
      %v488 = vmul.f32 %v424, 0.70710677
      %v489 = vmul.f32 %v425, 0.70710677
      %v490 = vmul.f32 %v426, 0.70710677
      %v491 = vmul.f32 %v427, 0.70710677
      %v492 = vmul.f32 %v428, 0.70710677
      %v493 = vmul.f32 %v429, 0.70710677
      %v494 = vmul.f32 %v430, 0.70710677
      %v495 = vmul.f32 %v431, 0.70710677
      %v496 = vmul.f32 %v432, 0.70710677
      %v497 = vmul.f32 %v433, 0.70710677
      %v498 = vmul.f32 %v434, 0.70710677
      %v499 = vmul.f32 %v435, 0.70710677
      %v500 = vmul.f32 %v436, 0.70710677
      %v501 = vmul.f32 %v437, 0.70710677
      %v502 = vmul.f32 %v438, 0.70710677
      %v503 = vmul.f32 %v439, 0.70710677
      %v504 = vmul.f32 %v440, 0.70710677
      %v505 = vmul.f32 %v441, 0.70710677
      %v506 = vand.u32 2147483647, %v474
      %v507 = vand.u32 2147483647, %v475
      %v508 = vand.u32 2147483647, %v476
      %v509 = vand.u32 2147483647, %v477
      %v510 = vand.u32 2147483647, %v478
      %v511 = vand.u32 2147483647, %v479
      %v512 = vand.u32 2147483647, %v480
      %v513 = vand.u32 2147483647, %v481
      %v514 = vand.u32 2147483647, %v482
      %v515 = vand.u32 2147483647, %v483
      %v516 = vand.u32 2147483647, %v484
      %v517 = vand.u32 2147483647, %v485
      %v518 = vand.u32 2147483647, %v486
      %v519 = vand.u32 2147483647, %v487
      %v520 = vand.u32 2147483647, %v488
      %v521 = vand.u32 2147483647, %v489
      %v522 = vand.u32 2147483647, %v490
      %v523 = vand.u32 2147483647, %v491
      %v524 = vand.u32 2147483647, %v492
      %v525 = vand.u32 2147483647, %v493
      %v526 = vand.u32 2147483647, %v494
      %v527 = vand.u32 2147483647, %v495
      %v528 = vand.u32 2147483647, %v496
      %v529 = vand.u32 2147483647, %v497
      %v530 = vand.u32 2147483647, %v498
      %v531 = vand.u32 2147483647, %v499
      %v532 = vand.u32 2147483647, %v500
      %v533 = vand.u32 2147483647, %v501
      %v534 = vand.u32 2147483647, %v502
      %v535 = vand.u32 2147483647, %v503
      %v536 = vand.u32 2147483647, %v504
      %v537 = vand.u32 2147483647, %v505
      %v538 = vmul.f32 %v506, 0.3275911
      %v539 = vmul.f32 %v507, 0.3275911
      %v540 = vmul.f32 %v508, 0.3275911
      %v541 = vmul.f32 %v509, 0.3275911
      %v542 = vmul.f32 %v510, 0.3275911
      %v543 = vmul.f32 %v511, 0.3275911
      %v544 = vmul.f32 %v512, 0.3275911
      %v545 = vmul.f32 %v513, 0.3275911
      %v546 = vmul.f32 %v514, 0.3275911
      %v547 = vmul.f32 %v515, 0.3275911
      %v548 = vmul.f32 %v516, 0.3275911
      %v549 = vmul.f32 %v517, 0.3275911
      %v550 = vmul.f32 %v518, 0.3275911
      %v551 = vmul.f32 %v519, 0.3275911
      %v552 = vmul.f32 %v520, 0.3275911
      %v553 = vmul.f32 %v521, 0.3275911
      %v554 = vmul.f32 %v522, 0.3275911
      %v555 = vmul.f32 %v523, 0.3275911
      %v556 = vmul.f32 %v524, 0.3275911
      %v557 = vmul.f32 %v525, 0.3275911
      %v558 = vmul.f32 %v526, 0.3275911
      %v559 = vmul.f32 %v527, 0.3275911
      %v560 = vmul.f32 %v528, 0.3275911
      %v561 = vmul.f32 %v529, 0.3275911
      %v562 = vmul.f32 %v530, 0.3275911
      %v563 = vmul.f32 %v531, 0.3275911
      %v564 = vmul.f32 %v532, 0.3275911
      %v565 = vmul.f32 %v533, 0.3275911
      %v566 = vmul.f32 %v534, 0.3275911
      %v567 = vmul.f32 %v535, 0.3275911
      %v568 = vmul.f32 %v536, 0.3275911
      %v569 = vmul.f32 %v537, 0.3275911
      %v570 = vadd.f32 %v538, 1.0
      %v571 = vadd.f32 %v539, 1.0
      %v572 = vadd.f32 %v540, 1.0
      %v573 = vadd.f32 %v541, 1.0
      %v574 = vadd.f32 %v542, 1.0
      %v575 = vadd.f32 %v543, 1.0
      %v576 = vadd.f32 %v544, 1.0
      %v577 = vadd.f32 %v545, 1.0
      %v578 = vadd.f32 %v546, 1.0
      %v579 = vadd.f32 %v547, 1.0
      %v580 = vadd.f32 %v548, 1.0
      %v581 = vadd.f32 %v549, 1.0
      %v582 = vadd.f32 %v550, 1.0
      %v583 = vadd.f32 %v551, 1.0
      %v584 = vadd.f32 %v552, 1.0
      %v585 = vadd.f32 %v553, 1.0
      %v586 = vadd.f32 %v554, 1.0
      %v587 = vadd.f32 %v555, 1.0
      %v588 = vadd.f32 %v556, 1.0
      %v589 = vadd.f32 %v557, 1.0
      %v590 = vadd.f32 %v558, 1.0
      %v591 = vadd.f32 %v559, 1.0
      %v592 = vadd.f32 %v560, 1.0
      %v593 = vadd.f32 %v561, 1.0
      %v594 = vadd.f32 %v562, 1.0
      %v595 = vadd.f32 %v563, 1.0
      %v596 = vadd.f32 %v564, 1.0
      %v597 = vadd.f32 %v565, 1.0
      %v598 = vadd.f32 %v566, 1.0
      %v599 = vadd.f32 %v567, 1.0
      %v600 = vadd.f32 %v568, 1.0
      %v601 = vadd.f32 %v569, 1.0
      %v602 = vrcp.pop %v570
      %v603 = vmul.f32 1.0, %v602
      %v604 = vrcp.pop %v571
      %v605 = vmul.f32 1.0, %v604
      %v606 = vrcp.pop %v572
      %v607 = vmul.f32 1.0, %v606
      %v608 = vrcp.pop %v573
      %v609 = vmul.f32 1.0, %v608
      %v610 = vrcp.pop %v574
      %v611 = vmul.f32 1.0, %v610
      %v612 = vrcp.pop %v575
      %v613 = vmul.f32 1.0, %v612
      %v614 = vrcp.pop %v576
      %v615 = vmul.f32 1.0, %v614
      %v616 = vrcp.pop %v577
      %v617 = vmul.f32 1.0, %v616
      %v618 = vrcp.pop %v578
      %v619 = vmul.f32 1.0, %v618
      %v620 = vrcp.pop %v579
      %v621 = vmul.f32 1.0, %v620
      %v622 = vrcp.pop %v580
      %v623 = vmul.f32 1.0, %v622
      %v624 = vrcp.pop %v581
      %v625 = vmul.f32 1.0, %v624
      %v626 = vrcp.pop %v582
      %v627 = vmul.f32 1.0, %v626
      %v628 = vrcp.pop %v583
      %v629 = vmul.f32 1.0, %v628
      %v630 = vrcp.pop %v584
      %v631 = vmul.f32 1.0, %v630
      %v632 = vrcp.pop %v585
      %v633 = vmul.f32 1.0, %v632
      %v634 = vrcp.pop %v586
      %v635 = vmul.f32 1.0, %v634
      %v636 = vrcp.pop %v587
      %v637 = vmul.f32 1.0, %v636
      %v638 = vrcp.pop %v588
      %v639 = vmul.f32 1.0, %v638
      %v640 = vrcp.pop %v589
      %v641 = vmul.f32 1.0, %v640
      %v642 = vrcp.pop %v590
      %v643 = vmul.f32 1.0, %v642
      %v644 = vrcp.pop %v591
      %v645 = vmul.f32 1.0, %v644
      %v646 = vrcp.pop %v592
      %v647 = vmul.f32 1.0, %v646
      %v648 = vrcp.pop %v593
      %v649 = vmul.f32 1.0, %v648
      %v650 = vrcp.pop %v594
      %v651 = vmul.f32 1.0, %v650
      %v652 = vrcp.pop %v595
      %v653 = vmul.f32 1.0, %v652
      %v654 = vrcp.pop %v596
      %v655 = vmul.f32 1.0, %v654
      %v656 = vrcp.pop %v597
      %v657 = vmul.f32 1.0, %v656
      %v658 = vrcp.pop %v598
      %v659 = vmul.f32 1.0, %v658
      %v660 = vrcp.pop %v599
      %v661 = vmul.f32 1.0, %v660
      %v662 = vrcp.pop %v600
      %v663 = vmul.f32 1.0, %v662
      %v664 = vrcp.pop %v601
      %v665 = vmul.f32 1.0, %v664
      %v666 = vmul.f32 %v603, 1.0614054
      %v667 = vmul.f32 %v605, 1.0614054
      %v668 = vmul.f32 %v607, 1.0614054
      %v669 = vmul.f32 %v609, 1.0614054
      %v670 = vmul.f32 %v611, 1.0614054
      %v671 = vmul.f32 %v613, 1.0614054
      %v672 = vmul.f32 %v615, 1.0614054
      %v673 = vmul.f32 %v617, 1.0614054
      %v674 = vmul.f32 %v619, 1.0614054
      %v675 = vmul.f32 %v621, 1.0614054
      %v676 = vmul.f32 %v623, 1.0614054
      %v677 = vmul.f32 %v625, 1.0614054
      %v678 = vmul.f32 %v627, 1.0614054
      %v679 = vmul.f32 %v629, 1.0614054
      %v680 = vmul.f32 %v631, 1.0614054
      %v681 = vmul.f32 %v633, 1.0614054
      %v682 = vmul.f32 %v635, 1.0614054
      %v683 = vmul.f32 %v637, 1.0614054
      %v684 = vmul.f32 %v639, 1.0614054
      %v685 = vmul.f32 %v641, 1.0614054
      %v686 = vmul.f32 %v643, 1.0614054
      %v687 = vmul.f32 %v645, 1.0614054
      %v688 = vmul.f32 %v647, 1.0614054
      %v689 = vmul.f32 %v649, 1.0614054
      %v690 = vmul.f32 %v651, 1.0614054
      %v691 = vmul.f32 %v653, 1.0614054
      %v692 = vmul.f32 %v655, 1.0614054
      %v693 = vmul.f32 %v657, 1.0614054
      %v694 = vmul.f32 %v659, 1.0614054
      %v695 = vmul.f32 %v661, 1.0614054
      %v696 = vmul.f32 %v663, 1.0614054
      %v697 = vmul.f32 %v665, 1.0614054
      %v698 = vadd.f32 %v666, -1.4531521
      %v699 = vadd.f32 %v667, -1.4531521
      %v700 = vadd.f32 %v668, -1.4531521
      %v701 = vadd.f32 %v669, -1.4531521
      %v702 = vadd.f32 %v670, -1.4531521
      %v703 = vadd.f32 %v671, -1.4531521
      %v704 = vadd.f32 %v672, -1.4531521
      %v705 = vadd.f32 %v673, -1.4531521
      %v706 = vadd.f32 %v674, -1.4531521
      %v707 = vadd.f32 %v675, -1.4531521
      %v708 = vadd.f32 %v676, -1.4531521
      %v709 = vadd.f32 %v677, -1.4531521
      %v710 = vadd.f32 %v678, -1.4531521
      %v711 = vadd.f32 %v679, -1.4531521
      %v712 = vadd.f32 %v680, -1.4531521
      %v713 = vadd.f32 %v681, -1.4531521
      %v714 = vadd.f32 %v682, -1.4531521
      %v715 = vadd.f32 %v683, -1.4531521
      %v716 = vadd.f32 %v684, -1.4531521
      %v717 = vadd.f32 %v685, -1.4531521
      %v718 = vadd.f32 %v686, -1.4531521
      %v719 = vadd.f32 %v687, -1.4531521
      %v720 = vadd.f32 %v688, -1.4531521
      %v721 = vadd.f32 %v689, -1.4531521
      %v722 = vadd.f32 %v690, -1.4531521
      %v723 = vadd.f32 %v691, -1.4531521
      %v724 = vadd.f32 %v692, -1.4531521
      %v725 = vadd.f32 %v693, -1.4531521
      %v726 = vadd.f32 %v694, -1.4531521
      %v727 = vadd.f32 %v695, -1.4531521
      %v728 = vadd.f32 %v696, -1.4531521
      %v729 = vadd.f32 %v697, -1.4531521
      %v730 = vmul.f32 %v698, %v603
      %v731 = vmul.f32 %v699, %v605
      %v732 = vmul.f32 %v700, %v607
      %v733 = vmul.f32 %v701, %v609
      %v734 = vmul.f32 %v702, %v611
      %v735 = vmul.f32 %v703, %v613
      %v736 = vmul.f32 %v704, %v615
      %v737 = vmul.f32 %v705, %v617
      %v738 = vmul.f32 %v706, %v619
      %v739 = vmul.f32 %v707, %v621
      %v740 = vmul.f32 %v708, %v623
      %v741 = vmul.f32 %v709, %v625
      %v742 = vmul.f32 %v710, %v627
      %v743 = vmul.f32 %v711, %v629
      %v744 = vmul.f32 %v712, %v631
      %v745 = vmul.f32 %v713, %v633
      %v746 = vmul.f32 %v714, %v635
      %v747 = vmul.f32 %v715, %v637
      %v748 = vmul.f32 %v716, %v639
      %v749 = vmul.f32 %v717, %v641
      %v750 = vmul.f32 %v718, %v643
      %v751 = vmul.f32 %v719, %v645
      %v752 = vmul.f32 %v720, %v647
      %v753 = vmul.f32 %v721, %v649
      %v754 = vmul.f32 %v722, %v651
      %v755 = vmul.f32 %v723, %v653
      %v756 = vmul.f32 %v724, %v655
      %v757 = vmul.f32 %v725, %v657
      %v758 = vmul.f32 %v726, %v659
      %v759 = vmul.f32 %v727, %v661
      %v760 = vmul.f32 %v728, %v663
      %v761 = vmul.f32 %v729, %v665
      %v762 = vadd.f32 %v730, 1.4214138
      %v763 = vadd.f32 %v731, 1.4214138
      %v764 = vadd.f32 %v732, 1.4214138
      %v765 = vadd.f32 %v733, 1.4214138
      %v766 = vadd.f32 %v734, 1.4214138
      %v767 = vadd.f32 %v735, 1.4214138
      %v768 = vadd.f32 %v736, 1.4214138
      %v769 = vadd.f32 %v737, 1.4214138
      %v770 = vadd.f32 %v738, 1.4214138
      %v771 = vadd.f32 %v739, 1.4214138
      %v772 = vadd.f32 %v740, 1.4214138
      %v773 = vadd.f32 %v741, 1.4214138
      %v774 = vadd.f32 %v742, 1.4214138
      %v775 = vadd.f32 %v743, 1.4214138
      %v776 = vadd.f32 %v744, 1.4214138
      %v777 = vadd.f32 %v745, 1.4214138
      %v778 = vadd.f32 %v746, 1.4214138
      %v779 = vadd.f32 %v747, 1.4214138
      %v780 = vadd.f32 %v748, 1.4214138
      %v781 = vadd.f32 %v749, 1.4214138
      %v782 = vadd.f32 %v750, 1.4214138
      %v783 = vadd.f32 %v751, 1.4214138
      %v784 = vadd.f32 %v752, 1.4214138
      %v785 = vadd.f32 %v753, 1.4214138
      %v786 = vadd.f32 %v754, 1.4214138
      %v787 = vadd.f32 %v755, 1.4214138
      %v788 = vadd.f32 %v756, 1.4214138
      %v789 = vadd.f32 %v757, 1.4214138
      %v790 = vadd.f32 %v758, 1.4214138
      %v791 = vadd.f32 %v759, 1.4214138
      %v792 = vadd.f32 %v760, 1.4214138
      %v793 = vadd.f32 %v761, 1.4214138
      %v794 = vmul.f32 %v762, %v603
      %v795 = vmul.f32 %v763, %v605
      %v796 = vmul.f32 %v764, %v607
      %v797 = vmul.f32 %v765, %v609
      %v798 = vmul.f32 %v766, %v611
      %v799 = vmul.f32 %v767, %v613
      %v800 = vmul.f32 %v768, %v615
      %v801 = vmul.f32 %v769, %v617
      %v802 = vmul.f32 %v770, %v619
      %v803 = vmul.f32 %v771, %v621
      %v804 = vmul.f32 %v772, %v623
      %v805 = vmul.f32 %v773, %v625
      %v806 = vmul.f32 %v774, %v627
      %v807 = vmul.f32 %v775, %v629
      %v808 = vmul.f32 %v776, %v631
      %v809 = vmul.f32 %v777, %v633
      %v810 = vmul.f32 %v778, %v635
      %v811 = vmul.f32 %v779, %v637
      %v812 = vmul.f32 %v780, %v639
      %v813 = vmul.f32 %v781, %v641
      %v814 = vmul.f32 %v782, %v643
      %v815 = vmul.f32 %v783, %v645
      %v816 = vmul.f32 %v784, %v647
      %v817 = vmul.f32 %v785, %v649
      %v818 = vmul.f32 %v786, %v651
      %v819 = vmul.f32 %v787, %v653
      %v820 = vmul.f32 %v788, %v655
      %v821 = vmul.f32 %v789, %v657
      %v822 = vmul.f32 %v790, %v659
      %v823 = vmul.f32 %v791, %v661
      %v824 = vmul.f32 %v792, %v663
      %v825 = vmul.f32 %v793, %v665
      %v826 = vadd.f32 %v794, -0.28449672
      %v827 = vadd.f32 %v795, -0.28449672
      %v828 = vadd.f32 %v796, -0.28449672
      %v829 = vadd.f32 %v797, -0.28449672
      %v830 = vadd.f32 %v798, -0.28449672
      %v831 = vadd.f32 %v799, -0.28449672
      %v832 = vadd.f32 %v800, -0.28449672
      %v833 = vadd.f32 %v801, -0.28449672
      %v834 = vadd.f32 %v802, -0.28449672
      %v835 = vadd.f32 %v803, -0.28449672
      %v836 = vadd.f32 %v804, -0.28449672
      %v837 = vadd.f32 %v805, -0.28449672
      %v838 = vadd.f32 %v806, -0.28449672
      %v839 = vadd.f32 %v807, -0.28449672
      %v840 = vadd.f32 %v808, -0.28449672
      %v841 = vadd.f32 %v809, -0.28449672
      %v842 = vadd.f32 %v810, -0.28449672
      %v843 = vadd.f32 %v811, -0.28449672
      %v844 = vadd.f32 %v812, -0.28449672
      %v845 = vadd.f32 %v813, -0.28449672
      %v846 = vadd.f32 %v814, -0.28449672
      %v847 = vadd.f32 %v815, -0.28449672
      %v848 = vadd.f32 %v816, -0.28449672
      %v849 = vadd.f32 %v817, -0.28449672
      %v850 = vadd.f32 %v818, -0.28449672
      %v851 = vadd.f32 %v819, -0.28449672
      %v852 = vadd.f32 %v820, -0.28449672
      %v853 = vadd.f32 %v821, -0.28449672
      %v854 = vadd.f32 %v822, -0.28449672
      %v855 = vadd.f32 %v823, -0.28449672
      %v856 = vadd.f32 %v824, -0.28449672
      %v857 = vadd.f32 %v825, -0.28449672
      %v858 = vmul.f32 %v826, %v603
      %v859 = vmul.f32 %v827, %v605
      %v860 = vmul.f32 %v828, %v607
      %v861 = vmul.f32 %v829, %v609
      %v862 = vmul.f32 %v830, %v611
      %v863 = vmul.f32 %v831, %v613
      %v864 = vmul.f32 %v832, %v615
      %v865 = vmul.f32 %v833, %v617
      %v866 = vmul.f32 %v834, %v619
      %v867 = vmul.f32 %v835, %v621
      %v868 = vmul.f32 %v836, %v623
      %v869 = vmul.f32 %v837, %v625
      %v870 = vmul.f32 %v838, %v627
      %v871 = vmul.f32 %v839, %v629
      %v872 = vmul.f32 %v840, %v631
      %v873 = vmul.f32 %v841, %v633
      %v874 = vmul.f32 %v842, %v635
      %v875 = vmul.f32 %v843, %v637
      %v876 = vmul.f32 %v844, %v639
      %v877 = vmul.f32 %v845, %v641
      %v878 = vmul.f32 %v846, %v643
      %v879 = vmul.f32 %v847, %v645
      %v880 = vmul.f32 %v848, %v647
      %v881 = vmul.f32 %v849, %v649
      %v882 = vmul.f32 %v850, %v651
      %v883 = vmul.f32 %v851, %v653
      %v884 = vmul.f32 %v852, %v655
      %v885 = vmul.f32 %v853, %v657
      %v886 = vmul.f32 %v854, %v659
      %v887 = vmul.f32 %v855, %v661
      %v888 = vmul.f32 %v856, %v663
      %v889 = vmul.f32 %v857, %v665
      %v890 = vadd.f32 %v858, 0.2548296
      %v891 = vadd.f32 %v859, 0.2548296
      %v892 = vadd.f32 %v860, 0.2548296
      %v893 = vadd.f32 %v861, 0.2548296
      %v894 = vadd.f32 %v862, 0.2548296
      %v895 = vadd.f32 %v863, 0.2548296
      %v896 = vadd.f32 %v864, 0.2548296
      %v897 = vadd.f32 %v865, 0.2548296
      %v898 = vadd.f32 %v866, 0.2548296
      %v899 = vadd.f32 %v867, 0.2548296
      %v900 = vadd.f32 %v868, 0.2548296
      %v901 = vadd.f32 %v869, 0.2548296
      %v902 = vadd.f32 %v870, 0.2548296
      %v903 = vadd.f32 %v871, 0.2548296
      %v904 = vadd.f32 %v872, 0.2548296
      %v905 = vadd.f32 %v873, 0.2548296
      %v906 = vadd.f32 %v874, 0.2548296
      %v907 = vadd.f32 %v875, 0.2548296
      %v908 = vadd.f32 %v876, 0.2548296
      %v909 = vadd.f32 %v877, 0.2548296
      %v910 = vadd.f32 %v878, 0.2548296
      %v911 = vadd.f32 %v879, 0.2548296
      %v912 = vadd.f32 %v880, 0.2548296
      %v913 = vadd.f32 %v881, 0.2548296
      %v914 = vadd.f32 %v882, 0.2548296
      %v915 = vadd.f32 %v883, 0.2548296
      %v916 = vadd.f32 %v884, 0.2548296
      %v917 = vadd.f32 %v885, 0.2548296
      %v918 = vadd.f32 %v886, 0.2548296
      %v919 = vadd.f32 %v887, 0.2548296
      %v920 = vadd.f32 %v888, 0.2548296
      %v921 = vadd.f32 %v889, 0.2548296
      %v922 = vmul.f32 %v890, %v603
      %v923 = vmul.f32 %v891, %v605
      %v924 = vmul.f32 %v892, %v607
      %v925 = vmul.f32 %v893, %v609
      %v926 = vmul.f32 %v894, %v611
      %v927 = vmul.f32 %v895, %v613
      %v928 = vmul.f32 %v896, %v615
      %v929 = vmul.f32 %v897, %v617
      %v930 = vmul.f32 %v898, %v619
      %v931 = vmul.f32 %v899, %v621
      %v932 = vmul.f32 %v900, %v623
      %v933 = vmul.f32 %v901, %v625
      %v934 = vmul.f32 %v902, %v627
      %v935 = vmul.f32 %v903, %v629
      %v936 = vmul.f32 %v904, %v631
      %v937 = vmul.f32 %v905, %v633
      %v938 = vmul.f32 %v906, %v635
      %v939 = vmul.f32 %v907, %v637
      %v940 = vmul.f32 %v908, %v639
      %v941 = vmul.f32 %v909, %v641
      %v942 = vmul.f32 %v910, %v643
      %v943 = vmul.f32 %v911, %v645
      %v944 = vmul.f32 %v912, %v647
      %v945 = vmul.f32 %v913, %v649
      %v946 = vmul.f32 %v914, %v651
      %v947 = vmul.f32 %v915, %v653
      %v948 = vmul.f32 %v916, %v655
      %v949 = vmul.f32 %v917, %v657
      %v950 = vmul.f32 %v918, %v659
      %v951 = vmul.f32 %v919, %v661
      %v952 = vmul.f32 %v920, %v663
      %v953 = vmul.f32 %v921, %v665
      %v954 = vsub.f32 0.0, %v506
      %v955 = vsub.f32 0.0, %v507
      %v956 = vsub.f32 0.0, %v508
      %v957 = vsub.f32 0.0, %v509
      %v958 = vsub.f32 0.0, %v510
      %v959 = vsub.f32 0.0, %v511
      %v960 = vsub.f32 0.0, %v512
      %v961 = vsub.f32 0.0, %v513
      %v962 = vsub.f32 0.0, %v514
      %v963 = vsub.f32 0.0, %v515
      %v964 = vsub.f32 0.0, %v516
      %v965 = vsub.f32 0.0, %v517
      %v966 = vsub.f32 0.0, %v518
      %v967 = vsub.f32 0.0, %v519
      %v968 = vsub.f32 0.0, %v520
      %v969 = vsub.f32 0.0, %v521
      %v970 = vsub.f32 0.0, %v522
      %v971 = vsub.f32 0.0, %v523
      %v972 = vsub.f32 0.0, %v524
      %v973 = vsub.f32 0.0, %v525
      %v974 = vsub.f32 0.0, %v526
      %v975 = vsub.f32 0.0, %v527
      %v976 = vsub.f32 0.0, %v528
      %v977 = vsub.f32 0.0, %v529
      %v978 = vsub.f32 0.0, %v530
      %v979 = vsub.f32 0.0, %v531
      %v980 = vsub.f32 0.0, %v532
      %v981 = vsub.f32 0.0, %v533
      %v982 = vsub.f32 0.0, %v534
      %v983 = vsub.f32 0.0, %v535
      %v984 = vsub.f32 0.0, %v536
      %v985 = vsub.f32 0.0, %v537
      %v986 = vmul.f32 %v954, %v506
      %v987 = vmul.f32 %v955, %v507
      %v988 = vmul.f32 %v956, %v508
      %v989 = vmul.f32 %v957, %v509
      %v990 = vmul.f32 %v958, %v510
      %v991 = vmul.f32 %v959, %v511
      %v992 = vmul.f32 %v960, %v512
      %v993 = vmul.f32 %v961, %v513
      %v994 = vmul.f32 %v962, %v514
      %v995 = vmul.f32 %v963, %v515
      %v996 = vmul.f32 %v964, %v516
      %v997 = vmul.f32 %v965, %v517
      %v998 = vmul.f32 %v966, %v518
      %v999 = vmul.f32 %v967, %v519
      %v1000 = vmul.f32 %v968, %v520
      %v1001 = vmul.f32 %v969, %v521
      %v1002 = vmul.f32 %v970, %v522
      %v1003 = vmul.f32 %v971, %v523
      %v1004 = vmul.f32 %v972, %v524
      %v1005 = vmul.f32 %v973, %v525
      %v1006 = vmul.f32 %v974, %v526
      %v1007 = vmul.f32 %v975, %v527
      %v1008 = vmul.f32 %v976, %v528
      %v1009 = vmul.f32 %v977, %v529
      %v1010 = vmul.f32 %v978, %v530
      %v1011 = vmul.f32 %v979, %v531
      %v1012 = vmul.f32 %v980, %v532
      %v1013 = vmul.f32 %v981, %v533
      %v1014 = vmul.f32 %v982, %v534
      %v1015 = vmul.f32 %v983, %v535
      %v1016 = vmul.f32 %v984, %v536
      %v1017 = vmul.f32 %v985, %v537
      %v1018 = vmul.f32 %v986, 1.442695
      %v1019 = vpow.pop %v1018
      %v1020 = vmul.f32 %v987, 1.442695
      %v1021 = vpow.pop %v1020
      %v1022 = vmul.f32 %v988, 1.442695
      %v1023 = vpow.pop %v1022
      %v1024 = vmul.f32 %v989, 1.442695
      %v1025 = vpow.pop %v1024
      %v1026 = vmul.f32 %v990, 1.442695
      %v1027 = vpow.pop %v1026
      %v1028 = vmul.f32 %v991, 1.442695
      %v1029 = vpow.pop %v1028
      %v1030 = vmul.f32 %v992, 1.442695
      %v1031 = vpow.pop %v1030
      %v1032 = vmul.f32 %v993, 1.442695
      %v1033 = vpow.pop %v1032
      %v1034 = vmul.f32 %v994, 1.442695
      %v1035 = vpow.pop %v1034
      %v1036 = vmul.f32 %v995, 1.442695
      %v1037 = vpow.pop %v1036
      %v1038 = vmul.f32 %v996, 1.442695
      %v1039 = vpow.pop %v1038
      %v1040 = vmul.f32 %v997, 1.442695
      %v1041 = vpow.pop %v1040
      %v1042 = vmul.f32 %v998, 1.442695
      %v1043 = vpow.pop %v1042
      %v1044 = vmul.f32 %v999, 1.442695
      %v1045 = vpow.pop %v1044
      %v1046 = vmul.f32 %v1000, 1.442695
      %v1047 = vpow.pop %v1046
      %v1048 = vmul.f32 %v1001, 1.442695
      %v1049 = vpow.pop %v1048
      %v1050 = vmul.f32 %v1002, 1.442695
      %v1051 = vpow.pop %v1050
      %v1052 = vmul.f32 %v1003, 1.442695
      %v1053 = vpow.pop %v1052
      %v1054 = vmul.f32 %v1004, 1.442695
      %v1055 = vpow.pop %v1054
      %v1056 = vmul.f32 %v1005, 1.442695
      %v1057 = vpow.pop %v1056
      %v1058 = vmul.f32 %v1006, 1.442695
      %v1059 = vpow.pop %v1058
      %v1060 = vmul.f32 %v1007, 1.442695
      %v1061 = vpow.pop %v1060
      %v1062 = vmul.f32 %v1008, 1.442695
      %v1063 = vpow.pop %v1062
      %v1064 = vmul.f32 %v1009, 1.442695
      %v1065 = vpow.pop %v1064
      %v1066 = vmul.f32 %v1010, 1.442695
      %v1067 = vpow.pop %v1066
      %v1068 = vmul.f32 %v1011, 1.442695
      %v1069 = vpow.pop %v1068
      %v1070 = vmul.f32 %v1012, 1.442695
      %v1071 = vpow.pop %v1070
      %v1072 = vmul.f32 %v1013, 1.442695
      %v1073 = vpow.pop %v1072
      %v1074 = vmul.f32 %v1014, 1.442695
      %v1075 = vpow.pop %v1074
      %v1076 = vmul.f32 %v1015, 1.442695
      %v1077 = vpow.pop %v1076
      %v1078 = vmul.f32 %v1016, 1.442695
      %v1079 = vpow.pop %v1078
      %v1080 = vmul.f32 %v1017, 1.442695
      %v1081 = vpow.pop %v1080
      %v1082 = vmul.f32 %v922, %v1019
      %v1083 = vmul.f32 %v923, %v1021
      %v1084 = vmul.f32 %v924, %v1023
      %v1085 = vmul.f32 %v925, %v1025
      %v1086 = vmul.f32 %v926, %v1027
      %v1087 = vmul.f32 %v927, %v1029
      %v1088 = vmul.f32 %v928, %v1031
      %v1089 = vmul.f32 %v929, %v1033
      %v1090 = vmul.f32 %v930, %v1035
      %v1091 = vmul.f32 %v931, %v1037
      %v1092 = vmul.f32 %v932, %v1039
      %v1093 = vmul.f32 %v933, %v1041
      %v1094 = vmul.f32 %v934, %v1043
      %v1095 = vmul.f32 %v935, %v1045
      %v1096 = vmul.f32 %v936, %v1047
      %v1097 = vmul.f32 %v937, %v1049
      %v1098 = vmul.f32 %v938, %v1051
      %v1099 = vmul.f32 %v939, %v1053
      %v1100 = vmul.f32 %v940, %v1055
      %v1101 = vmul.f32 %v941, %v1057
      %v1102 = vmul.f32 %v942, %v1059
      %v1103 = vmul.f32 %v943, %v1061
      %v1104 = vmul.f32 %v944, %v1063
      %v1105 = vmul.f32 %v945, %v1065
      %v1106 = vmul.f32 %v946, %v1067
      %v1107 = vmul.f32 %v947, %v1069
      %v1108 = vmul.f32 %v948, %v1071
      %v1109 = vmul.f32 %v949, %v1073
      %v1110 = vmul.f32 %v950, %v1075
      %v1111 = vmul.f32 %v951, %v1077
      %v1112 = vmul.f32 %v952, %v1079
      %v1113 = vmul.f32 %v953, %v1081
      %v1114 = vsub.f32 1.0, %v1082
      %v1115 = vsub.f32 1.0, %v1083
      %v1116 = vsub.f32 1.0, %v1084
      %v1117 = vsub.f32 1.0, %v1085
      %v1118 = vsub.f32 1.0, %v1086
      %v1119 = vsub.f32 1.0, %v1087
      %v1120 = vsub.f32 1.0, %v1088
      %v1121 = vsub.f32 1.0, %v1089
      %v1122 = vsub.f32 1.0, %v1090
      %v1123 = vsub.f32 1.0, %v1091
      %v1124 = vsub.f32 1.0, %v1092
      %v1125 = vsub.f32 1.0, %v1093
      %v1126 = vsub.f32 1.0, %v1094
      %v1127 = vsub.f32 1.0, %v1095
      %v1128 = vsub.f32 1.0, %v1096
      %v1129 = vsub.f32 1.0, %v1097
      %v1130 = vsub.f32 1.0, %v1098
      %v1131 = vsub.f32 1.0, %v1099
      %v1132 = vsub.f32 1.0, %v1100
      %v1133 = vsub.f32 1.0, %v1101
      %v1134 = vsub.f32 1.0, %v1102
      %v1135 = vsub.f32 1.0, %v1103
      %v1136 = vsub.f32 1.0, %v1104
      %v1137 = vsub.f32 1.0, %v1105
      %v1138 = vsub.f32 1.0, %v1106
      %v1139 = vsub.f32 1.0, %v1107
      %v1140 = vsub.f32 1.0, %v1108
      %v1141 = vsub.f32 1.0, %v1109
      %v1142 = vsub.f32 1.0, %v1110
      %v1143 = vsub.f32 1.0, %v1111
      %v1144 = vsub.f32 1.0, %v1112
      %v1145 = vsub.f32 1.0, %v1113
      %vm1146 = vcmp.ge.f32.partialorder %v474, 0.0
      %vm1147 = vcmp.ge.f32.partialorder %v475, 0.0
      %vm1148 = vcmp.ge.f32.partialorder %v476, 0.0
      %vm1149 = vcmp.ge.f32.partialorder %v477, 0.0
      %vm1150 = vcmp.ge.f32.partialorder %v478, 0.0
      %vm1151 = vcmp.ge.f32.partialorder %v479, 0.0
      %vm1152 = vcmp.ge.f32.partialorder %v480, 0.0
      %vm1153 = vcmp.ge.f32.partialorder %v481, 0.0
      %vm1154 = vcmp.ge.f32.partialorder %v482, 0.0
      %vm1155 = vcmp.ge.f32.partialorder %v483, 0.0
      %vm1156 = vcmp.ge.f32.partialorder %v484, 0.0
      %vm1157 = vcmp.ge.f32.partialorder %v485, 0.0
      %vm1158 = vcmp.ge.f32.partialorder %v486, 0.0
      %vm1159 = vcmp.ge.f32.partialorder %v487, 0.0
      %vm1160 = vcmp.ge.f32.partialorder %v488, 0.0
      %vm1161 = vcmp.ge.f32.partialorder %v489, 0.0
      %vm1162 = vcmp.ge.f32.partialorder %v490, 0.0
      %vm1163 = vcmp.ge.f32.partialorder %v491, 0.0
      %vm1164 = vcmp.ge.f32.partialorder %v492, 0.0
      %vm1165 = vcmp.ge.f32.partialorder %v493, 0.0
      %vm1166 = vcmp.ge.f32.partialorder %v494, 0.0
      %vm1167 = vcmp.ge.f32.partialorder %v495, 0.0
      %vm1168 = vcmp.ge.f32.partialorder %v496, 0.0
      %vm1169 = vcmp.ge.f32.partialorder %v497, 0.0
      %vm1170 = vcmp.ge.f32.partialorder %v498, 0.0
      %vm1171 = vcmp.ge.f32.partialorder %v499, 0.0
      %vm1172 = vcmp.ge.f32.partialorder %v500, 0.0
      %vm1173 = vcmp.ge.f32.partialorder %v501, 0.0
      %vm1174 = vcmp.ge.f32.partialorder %v502, 0.0
      %vm1175 = vcmp.ge.f32.partialorder %v503, 0.0
      %vm1176 = vcmp.ge.f32.partialorder %v504, 0.0
      %vm1177 = vcmp.ge.f32.partialorder %v505, 0.0
      %v1178 = vsub.f32 0.0, %v1114
      %v1179 = vsub.f32 0.0, %v1115
      %v1180 = vsub.f32 0.0, %v1116
      %v1181 = vsub.f32 0.0, %v1117
      %v1182 = vsub.f32 0.0, %v1118
      %v1183 = vsub.f32 0.0, %v1119
      %v1184 = vsub.f32 0.0, %v1120
      %v1185 = vsub.f32 0.0, %v1121
      %v1186 = vsub.f32 0.0, %v1122
      %v1187 = vsub.f32 0.0, %v1123
      %v1188 = vsub.f32 0.0, %v1124
      %v1189 = vsub.f32 0.0, %v1125
      %v1190 = vsub.f32 0.0, %v1126
      %v1191 = vsub.f32 0.0, %v1127
      %v1192 = vsub.f32 0.0, %v1128
      %v1193 = vsub.f32 0.0, %v1129
      %v1194 = vsub.f32 0.0, %v1130
      %v1195 = vsub.f32 0.0, %v1131
      %v1196 = vsub.f32 0.0, %v1132
      %v1197 = vsub.f32 0.0, %v1133
      %v1198 = vsub.f32 0.0, %v1134
      %v1199 = vsub.f32 0.0, %v1135
      %v1200 = vsub.f32 0.0, %v1136
      %v1201 = vsub.f32 0.0, %v1137
      %v1202 = vsub.f32 0.0, %v1138
      %v1203 = vsub.f32 0.0, %v1139
      %v1204 = vsub.f32 0.0, %v1140
      %v1205 = vsub.f32 0.0, %v1141
      %v1206 = vsub.f32 0.0, %v1142
      %v1207 = vsub.f32 0.0, %v1143
      %v1208 = vsub.f32 0.0, %v1144
      %v1209 = vsub.f32 0.0, %v1145
      %v1210 = vsel %vm1146, %v1114, %v1178
      %v1211 = vsel %vm1147, %v1115, %v1179
      %v1212 = vsel %vm1148, %v1116, %v1180
      %v1213 = vsel %vm1149, %v1117, %v1181
      %v1214 = vsel %vm1150, %v1118, %v1182
      %v1215 = vsel %vm1151, %v1119, %v1183
      %v1216 = vsel %vm1152, %v1120, %v1184
      %v1217 = vsel %vm1153, %v1121, %v1185
      %v1218 = vsel %vm1154, %v1122, %v1186
      %v1219 = vsel %vm1155, %v1123, %v1187
      %v1220 = vsel %vm1156, %v1124, %v1188
      %v1221 = vsel %vm1157, %v1125, %v1189
      %v1222 = vsel %vm1158, %v1126, %v1190
      %v1223 = vsel %vm1159, %v1127, %v1191
      %v1224 = vsel %vm1160, %v1128, %v1192
      %v1225 = vsel %vm1161, %v1129, %v1193
      %v1226 = vsel %vm1162, %v1130, %v1194
      %v1227 = vsel %vm1163, %v1131, %v1195
      %v1228 = vsel %vm1164, %v1132, %v1196
      %v1229 = vsel %vm1165, %v1133, %v1197
      %v1230 = vsel %vm1166, %v1134, %v1198
      %v1231 = vsel %vm1167, %v1135, %v1199
      %v1232 = vsel %vm1168, %v1136, %v1200
      %v1233 = vsel %vm1169, %v1137, %v1201
      %v1234 = vsel %vm1170, %v1138, %v1202
      %v1235 = vsel %vm1171, %v1139, %v1203
      %v1236 = vsel %vm1172, %v1140, %v1204
      %v1237 = vsel %vm1173, %v1141, %v1205
      %v1238 = vsel %vm1174, %v1142, %v1206
      %v1239 = vsel %vm1175, %v1143, %v1207
      %v1240 = vsel %vm1176, %v1144, %v1208
      %v1241 = vsel %vm1177, %v1145, %v1209
      %v1242 = vadd.f32 %v1210, 1.0
      %v1243 = vadd.f32 %v1211, 1.0
      %v1244 = vadd.f32 %v1212, 1.0
      %v1245 = vadd.f32 %v1213, 1.0
      %v1246 = vadd.f32 %v1214, 1.0
      %v1247 = vadd.f32 %v1215, 1.0
      %v1248 = vadd.f32 %v1216, 1.0
      %v1249 = vadd.f32 %v1217, 1.0
      %v1250 = vadd.f32 %v1218, 1.0
      %v1251 = vadd.f32 %v1219, 1.0
      %v1252 = vadd.f32 %v1220, 1.0
      %v1253 = vadd.f32 %v1221, 1.0
      %v1254 = vadd.f32 %v1222, 1.0
      %v1255 = vadd.f32 %v1223, 1.0
      %v1256 = vadd.f32 %v1224, 1.0
      %v1257 = vadd.f32 %v1225, 1.0
      %v1258 = vadd.f32 %v1226, 1.0
      %v1259 = vadd.f32 %v1227, 1.0
      %v1260 = vadd.f32 %v1228, 1.0
      %v1261 = vadd.f32 %v1229, 1.0
      %v1262 = vadd.f32 %v1230, 1.0
      %v1263 = vadd.f32 %v1231, 1.0
      %v1264 = vadd.f32 %v1232, 1.0
      %v1265 = vadd.f32 %v1233, 1.0
      %v1266 = vadd.f32 %v1234, 1.0
      %v1267 = vadd.f32 %v1235, 1.0
      %v1268 = vadd.f32 %v1236, 1.0
      %v1269 = vadd.f32 %v1237, 1.0
      %v1270 = vadd.f32 %v1238, 1.0
      %v1271 = vadd.f32 %v1239, 1.0
      %v1272 = vadd.f32 %v1240, 1.0
      %v1273 = vadd.f32 %v1241, 1.0
      %v1274 = vmul.f32 %v442, %v1242
      %v1275 = vmul.f32 %v443, %v1243
      %v1276 = vmul.f32 %v444, %v1244
      %v1277 = vmul.f32 %v445, %v1245
      %v1278 = vmul.f32 %v446, %v1246
      %v1279 = vmul.f32 %v447, %v1247
      %v1280 = vmul.f32 %v448, %v1248
      %v1281 = vmul.f32 %v449, %v1249
      %v1282 = vmul.f32 %v450, %v1250
      %v1283 = vmul.f32 %v451, %v1251
      %v1284 = vmul.f32 %v452, %v1252
      %v1285 = vmul.f32 %v453, %v1253
      %v1286 = vmul.f32 %v454, %v1254
      %v1287 = vmul.f32 %v455, %v1255
      %v1288 = vmul.f32 %v456, %v1256
      %v1289 = vmul.f32 %v457, %v1257
      %v1290 = vmul.f32 %v458, %v1258
      %v1291 = vmul.f32 %v459, %v1259
      %v1292 = vmul.f32 %v460, %v1260
      %v1293 = vmul.f32 %v461, %v1261
      %v1294 = vmul.f32 %v462, %v1262
      %v1295 = vmul.f32 %v463, %v1263
      %v1296 = vmul.f32 %v464, %v1264
      %v1297 = vmul.f32 %v465, %v1265
      %v1298 = vmul.f32 %v466, %v1266
      %v1299 = vmul.f32 %v467, %v1267
      %v1300 = vmul.f32 %v468, %v1268
      %v1301 = vmul.f32 %v469, %v1269
      %v1302 = vmul.f32 %v470, %v1270
      %v1303 = vmul.f32 %v471, %v1271
      %v1304 = vmul.f32 %v472, %v1272
      %v1305 = vmul.f32 %v473, %v1273
      %v1306 = vpack.c.bf16 %v1275, %v1274
      %v1307 = vpack.c.bf16 %v1277, %v1276
      %v1308 = vpack.c.bf16 %v1279, %v1278
      %v1309 = vpack.c.bf16 %v1281, %v1280
      %v1310 = vpack.c.bf16 %v1283, %v1282
      %v1311 = vpack.c.bf16 %v1285, %v1284
      %v1312 = vpack.c.bf16 %v1287, %v1286
      %v1313 = vpack.c.bf16 %v1289, %v1288
      %v1314 = vpack.c.bf16 %v1291, %v1290
      %v1315 = vpack.c.bf16 %v1293, %v1292
      %v1316 = vpack.c.bf16 %v1295, %v1294
      %v1317 = vpack.c.bf16 %v1297, %v1296
      %v1318 = vpack.c.bf16 %v1299, %v1298
      %v1319 = vpack.c.bf16 %v1301, %v1300
      %v1320 = vpack.c.bf16 %v1303, %v1302
      %v1321 = vpack.c.bf16 %v1305, %v1304
      %v1322 = vld [vmem:[%s3] sm:$0xf]
      %v1323 = vld [vmem:[%s3 + $0x4] sm:$0xf]
      %v1324 = vld [vmem:[%s3 + $0x8] sm:$0xf]
      %v1325 = vld [vmem:[%s3 + $0xc] sm:$0xf]
      %v1326 = vld [vmem:[%s3 + $0x10] sm:$0xf]
      %v1327 = vld [vmem:[%s3 + $0x14] sm:$0xf]
      %v1328 = vld [vmem:[%s3 + $0x18] sm:$0xf]
      %v1329 = vld [vmem:[%s3 + $0x1c] sm:$0xf]
      %v1330 = vld [vmem:[%s3 + $0x20] sm:$0xf]
      %v1331 = vld [vmem:[%s3 + $0x24] sm:$0xf]
      %v1332 = vld [vmem:[%s3 + $0x28] sm:$0xf]
      %v1333 = vld [vmem:[%s3 + $0x2c] sm:$0xf]
      %v1334 = vld [vmem:[%s3 + $0x30] sm:$0xf]
      %v1335 = vld [vmem:[%s3 + $0x34] sm:$0xf]
      %v1336 = vld [vmem:[%s3 + $0x38] sm:$0xf]
      %v1337 = vld [vmem:[%s3 + $0x3c] sm:$0xf]
      %v1338 = vld [vmem:[%s4] sm:$0x1]
      %v1340 = vlaneseq
      %v1341 = vshrl.u32 %v1340, 7
      %v1342 = vsub.s32 0, %v1341
      %v1343 = vrot.slane %v1338, %v1342
      %v1361 = vunpack.c.l.b16 %v1322
      %v1362 = vunpack.c.l.b16 %v1323
      %v1363 = vunpack.c.l.b16 %v1324
      %v1364 = vunpack.c.l.b16 %v1325
      %v1365 = vunpack.c.l.b16 %v1326
      %v1366 = vunpack.c.l.b16 %v1327
      %v1367 = vunpack.c.l.b16 %v1328
      %v1368 = vunpack.c.l.b16 %v1329
      %v1369 = vunpack.c.l.b16 %v1330
      %v1370 = vunpack.c.l.b16 %v1331
      %v1371 = vunpack.c.l.b16 %v1332
      %v1372 = vunpack.c.l.b16 %v1333
      %v1373 = vunpack.c.l.b16 %v1334
      %v1374 = vunpack.c.l.b16 %v1335
      %v1375 = vunpack.c.l.b16 %v1336
      %v1376 = vunpack.c.l.b16 %v1337
      %v1377 = vpack.c.b16 %v1362, %v1361
      %v1378 = vpack.c.b16 %v1364, %v1363
      %v1379 = vpack.c.b16 %v1366, %v1365
      %v1380 = vpack.c.b16 %v1368, %v1367
      %v1381 = vpack.c.b16 %v1370, %v1369
      %v1382 = vpack.c.b16 %v1372, %v1371
      %v1383 = vpack.c.b16 %v1374, %v1373
      %v1384 = vpack.c.b16 %v1376, %v1375
      %1393 = vmatprep.subr.bf16.mxu0 0
      %1394 = vmatpush1.bf16.msra.mxu0 %v1384
      %1395 = vmatprep.subr.bf16.mxu0 0
      %1396 = vmatpush1.bf16.msra.mxu0 %v1383
      %1397 = vmatprep.subr.bf16.mxu0 0
      %1398 = vmatpush1.bf16.msra.mxu0 %v1382
      %1399 = vmatprep.subr.bf16.mxu0 0
      %1400 = vmatpush1.bf16.msra.mxu0 %v1381
      %1401 = vmatprep.subr.bf16.mxu0 0
      %1402 = vmatpush1.bf16.msra.mxu0 %v1380
      %1403 = vmatprep.subr.bf16.mxu0 0
      %1404 = vmatpush1.bf16.msra.mxu0 %v1379
      %1405 = vmatprep.subr.bf16.mxu0 0
      %1406 = vmatpush1.bf16.msra.mxu0 %v1378
      %1407 = vmatprep.subr.bf16.mxu0 0
      %1408 = vmatpush1.bf16.msra.mxu0 %v1377
      %1409 = vmatprep.subr.bf16.mxu0 0
      %1410 = vmatpush2.bf16.msra.mxu0 0
      %1411 = vmatprep.subr.bf16.mxu0 0
      %1412 = vmatpush2.bf16.msra.mxu0 0
      %1413 = vmatprep.subr.bf16.mxu0 0
      %1414 = vmatpush2.bf16.msra.mxu0 0
      %1415 = vmatprep.subr.bf16.mxu0 0
      %1416 = vmatpush2.bf16.msra.mxu0 0
      %1417 = vmatprep.subr.bf16.mxu0 0
      %1418 = vmatpush2.bf16.msra.mxu0 0
      %1419 = vmatprep.subr.bf16.mxu0 0
      %1420 = vmatpush2.bf16.msra.mxu0 0
      %1421 = vmatprep.subr.bf16.mxu0 0
      %1422 = vmatpush2.bf16.msra.mxu0 0
      %1423 = vmatprep.subr.bf16.mxu0 0
      %1424 = vmatpush2.bf16.msra.mxu0 0
      %1425 = vmatprep.mubr.bf16.mxu0 0
      %1426 = vmatmul.mubr.bf16.gmra.mxu0 %v1306
      %v1427 = vpop.f32.mrf.mxu0
      %v1428 = vadd.f32 %v1343, %v1427
      %v1429 = vpop.f32.mrf.mxu0
      %v1430 = vpop.f32.mrf.mxu0
      %v1431 = vadd.f32 %v1343, %v1430
      %v1432 = vpop.f32.mrf.mxu0
      %1433 = vmatprep.mubr.bf16.mxu0 0
      %1434 = vmatmul.mubr.bf16.gmra.mxu0 %v1307
      %v1435 = vpop.f32.mrf.mxu0
      %v1436 = vadd.f32 %v1343, %v1435
      %v1437 = vpop.f32.mrf.mxu0
      %v1438 = vpop.f32.mrf.mxu0
      %v1439 = vadd.f32 %v1343, %v1438
      %v1440 = vpop.f32.mrf.mxu0
      %1441 = vmatprep.mubr.bf16.mxu0 0
      %1442 = vmatmul.mubr.bf16.gmra.mxu0 %v1308
      %v1443 = vpop.f32.mrf.mxu0
      %v1444 = vadd.f32 %v1343, %v1443
      %v1445 = vpop.f32.mrf.mxu0
      %v1446 = vpop.f32.mrf.mxu0
      %v1447 = vadd.f32 %v1343, %v1446
      %v1448 = vpop.f32.mrf.mxu0
      %1449 = vmatprep.mubr.bf16.mxu0 0
      %1450 = vmatmul.mubr.bf16.gmra.mxu0 %v1309
      %v1451 = vpop.f32.mrf.mxu0
      %v1452 = vadd.f32 %v1343, %v1451
      %v1453 = vpop.f32.mrf.mxu0
      %v1454 = vpop.f32.mrf.mxu0
      %v1455 = vadd.f32 %v1343, %v1454
      %v1456 = vpop.f32.mrf.mxu0
      %1457 = vmatprep.mubr.bf16.mxu0 0
      %1458 = vmatmul.mubr.bf16.gmra.mxu0 %v1310
      %v1459 = vpop.f32.mrf.mxu0
      %v1460 = vadd.f32 %v1343, %v1459
      %v1461 = vpop.f32.mrf.mxu0
      %v1462 = vpop.f32.mrf.mxu0
      %v1463 = vadd.f32 %v1343, %v1462
      %v1464 = vpop.f32.mrf.mxu0
      %1465 = vmatprep.mubr.bf16.mxu0 0
      %1466 = vmatmul.mubr.bf16.gmra.mxu0 %v1311
      %v1467 = vpop.f32.mrf.mxu0
      %v1468 = vadd.f32 %v1343, %v1467
      %v1469 = vpop.f32.mrf.mxu0
      %v1470 = vpop.f32.mrf.mxu0
      %v1471 = vadd.f32 %v1343, %v1470
      %v1472 = vpop.f32.mrf.mxu0
      %1473 = vmatprep.mubr.bf16.mxu0 0
      %1474 = vmatmul.mubr.bf16.gmra.mxu0 %v1312
      %v1475 = vpop.f32.mrf.mxu0
      %v1476 = vadd.f32 %v1343, %v1475
      %v1477 = vpop.f32.mrf.mxu0
      %v1478 = vpop.f32.mrf.mxu0
      %v1479 = vadd.f32 %v1343, %v1478
      %v1480 = vpop.f32.mrf.mxu0
      %1481 = vmatprep.mubr.bf16.mxu0 0
      %1482 = vmatmul.mubr.bf16.gmra.mxu0 %v1313
      %v1483 = vpop.f32.mrf.mxu0
      %v1484 = vadd.f32 %v1343, %v1483
      %v1485 = vpop.f32.mrf.mxu0
      %v1486 = vpop.f32.mrf.mxu0
      %v1487 = vadd.f32 %v1343, %v1486
      %v1488 = vpop.f32.mrf.mxu0
      %1489 = vmatprep.mubr.bf16.mxu0 0
      %1490 = vmatmul.mubr.bf16.gmra.mxu0 %v1314
      %v1491 = vpop.f32.mrf.mxu0
      %v1492 = vadd.f32 %v1343, %v1491
      %v1493 = vpop.f32.mrf.mxu0
      %v1494 = vpop.f32.mrf.mxu0
      %v1495 = vadd.f32 %v1343, %v1494
      %v1496 = vpop.f32.mrf.mxu0
      %1497 = vmatprep.mubr.bf16.mxu0 0
      %1498 = vmatmul.mubr.bf16.gmra.mxu0 %v1315
      %v1499 = vpop.f32.mrf.mxu0
      %v1500 = vadd.f32 %v1343, %v1499
      %v1501 = vpop.f32.mrf.mxu0
      %v1502 = vpop.f32.mrf.mxu0
      %v1503 = vadd.f32 %v1343, %v1502
      %v1504 = vpop.f32.mrf.mxu0
      %1505 = vmatprep.mubr.bf16.mxu0 0
      %1506 = vmatmul.mubr.bf16.gmra.mxu0 %v1316
      %v1507 = vpop.f32.mrf.mxu0
      %v1508 = vadd.f32 %v1343, %v1507
      %v1509 = vpop.f32.mrf.mxu0
      %v1510 = vpop.f32.mrf.mxu0
      %v1511 = vadd.f32 %v1343, %v1510
      %v1512 = vpop.f32.mrf.mxu0
      %1513 = vmatprep.mubr.bf16.mxu0 0
      %1514 = vmatmul.mubr.bf16.gmra.mxu0 %v1317
      %v1515 = vpop.f32.mrf.mxu0
      %v1516 = vadd.f32 %v1343, %v1515
      %v1517 = vpop.f32.mrf.mxu0
      %v1518 = vpop.f32.mrf.mxu0
      %v1519 = vadd.f32 %v1343, %v1518
      %v1520 = vpop.f32.mrf.mxu0
      %1521 = vmatprep.mubr.bf16.mxu0 0
      %1522 = vmatmul.mubr.bf16.gmra.mxu0 %v1318
      %v1523 = vpop.f32.mrf.mxu0
      %v1524 = vadd.f32 %v1343, %v1523
      %v1525 = vpop.f32.mrf.mxu0
      %v1526 = vpop.f32.mrf.mxu0
      %v1527 = vadd.f32 %v1343, %v1526
      %v1528 = vpop.f32.mrf.mxu0
      %1529 = vmatprep.mubr.bf16.mxu0 0
      %1530 = vmatmul.mubr.bf16.gmra.mxu0 %v1319
      %v1531 = vpop.f32.mrf.mxu0
      %v1532 = vadd.f32 %v1343, %v1531
      %v1533 = vpop.f32.mrf.mxu0
      %v1534 = vpop.f32.mrf.mxu0
      %v1535 = vadd.f32 %v1343, %v1534
      %v1536 = vpop.f32.mrf.mxu0
      %1537 = vmatprep.mubr.bf16.mxu0 0
      %1538 = vmatmul.mubr.bf16.gmra.mxu0 %v1320
      %v1539 = vpop.f32.mrf.mxu0
      %v1540 = vadd.f32 %v1343, %v1539
      %v1541 = vpop.f32.mrf.mxu0
      %v1542 = vpop.f32.mrf.mxu0
      %v1543 = vadd.f32 %v1343, %v1542
      %v1544 = vpop.f32.mrf.mxu0
      %1545 = vmatprep.mubr.bf16.mxu0 0
      %1546 = vmatmul.mubr.bf16.gmra.mxu0 %v1321
      %v1547 = vpop.f32.mrf.mxu0
      %v1548 = vadd.f32 %v1343, %v1547
      %v1549 = vpop.f32.mrf.mxu0
      %v1550 = vpop.f32.mrf.mxu0
      %v1551 = vadd.f32 %v1343, %v1550
      %v1552 = vpop.f32.mrf.mxu0
      %1553 = vdwg.mxu0
      %v1554 = vpack.c.bf16 %v1431, %v1428
      %v1555 = vpack.c.bf16 %v1439, %v1436
      %v1556 = vpack.c.bf16 %v1447, %v1444
      %v1557 = vpack.c.bf16 %v1455, %v1452
      %v1558 = vpack.c.bf16 %v1463, %v1460
      %v1559 = vpack.c.bf16 %v1471, %v1468
      %v1560 = vpack.c.bf16 %v1479, %v1476
      %v1561 = vpack.c.bf16 %v1487, %v1484
      %v1562 = vpack.c.bf16 %v1495, %v1492
      %v1563 = vpack.c.bf16 %v1503, %v1500
      %v1564 = vpack.c.bf16 %v1511, %v1508
      %v1565 = vpack.c.bf16 %v1519, %v1516
      %v1566 = vpack.c.bf16 %v1527, %v1524
      %v1567 = vpack.c.bf16 %v1535, %v1532
      %v1568 = vpack.c.bf16 %v1543, %v1540
      %v1569 = vpack.c.bf16 %v1551, %v1548
      %v1586 = vunpack.c.l.b16 %v1554
      %v1587 = vunpack.c.h.b16 %v1554
      %v1588 = vunpack.c.l.b16 %v1555
      %v1589 = vunpack.c.h.b16 %v1555
      %v1590 = vunpack.c.l.b16 %v1556
      %v1591 = vunpack.c.h.b16 %v1556
      %v1592 = vunpack.c.l.b16 %v1557
      %v1593 = vunpack.c.h.b16 %v1557
      %v1594 = vunpack.c.l.b16 %v1558
      %v1595 = vunpack.c.h.b16 %v1558
      %v1596 = vunpack.c.l.b16 %v1559
      %v1597 = vunpack.c.h.b16 %v1559
      %v1598 = vunpack.c.l.b16 %v1560
      %v1599 = vunpack.c.h.b16 %v1560
      %v1600 = vunpack.c.l.b16 %v1561
      %v1601 = vunpack.c.h.b16 %v1561
      %v1602 = vunpack.c.l.b16 %v1562
      %v1603 = vunpack.c.h.b16 %v1562
      %v1604 = vunpack.c.l.b16 %v1563
      %v1605 = vunpack.c.h.b16 %v1563
      %v1606 = vunpack.c.l.b16 %v1564
      %v1607 = vunpack.c.h.b16 %v1564
      %v1608 = vunpack.c.l.b16 %v1565
      %v1609 = vunpack.c.h.b16 %v1565
      %v1610 = vunpack.c.l.b16 %v1566
      %v1611 = vunpack.c.h.b16 %v1566
      %v1612 = vunpack.c.l.b16 %v1567
      %v1613 = vunpack.c.h.b16 %v1567
      %v1614 = vunpack.c.l.b16 %v1568
      %v1615 = vunpack.c.h.b16 %v1568
      %v1616 = vunpack.c.l.b16 %v1569
      %v1617 = vunpack.c.h.b16 %v1569
      %v1618 = vpack.c.b16 %v1586, %v1586
      %v1619 = vpack.c.b16 %v1587, %v1587
      %v1620 = vpack.c.b16 %v1588, %v1588
      %v1621 = vpack.c.b16 %v1589, %v1589
      %v1622 = vpack.c.b16 %v1590, %v1590
      %v1623 = vpack.c.b16 %v1591, %v1591
      %v1624 = vpack.c.b16 %v1592, %v1592
      %v1625 = vpack.c.b16 %v1593, %v1593
      %v1626 = vpack.c.b16 %v1594, %v1594
      %v1627 = vpack.c.b16 %v1595, %v1595
      %v1628 = vpack.c.b16 %v1596, %v1596
      %v1629 = vpack.c.b16 %v1597, %v1597
      %v1630 = vpack.c.b16 %v1598, %v1598
      %v1631 = vpack.c.b16 %v1599, %v1599
      %v1632 = vpack.c.b16 %v1600, %v1600
      %v1633 = vpack.c.b16 %v1601, %v1601
      %v1634 = vpack.c.b16 %v1602, %v1602
      %v1635 = vpack.c.b16 %v1603, %v1603
      %v1636 = vpack.c.b16 %v1604, %v1604
      %v1637 = vpack.c.b16 %v1605, %v1605
      %v1638 = vpack.c.b16 %v1606, %v1606
      %v1639 = vpack.c.b16 %v1607, %v1607
      %v1640 = vpack.c.b16 %v1608, %v1608
      %v1641 = vpack.c.b16 %v1609, %v1609
      %v1642 = vpack.c.b16 %v1610, %v1610
      %v1643 = vpack.c.b16 %v1611, %v1611
      %v1644 = vpack.c.b16 %v1612, %v1612
      %v1645 = vpack.c.b16 %v1613, %v1613
      %v1646 = vpack.c.b16 %v1614, %v1614
      %v1647 = vpack.c.b16 %v1615, %v1615
      %v1648 = vpack.c.b16 %v1616, %v1616
      %v1649 = vpack.c.b16 %v1617, %v1617
      %1682 = vst [vmem:[%s291] sm:$0xf] %v1618
      %1683 = vst [vmem:[%s291 + $0x4] sm:$0xf] %v1619
      %1684 = vst [vmem:[%s291 + $0x8] sm:$0xf] %v1620
      %1685 = vst [vmem:[%s291 + $0xc] sm:$0xf] %v1621
      %1686 = vst [vmem:[%s291 + $0x10] sm:$0xf] %v1622
      %1687 = vst [vmem:[%s291 + $0x14] sm:$0xf] %v1623
      %1688 = vst [vmem:[%s291 + $0x18] sm:$0xf] %v1624
      %1689 = vst [vmem:[%s291 + $0x1c] sm:$0xf] %v1625
      %1690 = vst [vmem:[%s291 + $0x20] sm:$0xf] %v1626
      %1691 = vst [vmem:[%s291 + $0x24] sm:$0xf] %v1627
      %1692 = vst [vmem:[%s291 + $0x28] sm:$0xf] %v1628
      %1693 = vst [vmem:[%s291 + $0x2c] sm:$0xf] %v1629
      %1694 = vst [vmem:[%s291 + $0x30] sm:$0xf] %v1630
      %1695 = vst [vmem:[%s291 + $0x34] sm:$0xf] %v1631
      %1696 = vst [vmem:[%s291 + $0x38] sm:$0xf] %v1632
      %1697 = vst [vmem:[%s291 + $0x3c] sm:$0xf] %v1633
      %1698 = vst [vmem:[%s291 + $0x40] sm:$0xf] %v1634
      %1699 = vst [vmem:[%s291 + $0x44] sm:$0xf] %v1635
      %1700 = vst [vmem:[%s291 + $0x48] sm:$0xf] %v1636
      %1701 = vst [vmem:[%s291 + $0x4c] sm:$0xf] %v1637
      %1702 = vst [vmem:[%s291 + $0x50] sm:$0xf] %v1638
      %1703 = vst [vmem:[%s291 + $0x54] sm:$0xf] %v1639
      %1704 = vst [vmem:[%s291 + $0x58] sm:$0xf] %v1640
      %1705 = vst [vmem:[%s291 + $0x5c] sm:$0xf] %v1641
      %1706 = vst [vmem:[%s291 + $0x60] sm:$0xf] %v1642
      %1707 = vst [vmem:[%s291 + $0x64] sm:$0xf] %v1643
      %1708 = vst [vmem:[%s291 + $0x68] sm:$0xf] %v1644
      %1709 = vst [vmem:[%s291 + $0x6c] sm:$0xf] %v1645
      %1710 = vst [vmem:[%s291 + $0x70] sm:$0xf] %v1646
      %1711 = vst [vmem:[%s291 + $0x74] sm:$0xf] %v1647
      %1712 = vst [vmem:[%s291 + $0x78] sm:$0xf] %v1648
      %1713 = vst [vmem:[%s291 + $0x7c] sm:$0xf] %v1649
      %v1714 = vadd.f32 %v1428, %v1431
      %v1715 = vadd.f32 %v1714, %v1436
      %v1716 = vadd.f32 %v1715, %v1439
      %v1717 = vadd.f32 %v1716, %v1444
      %v1718 = vadd.f32 %v1717, %v1447
      %v1719 = vadd.f32 %v1718, %v1452
      %v1720 = vadd.f32 %v1719, %v1455
      %v1721 = vadd.f32 %v1720, %v1460
      %v1722 = vadd.f32 %v1721, %v1463
      %v1723 = vadd.f32 %v1722, %v1468
      %v1724 = vadd.f32 %v1723, %v1471
      %v1725 = vadd.f32 %v1724, %v1476
      %v1726 = vadd.f32 %v1725, %v1479
      %v1727 = vadd.f32 %v1726, %v1484
      %v1728 = vadd.f32 %v1727, %v1487
      %v1729 = vadd.f32 %v1728, %v1492
      %v1730 = vadd.f32 %v1729, %v1495
      %v1731 = vadd.f32 %v1730, %v1500
      %v1732 = vadd.f32 %v1731, %v1503
      %v1733 = vadd.f32 %v1732, %v1508
      %v1734 = vadd.f32 %v1733, %v1511
      %v1735 = vadd.f32 %v1734, %v1516
      %v1736 = vadd.f32 %v1735, %v1519
      %v1737 = vadd.f32 %v1736, %v1524
      %v1738 = vadd.f32 %v1737, %v1527
      %v1739 = vadd.f32 %v1738, %v1532
      %v1740 = vadd.f32 %v1739, %v1535
      %v1741 = vadd.f32 %v1740, %v1540
      %v1742 = vadd.f32 %v1741, %v1543
      %v1743 = vadd.f32 %v1742, %v1548
      %v1744 = vadd.f32 %v1743, %v1551
      %v1745 = vrot.slane %v1744, 4
      %v1746 = vadd.f32 %v1744, %v1745
      %v1747 = vrot.slane %v1746, 2
      %v1748 = vadd.f32 %v1746, %v1747
      %v1749 = vrot.slane %v1748, 1
      %v1750 = vadd.f32 %v1748, %v1749
      %1751 = vst [vmem:[%s295] sm:$0x1] %v1750
      %v1752 = vmul.f32 %v1428, %v1428
      %v1753 = vmul.f32 %v1431, %v1431
      %v1754 = vmul.f32 %v1436, %v1436
      %v1755 = vmul.f32 %v1439, %v1439
      %v1756 = vmul.f32 %v1444, %v1444
      %v1757 = vmul.f32 %v1447, %v1447
      %v1758 = vmul.f32 %v1452, %v1452
      %v1759 = vmul.f32 %v1455, %v1455
      %v1760 = vmul.f32 %v1460, %v1460
      %v1761 = vmul.f32 %v1463, %v1463
      %v1762 = vmul.f32 %v1468, %v1468
      %v1763 = vmul.f32 %v1471, %v1471
      %v1764 = vmul.f32 %v1476, %v1476
      %v1765 = vmul.f32 %v1479, %v1479
      %v1766 = vmul.f32 %v1484, %v1484
      %v1767 = vmul.f32 %v1487, %v1487
      %v1768 = vmul.f32 %v1492, %v1492
      %v1769 = vmul.f32 %v1495, %v1495
      %v1770 = vmul.f32 %v1500, %v1500
      %v1771 = vmul.f32 %v1503, %v1503
      %v1772 = vmul.f32 %v1508, %v1508
      %v1773 = vmul.f32 %v1511, %v1511
      %v1774 = vmul.f32 %v1516, %v1516
      %v1775 = vmul.f32 %v1519, %v1519
      %v1776 = vmul.f32 %v1524, %v1524
      %v1777 = vmul.f32 %v1527, %v1527
      %v1778 = vmul.f32 %v1532, %v1532
      %v1779 = vmul.f32 %v1535, %v1535
      %v1780 = vmul.f32 %v1540, %v1540
      %v1781 = vmul.f32 %v1543, %v1543
      %v1782 = vmul.f32 %v1548, %v1548
      %v1783 = vmul.f32 %v1551, %v1551
      %v1784 = vadd.f32 %v1752, %v1753
      %v1785 = vadd.f32 %v1784, %v1754
      %v1786 = vadd.f32 %v1785, %v1755
      %v1787 = vadd.f32 %v1786, %v1756
      %v1788 = vadd.f32 %v1787, %v1757
      %v1789 = vadd.f32 %v1788, %v1758
      %v1790 = vadd.f32 %v1789, %v1759
      %v1791 = vadd.f32 %v1790, %v1760
      %v1792 = vadd.f32 %v1791, %v1761
      %v1793 = vadd.f32 %v1792, %v1762
      %v1794 = vadd.f32 %v1793, %v1763
      %v1795 = vadd.f32 %v1794, %v1764
      %v1796 = vadd.f32 %v1795, %v1765
      %v1797 = vadd.f32 %v1796, %v1766
      %v1798 = vadd.f32 %v1797, %v1767
      %v1799 = vadd.f32 %v1798, %v1768
      %v1800 = vadd.f32 %v1799, %v1769
      %v1801 = vadd.f32 %v1800, %v1770
      %v1802 = vadd.f32 %v1801, %v1771
      %v1803 = vadd.f32 %v1802, %v1772
      %v1804 = vadd.f32 %v1803, %v1773
      %v1805 = vadd.f32 %v1804, %v1774
      %v1806 = vadd.f32 %v1805, %v1775
      %v1807 = vadd.f32 %v1806, %v1776
      %v1808 = vadd.f32 %v1807, %v1777
      %v1809 = vadd.f32 %v1808, %v1778
      %v1810 = vadd.f32 %v1809, %v1779
      %v1811 = vadd.f32 %v1810, %v1780
      %v1812 = vadd.f32 %v1811, %v1781
      %v1813 = vadd.f32 %v1812, %v1782
      %v1814 = vadd.f32 %v1813, %v1783
      %v1815 = vrot.slane %v1814, 4
      %v1816 = vadd.f32 %v1814, %v1815
      %v1817 = vrot.slane %v1816, 2
      %v1818 = vadd.f32 %v1816, %v1817
      %v1819 = vrot.slane %v1818, 1
      %v1820 = vadd.f32 %v1818, %v1819
      %1821 = vst [vmem:[%s298] sm:$0x1] %v1820
      %s1822 = smul.u32 32, %s19
      %p1823 = scmp.lt.s32.totalorder %s1822, 63
      %s1824 = scalar_select %p1823, %s1822, 63
      %s1825 = smul.addr %s1824, 4
      %s1826 = scalar_lea.vmem %s5, %s1825
      %p1827 = scmp.lt.s32.totalorder %s19, 1
      %s1828 = scalar_select %p1827, %s19, 1
      %s1829 = scalar_lea.vmem %s6, %s1828
      %p1830 = scmp.lt.s32.totalorder %s19, 1
      %s1831 = scalar_select %p1830, %s19, 1
      %s1832 = scalar_lea.vmem %s7, %s1831
      // Predicated region
      $region41: #{dwpw_conv.4} parent=39 // pred_check
        %p1833 = pneg %p147
      $region42: #{dwpw_conv.4} parent=39 // pred_check_branch
        %1835 = sbr.rel (%p1833) target = $region44
      $region43: #{dwpw_conv.4} parent=39 // pred_region
        %s1836 = smul.u32 32, %s19
      $region44: #{dwpw_conv.4} parent=39 // pred_fallthru
        _
      // Predicated region
      $region45: #{dwpw_conv.4} parent=39 // pred_check
        %p1837 = pneg %p173
      $region46: #{dwpw_conv.4} parent=39 // pred_check_branch
        %1839 = sbr.rel (%p1837) target = $region48
      $region47: #{dwpw_conv.4} parent=39 // pred_region
        _
      $region48: #{dwpw_conv.4} parent=39 // pred_fallthru
        _
      // Predicated region
      $region49: #{dwpw_conv.4} parent=39 // pred_check
        %p1840 = pneg %p199
      $region50: #{dwpw_conv.4} parent=39 // pred_check_branch
        %1842 = sbr.rel (%p1840) target = $region52
      $region51: #{dwpw_conv.4} parent=39 // pred_region
        _
      $region52: #{dwpw_conv.4} parent=39 // pred_fallthru
        _
    $region40: #{dwpw_conv.4} parent=5 // pred_fallthru
      _
    %p1843 = scmp.le.s32.totalorder 2, %s14
    // Predicated region
    $region53: #{dwpw_conv.4} parent=5 // pred_check
      %p1844 = pneg %p1843
    $region54: #{dwpw_conv.4} parent=5 // pred_check_branch
      %1846 = sbr.rel (%p1844) target = $region56
    $region55: #{dwpw_conv.4} parent=5 // pred_region
      %s1847 = ssub.s32 %s14, 2
      // Predicated region
      $region57: #{dwpw_conv.4} parent=55 // pred_check
        %p1848 = pneg %p153
      $region58: #{dwpw_conv.4} parent=55 // pred_check_branch
        %1850 = sbr.rel (%p1848) target = $region60
      $region59: #{dwpw_conv.4} parent=55 // pred_region
        %s1851 = smul.u32 32, %s20
        %p1852 = scmp.lt.s32.totalorder %s1851, 63
        %s1853 = scalar_select %p1852, %s1851, 63
        %s1854 = smul.addr %s1853, 4
        %s1855 = scalar_lea.vmem %s5, %s1854
      $region60: #{dwpw_conv.4} parent=55 // pred_fallthru
        _
      // Predicated region
      $region61: #{dwpw_conv.4} parent=55 // pred_check
        %p1856 = pneg %p179
      $region62: #{dwpw_conv.4} parent=55 // pred_check_branch
        %1858 = sbr.rel (%p1856) target = $region64
      $region63: #{dwpw_conv.4} parent=55 // pred_region
        %p1859 = scmp.lt.s32.totalorder %s20, 1
        %s1860 = scalar_select %p1859, %s20, 1
        %s1861 = scalar_lea.vmem %s6, %s1860
      $region64: #{dwpw_conv.4} parent=55 // pred_fallthru
        _
      // Predicated region
      $region65: #{dwpw_conv.4} parent=55 // pred_check
        %p1862 = pneg %p205
      $region66: #{dwpw_conv.4} parent=55 // pred_check_branch
        %1864 = sbr.rel (%p1862) target = $region68
      $region67: #{dwpw_conv.4} parent=55 // pred_region
        %p1865 = scmp.lt.s32.totalorder %s20, 1
        %s1866 = scalar_select %p1865, %s20, 1
        %s1867 = scalar_lea.vmem %s7, %s1866
      $region68: #{dwpw_conv.4} parent=55 // pred_fallthru
        _
    $region56: #{dwpw_conv.4} parent=5 // pred_fallthru
      _
  $region6: #{dwpw_conv.4} parent=0 // loop_footer
    %s18 = sadd.s32 1, %s14
  $region7: #{dwpw_conv.4} parent=0 // loop_footer_branch
    %13 = sbr.rel target = $region3
  $region8: #{dwpw_conv.4} parent=0 // loop_exit
    _

</llo_original>
